<compile_context>
chip_gen: v6e
topology: v6e:2x2x1
jax: 0.10.0
libtpu: 0.0.40
codegen_flags: <defaults>
</compile_context>

<pallas_src>
import jax
import jax.numpy as jnp
from jax.experimental import pallas as pl
from jax.experimental.pallas import tpu as pltpu


def _dmgcn_kernel(ids_ref, proj_ref, out_ref):
    # ids_ref : (D, B_tile, S) int32    neighbor ids for this batch tile
    # proj_ref: (D, N, O)      bf16     pre-projected feature table (F @ W_d)
    # out_ref : (B_tile, D*O)  f32      lane-dense concatenated output
    D, b_tile, S = ids_ref.shape
    _, N, O = proj_ref.shape

    inv_s = jnp.float32(1.0 / S)
    n_chunk = min(N, 512)                 # keep the counts matrix vreg-resident

    ids = ids_ref[...]                    # (D, B_tile, S) int32
    accs = [jnp.zeros((b_tile, O), jnp.float32) for _ in range(D)]

    for n0 in range(0, N, n_chunk):       # N is static -> unrolled chunk loop
        nc = min(n_chunk, N - n0)
        # lane iota for this chunk of node ids (built once per chunk).
        col = jax.lax.broadcasted_iota(jnp.int32, (b_tile, nc), 1) + n0
        for d in range(D):                # D is tiny (e.g. 3) -> unroll
            ids_d = ids[d]                # (B_tile, S) int32
            counts = jnp.zeros((b_tile, nc), jnp.int32)
            for s in range(S):            # int32 accumulate, no per-s f32 cast
                counts = counts + (ids_d[:, s:s + 1] == col)
            # single cast after the S loop; counts values (0..S) exact in bf16
            counts_bf = counts.astype(jnp.float32).astype(jnp.bfloat16)
            p = proj_ref[d, n0:n0 + nc, :]            # (nc, O) bf16
            accs[d] = accs[d] + jnp.dot(
                counts_bf, p, preferred_element_type=jnp.float32)

    for d in range(D):
        y = jnp.maximum(accs[d] * inv_s, 0.0)          # mean scale + ReLU
        out_ref[:, d * O:(d + 1) * O] = y.astype(out_ref.dtype)


def dim_aggregate(features, neigh_ids, dim_weights, *, b_tile=128):
    """Per-dimension mean-of-neighbors aggregation.

    features    : (N, F)     float32
    neigh_ids   : (D, BT, S) int32   (BT rows; may be the fused src+tgt batch)
    dim_weights : (D, F, O)  float32
    returns     : (BT, D*O)  float32
    """
    D, BT, S = neigh_ids.shape
    N, F = features.shape
    O = dim_weights.shape[-1]

    # Hoist the per-dim linear out of the kernel (mean/linear commute; ReLU is
    # applied after the linear, so this is algebraically exact up to fp order).
    proj = jnp.einsum("nf,dfo->dno", features, dim_weights)   # (D, N, O) f32
    proj = proj.astype(jnp.bfloat16)                          # MXU-friendly

    # Pad the batch axis to a multiple of the tile (MXU-aligned M dimension).
    bt_pad = pl.cdiv(BT, b_tile) * b_tile
    if bt_pad != BT:
        neigh_ids = jnp.pad(neigh_ids, ((0, 0), (0, bt_pad - BT), (0, 0)))

    # Explicit VMEM budget: 2x ids + 2x proj + 2x out double-buffers + slack,
    # clamped under the v7x physical limit (64 MiB) with headroom.
    ids_bytes = D * b_tile * S * 4
    proj_bytes = D * N * O * 2
    out_bytes = b_tile * D * O * 4
    vmem_budget = min(56 << 20,
                      max(32 << 20,
                          2 * (ids_bytes + proj_bytes + out_bytes) + (8 << 20)))

    out = pl.pallas_call(
        _dmgcn_kernel,
        out_shape=jax.ShapeDtypeStruct((bt_pad, D * O), jnp.float32),
        grid=(bt_pad // b_tile,),
        in_specs=[
            pl.BlockSpec((D, b_tile, S), lambda b: (0, b, 0)),   # ids tile
            pl.BlockSpec((D, N, O), lambda b: (0, 0, 0)),        # proj table
        ],
        out_specs=pl.BlockSpec((b_tile, D * O), lambda b: (b, 0)),
        compiler_params=pltpu.CompilerParams(
            dimension_semantics=("parallel",),
            vmem_limit_bytes=vmem_budget),
    )(neigh_ids, proj)

    return out[:BT]


def dmgcn_forward(features, source_nodes, source_to_neighs_dims,
                  target_nodes, target_to_neighs_dims, dim_weights):
    """Mirrors DMGCN.forward: returns (x_sources, x_targets)."""
    # Fuse source + target aggregations into a single pallas_call.
    B = source_to_neighs_dims.shape[1]
    ids_all = jnp.concatenate(
        [source_to_neighs_dims, target_to_neighs_dims], axis=1)  # (D, 2B, S)
    out = dim_aggregate(features, ids_all, dim_weights)          # (2B, D*O)
    return out[:B], out[B:]


if __name__ == "__main__":
    # Small, deterministic synthetic setup.
    num_nodes = 32        # N
    input_size = 32       # F
    output_size0 = 16     # output_sizes[0]
    num_dims = 3          # D
    batch = 8             # number of source / target nodes
    num_samples = 10      # S

    key = jax.random.PRNGKey(0)
    k_feat, k_w, k_src, k_tgt, k_sn, k_tn = jax.random.split(key, 6)

    features = jax.random.normal(k_feat, (num_nodes, input_size), jnp.float32)
    dim_weights = (jax.random.normal(
        k_w, (num_dims, input_size, output_size0), jnp.float32) * 0.1)

    source_nodes = jax.random.randint(k_sn, (batch,), 0, num_nodes, jnp.int32)
    target_nodes = jax.random.randint(k_tn, (batch,), 0, num_nodes, jnp.int32)
    source_to_neighs_dims = jax.random.randint(
        k_src, (num_dims, batch, num_samples), 0, num_nodes, jnp.int32)
    target_to_neighs_dims = jax.random.randint(
        k_tgt, (num_dims, batch, num_samples), 0, num_nodes, jnp.int32)

    x_sources, x_targets = jax.jit(dmgcn_forward)(
        features, source_nodes, source_to_neighs_dims,
        target_nodes, target_to_neighs_dims, dim_weights)
    jax.block_until_ready((x_sources, x_targets))

    # Pure-JAX f32 reference (kernel uses a bf16 projection table -> loose tol).
    def ref_agg(neigh_ids):
        nf = features[neigh_ids.reshape(-1)].reshape(
            num_dims, batch, num_samples, input_size)
        m = nf.mean(axis=2)                                   # (D, B, F)
        y = jnp.einsum("dbf,dfo->dbo", m, dim_weights)
        y = jnp.maximum(y, 0.0)
        return jnp.transpose(y, (1, 0, 2)).reshape(batch, -1)

    assert x_sources.shape == (batch, num_dims * output_size0)
    assert x_targets.shape == (batch, num_dims * output_size0)
    assert jnp.allclose(x_sources, ref_agg(source_to_neighs_dims),
                        atol=2e-2, rtol=2e-2)
    assert jnp.allclose(x_targets, ref_agg(target_to_neighs_dims),
                        atol=2e-2, rtol=2e-2)

    print("KERNEL_OK")
</pallas_src>

<mosaic_0001>
module attributes {stable_mosaic.version = 11 : i64} {
  func.func @_dmgcn_kernel(%arg0: i32, %arg1: memref<3x128x10xi32, #tpu.memory_space<vmem>>, %arg2: memref<3x32x16xbf16, #tpu.memory_space<vmem>>, %arg3: memref<128x48xf32, #tpu.memory_space<vmem>>) attributes {dimension_semantics = [#tpu.dimension_semantics<parallel>], iteration_bounds = array<i64: 1>, scalar_prefetch = 0 : i64, scratch_operands = 0 : i64, tpu.core_type = #tpu.core_type<tc>, window_params = [{transform_indices = @transform_0, window_bounds = array<i64: 3, 128, 10>}, {pipeline_mode = #tpu.pipeline_mode<synchronous>, transform_indices = @transform_1, window_bounds = array<i64: 3, 32, 16>}, {transform_indices = @transform_2, window_bounds = array<i64: 128, 48>}]} {
    %c0 = arith.constant 0 : index
    %c0_0 = arith.constant 0 : index
    %c0_1 = arith.constant 0 : index
    %0 = vector.load %arg1[%c0, %c0_0, %c0_1] : memref<3x128x10xi32, #tpu.memory_space<vmem>>, vector<3x128x10xi32>
    %cst = arith.constant 0.000000e+00 : f32
    %1 = vector.broadcast %cst : f32 to vector<128x16xf32>
    %cst_2 = arith.constant 0.000000e+00 : f32
    %2 = vector.broadcast %cst_2 : f32 to vector<128x16xf32>
    %cst_3 = arith.constant 0.000000e+00 : f32
    %3 = vector.broadcast %cst_3 : f32 to vector<128x16xf32>
    %4 = tpu.iota {dimensions = array<i32: 1>} : vector<128x32xi32>
    %c0_i32 = arith.constant 0 : i32
    %5 = vector.broadcast %c0_i32 : i32 to vector<128x32xi32>
    %6 = arith.addi %4, %5 : vector<128x32xi32>
    %7 = vector.extract_strided_slice %0 {offsets = [0, 0, 0], sizes = [1, 128, 10], strides = [1, 1, 1]} : vector<3x128x10xi32> to vector<1x128x10xi32>
    %8 = vector.shape_cast %7 : vector<1x128x10xi32> to vector<128x10xi32>
    %c0_i32_4 = arith.constant 0 : i32
    %9 = vector.broadcast %c0_i32_4 : i32 to vector<128x32xi32>
    %10 = vector.extract_strided_slice %8 {offsets = [0, 0], sizes = [128, 1], strides = [1, 1]} : vector<128x10xi32> to vector<128x1xi32>
    %11 = vector.broadcast %10 : vector<128x1xi32> to vector<128x32xi32>
    %12 = arith.cmpi eq, %11, %6 : vector<128x32xi32>
    %13 = arith.extui %12 : vector<128x32xi1> to vector<128x32xi32>
    %14 = arith.addi %9, %13 : vector<128x32xi32>
    %15 = vector.extract_strided_slice %8 {offsets = [0, 1], sizes = [128, 1], strides = [1, 1]} : vector<128x10xi32> to vector<128x1xi32>
    %16 = vector.broadcast %15 : vector<128x1xi32> to vector<128x32xi32>
    %17 = arith.cmpi eq, %16, %6 : vector<128x32xi32>
    %18 = arith.extui %17 : vector<128x32xi1> to vector<128x32xi32>
    %19 = arith.addi %14, %18 : vector<128x32xi32>
    %20 = vector.extract_strided_slice %8 {offsets = [0, 2], sizes = [128, 1], strides = [1, 1]} : vector<128x10xi32> to vector<128x1xi32>
    %21 = vector.broadcast %20 : vector<128x1xi32> to vector<128x32xi32>
    %22 = arith.cmpi eq, %21, %6 : vector<128x32xi32>
    %23 = arith.extui %22 : vector<128x32xi1> to vector<128x32xi32>
    %24 = arith.addi %19, %23 : vector<128x32xi32>
    %25 = vector.extract_strided_slice %8 {offsets = [0, 3], sizes = [128, 1], strides = [1, 1]} : vector<128x10xi32> to vector<128x1xi32>
    %26 = vector.broadcast %25 : vector<128x1xi32> to vector<128x32xi32>
    %27 = arith.cmpi eq, %26, %6 : vector<128x32xi32>
    %28 = arith.extui %27 : vector<128x32xi1> to vector<128x32xi32>
    %29 = arith.addi %24, %28 : vector<128x32xi32>
    %30 = vector.extract_strided_slice %8 {offsets = [0, 4], sizes = [128, 1], strides = [1, 1]} : vector<128x10xi32> to vector<128x1xi32>
    %31 = vector.broadcast %30 : vector<128x1xi32> to vector<128x32xi32>
    %32 = arith.cmpi eq, %31, %6 : vector<128x32xi32>
    %33 = arith.extui %32 : vector<128x32xi1> to vector<128x32xi32>
    %34 = arith.addi %29, %33 : vector<128x32xi32>
    %35 = vector.extract_strided_slice %8 {offsets = [0, 5], sizes = [128, 1], strides = [1, 1]} : vector<128x10xi32> to vector<128x1xi32>
    %36 = vector.broadcast %35 : vector<128x1xi32> to vector<128x32xi32>
    %37 = arith.cmpi eq, %36, %6 : vector<128x32xi32>
    %38 = arith.extui %37 : vector<128x32xi1> to vector<128x32xi32>
    %39 = arith.addi %34, %38 : vector<128x32xi32>
    %40 = vector.extract_strided_slice %8 {offsets = [0, 6], sizes = [128, 1], strides = [1, 1]} : vector<128x10xi32> to vector<128x1xi32>
    %41 = vector.broadcast %40 : vector<128x1xi32> to vector<128x32xi32>
    %42 = arith.cmpi eq, %41, %6 : vector<128x32xi32>
    %43 = arith.extui %42 : vector<128x32xi1> to vector<128x32xi32>
    %44 = arith.addi %39, %43 : vector<128x32xi32>
    %45 = vector.extract_strided_slice %8 {offsets = [0, 7], sizes = [128, 1], strides = [1, 1]} : vector<128x10xi32> to vector<128x1xi32>
    %46 = vector.broadcast %45 : vector<128x1xi32> to vector<128x32xi32>
    %47 = arith.cmpi eq, %46, %6 : vector<128x32xi32>
    %48 = arith.extui %47 : vector<128x32xi1> to vector<128x32xi32>
    %49 = arith.addi %44, %48 : vector<128x32xi32>
    %50 = vector.extract_strided_slice %8 {offsets = [0, 8], sizes = [128, 1], strides = [1, 1]} : vector<128x10xi32> to vector<128x1xi32>
    %51 = vector.broadcast %50 : vector<128x1xi32> to vector<128x32xi32>
    %52 = arith.cmpi eq, %51, %6 : vector<128x32xi32>
    %53 = arith.extui %52 : vector<128x32xi1> to vector<128x32xi32>
    %54 = arith.addi %49, %53 : vector<128x32xi32>
    %55 = vector.extract_strided_slice %8 {offsets = [0, 9], sizes = [128, 1], strides = [1, 1]} : vector<128x10xi32> to vector<128x1xi32>
    %56 = vector.broadcast %55 : vector<128x1xi32> to vector<128x32xi32>
    %57 = arith.cmpi eq, %56, %6 : vector<128x32xi32>
    %58 = arith.extui %57 : vector<128x32xi1> to vector<128x32xi32>
    %59 = arith.addi %54, %58 : vector<128x32xi32>
    %60 = arith.sitofp %59 : vector<128x32xi32> to vector<128x32xf32>
    %61 = arith.truncf %60 : vector<128x32xf32> to vector<128x32xbf16>
    %c0_5 = arith.constant 0 : index
    %c0_6 = arith.constant 0 : index
    %c0_7 = arith.constant 0 : index
    %62 = vector.load %arg2[%c0_5, %c0_6, %c0_7] : memref<3x32x16xbf16, #tpu.memory_space<vmem>>, vector<1x32x16xbf16>
    %63 = vector.shape_cast %62 : vector<1x32x16xbf16> to vector<32x16xbf16>
    %cst_8 = arith.constant dense<0.000000e+00> : vector<128x16xf32>
    %64 = tpu.matmul %61, %63, %cst_8 {dimension_numbers = #tpu.dot_dimension_numbers<[1], [0], [0], [1], [0, 0, 1, 1], [], []>} : vector<128x32xbf16>, vector<32x16xbf16>, vector<128x16xf32> -> vector<128x16xf32>
    %65 = arith.addf %1, %64 : vector<128x16xf32>
    %66 = vector.extract_strided_slice %0 {offsets = [1, 0, 0], sizes = [1, 128, 10], strides = [1, 1, 1]} : vector<3x128x10xi32> to vector<1x128x10xi32>
    %67 = vector.shape_cast %66 : vector<1x128x10xi32> to vector<128x10xi32>
    %c0_i32_9 = arith.constant 0 : i32
    %68 = vector.broadcast %c0_i32_9 : i32 to vector<128x32xi32>
    %69 = vector.extract_strided_slice %67 {offsets = [0, 0], sizes = [128, 1], strides = [1, 1]} : vector<128x10xi32> to vector<128x1xi32>
    %70 = vector.broadcast %69 : vector<128x1xi32> to vector<128x32xi32>
    %71 = arith.cmpi eq, %70, %6 : vector<128x32xi32>
    %72 = arith.extui %71 : vector<128x32xi1> to vector<128x32xi32>
    %73 = arith.addi %68, %72 : vector<128x32xi32>
    %74 = vector.extract_strided_slice %67 {offsets = [0, 1], sizes = [128, 1], strides = [1, 1]} : vector<128x10xi32> to vector<128x1xi32>
    %75 = vector.broadcast %74 : vector<128x1xi32> to vector<128x32xi32>
    %76 = arith.cmpi eq, %75, %6 : vector<128x32xi32>
    %77 = arith.extui %76 : vector<128x32xi1> to vector<128x32xi32>
    %78 = arith.addi %73, %77 : vector<128x32xi32>
    %79 = vector.extract_strided_slice %67 {offsets = [0, 2], sizes = [128, 1], strides = [1, 1]} : vector<128x10xi32> to vector<128x1xi32>
    %80 = vector.broadcast %79 : vector<128x1xi32> to vector<128x32xi32>
    %81 = arith.cmpi eq, %80, %6 : vector<128x32xi32>
    %82 = arith.extui %81 : vector<128x32xi1> to vector<128x32xi32>
    %83 = arith.addi %78, %82 : vector<128x32xi32>
    %84 = vector.extract_strided_slice %67 {offsets = [0, 3], sizes = [128, 1], strides = [1, 1]} : vector<128x10xi32> to vector<128x1xi32>
    %85 = vector.broadcast %84 : vector<128x1xi32> to vector<128x32xi32>
    %86 = arith.cmpi eq, %85, %6 : vector<128x32xi32>
    %87 = arith.extui %86 : vector<128x32xi1> to vector<128x32xi32>
    %88 = arith.addi %83, %87 : vector<128x32xi32>
    %89 = vector.extract_strided_slice %67 {offsets = [0, 4], sizes = [128, 1], strides = [1, 1]} : vector<128x10xi32> to vector<128x1xi32>
    %90 = vector.broadcast %89 : vector<128x1xi32> to vector<128x32xi32>
    %91 = arith.cmpi eq, %90, %6 : vector<128x32xi32>
    %92 = arith.extui %91 : vector<128x32xi1> to vector<128x32xi32>
    %93 = arith.addi %88, %92 : vector<128x32xi32>
    %94 = vector.extract_strided_slice %67 {offsets = [0, 5], sizes = [128, 1], strides = [1, 1]} : vector<128x10xi32> to vector<128x1xi32>
    %95 = vector.broadcast %94 : vector<128x1xi32> to vector<128x32xi32>
    %96 = arith.cmpi eq, %95, %6 : vector<128x32xi32>
    %97 = arith.extui %96 : vector<128x32xi1> to vector<128x32xi32>
    %98 = arith.addi %93, %97 : vector<128x32xi32>
    %99 = vector.extract_strided_slice %67 {offsets = [0, 6], sizes = [128, 1], strides = [1, 1]} : vector<128x10xi32> to vector<128x1xi32>
    %100 = vector.broadcast %99 : vector<128x1xi32> to vector<128x32xi32>
    %101 = arith.cmpi eq, %100, %6 : vector<128x32xi32>
    %102 = arith.extui %101 : vector<128x32xi1> to vector<128x32xi32>
    %103 = arith.addi %98, %102 : vector<128x32xi32>
    %104 = vector.extract_strided_slice %67 {offsets = [0, 7], sizes = [128, 1], strides = [1, 1]} : vector<128x10xi32> to vector<128x1xi32>
    %105 = vector.broadcast %104 : vector<128x1xi32> to vector<128x32xi32>
    %106 = arith.cmpi eq, %105, %6 : vector<128x32xi32>
    %107 = arith.extui %106 : vector<128x32xi1> to vector<128x32xi32>
    %108 = arith.addi %103, %107 : vector<128x32xi32>
    %109 = vector.extract_strided_slice %67 {offsets = [0, 8], sizes = [128, 1], strides = [1, 1]} : vector<128x10xi32> to vector<128x1xi32>
    %110 = vector.broadcast %109 : vector<128x1xi32> to vector<128x32xi32>
    %111 = arith.cmpi eq, %110, %6 : vector<128x32xi32>
    %112 = arith.extui %111 : vector<128x32xi1> to vector<128x32xi32>
    %113 = arith.addi %108, %112 : vector<128x32xi32>
    %114 = vector.extract_strided_slice %67 {offsets = [0, 9], sizes = [128, 1], strides = [1, 1]} : vector<128x10xi32> to vector<128x1xi32>
    %115 = vector.broadcast %114 : vector<128x1xi32> to vector<128x32xi32>
    %116 = arith.cmpi eq, %115, %6 : vector<128x32xi32>
    %117 = arith.extui %116 : vector<128x32xi1> to vector<128x32xi32>
    %118 = arith.addi %113, %117 : vector<128x32xi32>
    %119 = arith.sitofp %118 : vector<128x32xi32> to vector<128x32xf32>
    %120 = arith.truncf %119 : vector<128x32xf32> to vector<128x32xbf16>
    %c1 = arith.constant 1 : index
    %c0_10 = arith.constant 0 : index
    %c0_11 = arith.constant 0 : index
    %121 = vector.load %arg2[%c1, %c0_10, %c0_11] : memref<3x32x16xbf16, #tpu.memory_space<vmem>>, vector<1x32x16xbf16>
    %122 = vector.shape_cast %121 : vector<1x32x16xbf16> to vector<32x16xbf16>
    %cst_12 = arith.constant dense<0.000000e+00> : vector<128x16xf32>
    %123 = tpu.matmul %120, %122, %cst_12 {dimension_numbers = #tpu.dot_dimension_numbers<[1], [0], [0], [1], [0, 0, 1, 1], [], []>} : vector<128x32xbf16>, vector<32x16xbf16>, vector<128x16xf32> -> vector<128x16xf32>
    %124 = arith.addf %2, %123 : vector<128x16xf32>
    %125 = vector.extract_strided_slice %0 {offsets = [2, 0, 0], sizes = [1, 128, 10], strides = [1, 1, 1]} : vector<3x128x10xi32> to vector<1x128x10xi32>
    %126 = vector.shape_cast %125 : vector<1x128x10xi32> to vector<128x10xi32>
    %c0_i32_13 = arith.constant 0 : i32
    %127 = vector.broadcast %c0_i32_13 : i32 to vector<128x32xi32>
    %128 = vector.extract_strided_slice %126 {offsets = [0, 0], sizes = [128, 1], strides = [1, 1]} : vector<128x10xi32> to vector<128x1xi32>
    %129 = vector.broadcast %128 : vector<128x1xi32> to vector<128x32xi32>
    %130 = arith.cmpi eq, %129, %6 : vector<128x32xi32>
    %131 = arith.extui %130 : vector<128x32xi1> to vector<128x32xi32>
    %132 = arith.addi %127, %131 : vector<128x32xi32>
    %133 = vector.extract_strided_slice %126 {offsets = [0, 1], sizes = [128, 1], strides = [1, 1]} : vector<128x10xi32> to vector<128x1xi32>
    %134 = vector.broadcast %133 : vector<128x1xi32> to vector<128x32xi32>
    %135 = arith.cmpi eq, %134, %6 : vector<128x32xi32>
    %136 = arith.extui %135 : vector<128x32xi1> to vector<128x32xi32>
    %137 = arith.addi %132, %136 : vector<128x32xi32>
    %138 = vector.extract_strided_slice %126 {offsets = [0, 2], sizes = [128, 1], strides = [1, 1]} : vector<128x10xi32> to vector<128x1xi32>
    %139 = vector.broadcast %138 : vector<128x1xi32> to vector<128x32xi32>
    %140 = arith.cmpi eq, %139, %6 : vector<128x32xi32>
    %141 = arith.extui %140 : vector<128x32xi1> to vector<128x32xi32>
    %142 = arith.addi %137, %141 : vector<128x32xi32>
    %143 = vector.extract_strided_slice %126 {offsets = [0, 3], sizes = [128, 1], strides = [1, 1]} : vector<128x10xi32> to vector<128x1xi32>
    %144 = vector.broadcast %143 : vector<128x1xi32> to vector<128x32xi32>
    %145 = arith.cmpi eq, %144, %6 : vector<128x32xi32>
    %146 = arith.extui %145 : vector<128x32xi1> to vector<128x32xi32>
    %147 = arith.addi %142, %146 : vector<128x32xi32>
    %148 = vector.extract_strided_slice %126 {offsets = [0, 4], sizes = [128, 1], strides = [1, 1]} : vector<128x10xi32> to vector<128x1xi32>
    %149 = vector.broadcast %148 : vector<128x1xi32> to vector<128x32xi32>
    %150 = arith.cmpi eq, %149, %6 : vector<128x32xi32>
    %151 = arith.extui %150 : vector<128x32xi1> to vector<128x32xi32>
    %152 = arith.addi %147, %151 : vector<128x32xi32>
    %153 = vector.extract_strided_slice %126 {offsets = [0, 5], sizes = [128, 1], strides = [1, 1]} : vector<128x10xi32> to vector<128x1xi32>
    %154 = vector.broadcast %153 : vector<128x1xi32> to vector<128x32xi32>
    %155 = arith.cmpi eq, %154, %6 : vector<128x32xi32>
    %156 = arith.extui %155 : vector<128x32xi1> to vector<128x32xi32>
    %157 = arith.addi %152, %156 : vector<128x32xi32>
    %158 = vector.extract_strided_slice %126 {offsets = [0, 6], sizes = [128, 1], strides = [1, 1]} : vector<128x10xi32> to vector<128x1xi32>
    %159 = vector.broadcast %158 : vector<128x1xi32> to vector<128x32xi32>
    %160 = arith.cmpi eq, %159, %6 : vector<128x32xi32>
    %161 = arith.extui %160 : vector<128x32xi1> to vector<128x32xi32>
    %162 = arith.addi %157, %161 : vector<128x32xi32>
    %163 = vector.extract_strided_slice %126 {offsets = [0, 7], sizes = [128, 1], strides = [1, 1]} : vector<128x10xi32> to vector<128x1xi32>
    %164 = vector.broadcast %163 : vector<128x1xi32> to vector<128x32xi32>
    %165 = arith.cmpi eq, %164, %6 : vector<128x32xi32>
    %166 = arith.extui %165 : vector<128x32xi1> to vector<128x32xi32>
    %167 = arith.addi %162, %166 : vector<128x32xi32>
    %168 = vector.extract_strided_slice %126 {offsets = [0, 8], sizes = [128, 1], strides = [1, 1]} : vector<128x10xi32> to vector<128x1xi32>
    %169 = vector.broadcast %168 : vector<128x1xi32> to vector<128x32xi32>
    %170 = arith.cmpi eq, %169, %6 : vector<128x32xi32>
    %171 = arith.extui %170 : vector<128x32xi1> to vector<128x32xi32>
    %172 = arith.addi %167, %171 : vector<128x32xi32>
    %173 = vector.extract_strided_slice %126 {offsets = [0, 9], sizes = [128, 1], strides = [1, 1]} : vector<128x10xi32> to vector<128x1xi32>
    %174 = vector.broadcast %173 : vector<128x1xi32> to vector<128x32xi32>
    %175 = arith.cmpi eq, %174, %6 : vector<128x32xi32>
    %176 = arith.extui %175 : vector<128x32xi1> to vector<128x32xi32>
    %177 = arith.addi %172, %176 : vector<128x32xi32>
    %178 = arith.sitofp %177 : vector<128x32xi32> to vector<128x32xf32>
    %179 = arith.truncf %178 : vector<128x32xf32> to vector<128x32xbf16>
    %c2 = arith.constant 2 : index
    %c0_14 = arith.constant 0 : index
    %c0_15 = arith.constant 0 : index
    %180 = vector.load %arg2[%c2, %c0_14, %c0_15] : memref<3x32x16xbf16, #tpu.memory_space<vmem>>, vector<1x32x16xbf16>
    %181 = vector.shape_cast %180 : vector<1x32x16xbf16> to vector<32x16xbf16>
    %cst_16 = arith.constant dense<0.000000e+00> : vector<128x16xf32>
    %182 = tpu.matmul %179, %181, %cst_16 {dimension_numbers = #tpu.dot_dimension_numbers<[1], [0], [0], [1], [0, 0, 1, 1], [], []>} : vector<128x32xbf16>, vector<32x16xbf16>, vector<128x16xf32> -> vector<128x16xf32>
    %183 = arith.addf %3, %182 : vector<128x16xf32>
    %cst_17 = arith.constant 1.000000e-01 : f32
    %184 = vector.broadcast %cst_17 : f32 to vector<128x16xf32>
    %185 = arith.mulf %65, %184 : vector<128x16xf32>
    %cst_18 = arith.constant 0.000000e+00 : f32
    %186 = vector.broadcast %cst_18 : f32 to vector<128x16xf32>
    %187 = arith.maximumf %185, %186 : vector<128x16xf32>
    %c0_19 = arith.constant 0 : index
    %c0_20 = arith.constant 0 : index
    %188 = vector.load %arg3[%c0_19, %c0_20] : memref<128x48xf32, #tpu.memory_space<vmem>>, vector<128x16xf32>
    tpu.vector_store %arg3[%c0_19, %c0_20], %187 {strides = array<i32>} : memref<128x48xf32, #tpu.memory_space<vmem>>, vector<128x16xf32>,
    %cst_21 = arith.constant 1.000000e-01 : f32
    %189 = vector.broadcast %cst_21 : f32 to vector<128x16xf32>
    %190 = arith.mulf %124, %189 : vector<128x16xf32>
    %cst_22 = arith.constant 0.000000e+00 : f32
    %191 = vector.broadcast %cst_22 : f32 to vector<128x16xf32>
    %192 = arith.maximumf %190, %191 : vector<128x16xf32>
    %c0_23 = arith.constant 0 : index
    %c16 = arith.constant 16 : index
    %193 = vector.load %arg3[%c0_23, %c16] : memref<128x48xf32, #tpu.memory_space<vmem>>, vector<128x16xf32>
    tpu.vector_store %arg3[%c0_23, %c16], %192 {strides = array<i32>} : memref<128x48xf32, #tpu.memory_space<vmem>>, vector<128x16xf32>,
    %cst_24 = arith.constant 1.000000e-01 : f32
    %194 = vector.broadcast %cst_24 : f32 to vector<128x16xf32>
    %195 = arith.mulf %183, %194 : vector<128x16xf32>
    %cst_25 = arith.constant 0.000000e+00 : f32
    %196 = vector.broadcast %cst_25 : f32 to vector<128x16xf32>
    %197 = arith.maximumf %195, %196 : vector<128x16xf32>
    %c0_26 = arith.constant 0 : index
    %c32 = arith.constant 32 : index
    %198 = vector.load %arg3[%c0_26, %c32] : memref<128x48xf32, #tpu.memory_space<vmem>>, vector<128x16xf32>
    tpu.vector_store %arg3[%c0_26, %c32], %197 {strides = array<i32>} : memref<128x48xf32, #tpu.memory_space<vmem>>, vector<128x16xf32>,
    return
  }
  func.func @transform_0(%arg0: i32) -> (i32, i32, i32) {
    %c0_i32 = arith.constant 0 : i32
    %c0_i32_0 = arith.constant 0 : i32
    %c0_i32_1 = arith.constant 0 : i32
    return %c0_i32, %arg0, %c0_i32_0 : i32, i32, i32
  }
  func.func @transform_1(%arg0: i32) -> (i32, i32, i32) {
    %c0_i32 = arith.constant 0 : i32
    %c0_i32_0 = arith.constant 0 : i32
    %c0_i32_1 = arith.constant 0 : i32
    %c0_i32_2 = arith.constant 0 : i32
    return %c0_i32, %c0_i32_0, %c0_i32_1 : i32, i32, i32
  }
  func.func @transform_2(%arg0: i32) -> (i32, i32) {
    %c0_i32 = arith.constant 0 : i32
    %c0_i32_0 = arith.constant 0 : i32
    return %arg0, %c0_i32 : i32, i32
  }
}

</mosaic_0001>

<llo_original>
// kernel: dmgcn_forward.1
$region0: #{dmgcn_forward.1}
  #allocation0 [shape = 'u32[]', space=smem, size = 0x4, offset = 0x4, fixed_abs, tag = 'smem constant byte address 0x4 - core index']
  #allocation1 [shape = 'u32[144,128]{1,0:T(1,128)}', space=vmem, size = 0x12000, scoped, tag = 'internal scratch']
  %s0 = inlined_call_operand.vmem [shape: s32[3,128,10], index: 0, kind: input, shape index: {}]
  %s1 = inlined_call_operand.vmem [shape: bf16[3,32,16], index: 1, kind: input, shape index: {}]
  %s2 = inlined_call_operand.vmem [shape: f32[128,48], index: 2, kind: output, shape index: {}]
  %s3 = sld [smem:[#allocation0]]
  $region18: #{dmgcn_forward.1} parent=0
    _
  %s5 = ssub.s32 1, %s3
  %s6 = scalar_select 0, %s5, %s3
  // Predicated region
  $region2: #{dmgcn_forward.1} parent=0 // pred_check
    _
  $region3: #{dmgcn_forward.1} parent=0 // pred_check_branch
    %8 = sbr.rel (0) target = $region5
  $region4: #{dmgcn_forward.1} parent=0 // pred_region
    _
  $region5: #{dmgcn_forward.1} parent=0 // pred_fallthru
    _
  // Predicated region
  $region6: #{dmgcn_forward.1} parent=0 // pred_check
    _
  $region7: #{dmgcn_forward.1} parent=0 // pred_check_branch
    %10 = sbr.rel (0) target = $region9
  $region8: #{dmgcn_forward.1} parent=0 // pred_region
    _
  $region9: #{dmgcn_forward.1} parent=0 // pred_fallthru
    _
  %v12 = vld [vmem:[%s0] sm:$0xff]
  %v13 = vld [vmem:[%s0 + $0x8] sm:$0xff]
  %v14 = vld [vmem:[%s0 + $0x10] sm:$0xff]
  %v15 = vld [vmem:[%s0 + $0x18] sm:$0xff]
  %v16 = vld [vmem:[%s0 + $0x20] sm:$0xff]
  %v17 = vld [vmem:[%s0 + $0x28] sm:$0xff]
  %v18 = vld [vmem:[%s0 + $0x30] sm:$0xff]
  %v19 = vld [vmem:[%s0 + $0x38] sm:$0xff]
  %v20 = vld [vmem:[%s0 + $0x40] sm:$0xff]
  %v21 = vld [vmem:[%s0 + $0x48] sm:$0xff]
  %v22 = vld [vmem:[%s0 + $0x50] sm:$0xff]
  %v23 = vld [vmem:[%s0 + $0x58] sm:$0xff]
  %v24 = vld [vmem:[%s0 + $0x60] sm:$0xff]
  %v25 = vld [vmem:[%s0 + $0x68] sm:$0xff]
  %v26 = vld [vmem:[%s0 + $0x70] sm:$0xff]
  %v27 = vld [vmem:[%s0 + $0x78] sm:$0xff]
  %v28 = vld [vmem:[%s0 + $0x80] sm:$0xff]
  %v29 = vld [vmem:[%s0 + $0x88] sm:$0xff]
  %v30 = vld [vmem:[%s0 + $0x90] sm:$0xff]
  %v31 = vld [vmem:[%s0 + $0x98] sm:$0xff]
  %v32 = vld [vmem:[%s0 + $0xa0] sm:$0xff]
  %v33 = vld [vmem:[%s0 + $0xa8] sm:$0xff]
  %v34 = vld [vmem:[%s0 + $0xb0] sm:$0xff]
  %v35 = vld [vmem:[%s0 + $0xb8] sm:$0xff]
  %v36 = vld [vmem:[%s0 + $0xc0] sm:$0xff]
  %v37 = vld [vmem:[%s0 + $0xc8] sm:$0xff]
  %v38 = vld [vmem:[%s0 + $0xd0] sm:$0xff]
  %v39 = vld [vmem:[%s0 + $0xd8] sm:$0xff]
  %v40 = vld [vmem:[%s0 + $0xe0] sm:$0xff]
  %v41 = vld [vmem:[%s0 + $0xe8] sm:$0xff]
  %v42 = vld [vmem:[%s0 + $0xf0] sm:$0xff]
  %v43 = vld [vmem:[%s0 + $0xf8] sm:$0xff]
  %v44 = vld [vmem:[%s0 + $0x100] sm:$0xff]
  %v45 = vld [vmem:[%s0 + $0x108] sm:$0xff]
  %v46 = vld [vmem:[%s0 + $0x110] sm:$0xff]
  %v47 = vld [vmem:[%s0 + $0x118] sm:$0xff]
  %v48 = vld [vmem:[%s0 + $0x120] sm:$0xff]
  %v49 = vld [vmem:[%s0 + $0x128] sm:$0xff]
  %v50 = vld [vmem:[%s0 + $0x130] sm:$0xff]
  %v51 = vld [vmem:[%s0 + $0x138] sm:$0xff]
  %v52 = vld [vmem:[%s0 + $0x140] sm:$0xff]
  %v53 = vld [vmem:[%s0 + $0x148] sm:$0xff]
  %v54 = vld [vmem:[%s0 + $0x150] sm:$0xff]
  %v55 = vld [vmem:[%s0 + $0x158] sm:$0xff]
  %v56 = vld [vmem:[%s0 + $0x160] sm:$0xff]
  %v57 = vld [vmem:[%s0 + $0x168] sm:$0xff]
  %v58 = vld [vmem:[%s0 + $0x170] sm:$0xff]
  %v59 = vld [vmem:[%s0 + $0x178] sm:$0xff]
  %v60 = vlaneseq
  %v61 = vand.u32 %v60, 127
  %62 = vset.pattern.permute.xlu0 0
  %63 = vperm.xlu0 %62, %v12
  %v64 = vpop.permute.xlu0 %63
  %65 = vset.pattern.permute.xlu0 0
  %66 = vperm.xlu0 %65, %v13
  %v67 = vpop.permute.xlu0 %66
  %68 = vset.pattern.permute.xlu0 0
  %69 = vperm.xlu0 %68, %v14
  %v70 = vpop.permute.xlu0 %69
  %71 = vset.pattern.permute.xlu0 0
  %72 = vperm.xlu0 %71, %v15
  %v73 = vpop.permute.xlu0 %72
  %74 = vset.pattern.permute.xlu0 0
  %75 = vperm.xlu0 %74, %v16
  %v76 = vpop.permute.xlu0 %75
  %77 = vset.pattern.permute.xlu0 0
  %78 = vperm.xlu0 %77, %v17
  %v79 = vpop.permute.xlu0 %78
  %80 = vset.pattern.permute.xlu0 0
  %81 = vperm.xlu0 %80, %v18
  %v82 = vpop.permute.xlu0 %81
  %83 = vset.pattern.permute.xlu0 0
  %84 = vperm.xlu0 %83, %v19
  %v85 = vpop.permute.xlu0 %84
  %86 = vset.pattern.permute.xlu0 0
  %87 = vperm.xlu0 %86, %v20
  %v88 = vpop.permute.xlu0 %87
  %89 = vset.pattern.permute.xlu0 0
  %90 = vperm.xlu0 %89, %v21
  %v91 = vpop.permute.xlu0 %90
  %92 = vset.pattern.permute.xlu0 0
  %93 = vperm.xlu0 %92, %v22
  %v94 = vpop.permute.xlu0 %93
  %95 = vset.pattern.permute.xlu0 0
  %96 = vperm.xlu0 %95, %v23
  %v97 = vpop.permute.xlu0 %96
  %98 = vset.pattern.permute.xlu0 0
  %99 = vperm.xlu0 %98, %v24
  %v100 = vpop.permute.xlu0 %99
  %101 = vset.pattern.permute.xlu0 0
  %102 = vperm.xlu0 %101, %v25
  %v103 = vpop.permute.xlu0 %102
  %104 = vset.pattern.permute.xlu0 0
  %105 = vperm.xlu0 %104, %v26
  %v106 = vpop.permute.xlu0 %105
  %107 = vset.pattern.permute.xlu0 0
  %108 = vperm.xlu0 %107, %v27
  %v109 = vpop.permute.xlu0 %108
  %vm110 = vcmp.eq.s32.totalorder %v64, %v61
  %vm111 = vcmp.eq.s32.totalorder %v67, %v61
  %vm112 = vcmp.eq.s32.totalorder %v70, %v61
  %vm113 = vcmp.eq.s32.totalorder %v73, %v61
  %vm114 = vcmp.eq.s32.totalorder %v76, %v61
  %vm115 = vcmp.eq.s32.totalorder %v79, %v61
  %vm116 = vcmp.eq.s32.totalorder %v82, %v61
  %vm117 = vcmp.eq.s32.totalorder %v85, %v61
  %vm118 = vcmp.eq.s32.totalorder %v88, %v61
  %vm119 = vcmp.eq.s32.totalorder %v91, %v61
  %vm120 = vcmp.eq.s32.totalorder %v94, %v61
  %vm121 = vcmp.eq.s32.totalorder %v97, %v61
  %vm122 = vcmp.eq.s32.totalorder %v100, %v61
  %vm123 = vcmp.eq.s32.totalorder %v103, %v61
  %vm124 = vcmp.eq.s32.totalorder %v106, %v61
  %vm125 = vcmp.eq.s32.totalorder %v109, %v61
  %v126 = vsel %vm110, 1, 0
  %v127 = vsel %vm111, 1, 0
  %v128 = vsel %vm112, 1, 0
  %v129 = vsel %vm113, 1, 0
  %v130 = vsel %vm114, 1, 0
  %v131 = vsel %vm115, 1, 0
  %v132 = vsel %vm116, 1, 0
  %v133 = vsel %vm117, 1, 0
  %v134 = vsel %vm118, 1, 0
  %v135 = vsel %vm119, 1, 0
  %v136 = vsel %vm120, 1, 0
  %v137 = vsel %vm121, 1, 0
  %v138 = vsel %vm122, 1, 0
  %v139 = vsel %vm123, 1, 0
  %v140 = vsel %vm124, 1, 0
  %v141 = vsel %vm125, 1, 0
  %142 = vset.pattern.permute.xlu0 1
  %143 = vperm.xlu0 %142, %v12
  %v144 = vpop.permute.xlu0 %143
  %145 = vset.pattern.permute.xlu0 1
  %146 = vperm.xlu0 %145, %v13
  %v147 = vpop.permute.xlu0 %146
  %148 = vset.pattern.permute.xlu0 1
  %149 = vperm.xlu0 %148, %v14
  %v150 = vpop.permute.xlu0 %149
  %151 = vset.pattern.permute.xlu0 1
  %152 = vperm.xlu0 %151, %v15
  %v153 = vpop.permute.xlu0 %152
  %154 = vset.pattern.permute.xlu0 1
  %155 = vperm.xlu0 %154, %v16
  %v156 = vpop.permute.xlu0 %155
  %157 = vset.pattern.permute.xlu0 1
  %158 = vperm.xlu0 %157, %v17
  %v159 = vpop.permute.xlu0 %158
  %160 = vset.pattern.permute.xlu0 1
  %161 = vperm.xlu0 %160, %v18
  %v162 = vpop.permute.xlu0 %161
  %163 = vset.pattern.permute.xlu0 1
  %164 = vperm.xlu0 %163, %v19
  %v165 = vpop.permute.xlu0 %164
  %166 = vset.pattern.permute.xlu0 1
  %167 = vperm.xlu0 %166, %v20
  %v168 = vpop.permute.xlu0 %167
  %169 = vset.pattern.permute.xlu0 1
  %170 = vperm.xlu0 %169, %v21
  %v171 = vpop.permute.xlu0 %170
  %172 = vset.pattern.permute.xlu0 1
  %173 = vperm.xlu0 %172, %v22
  %v174 = vpop.permute.xlu0 %173
  %175 = vset.pattern.permute.xlu0 1
  %176 = vperm.xlu0 %175, %v23
  %v177 = vpop.permute.xlu0 %176
  %178 = vset.pattern.permute.xlu0 1
  %179 = vperm.xlu0 %178, %v24
  %v180 = vpop.permute.xlu0 %179
  %181 = vset.pattern.permute.xlu0 1
  %182 = vperm.xlu0 %181, %v25
  %v183 = vpop.permute.xlu0 %182
  %184 = vset.pattern.permute.xlu0 1
  %185 = vperm.xlu0 %184, %v26
  %v186 = vpop.permute.xlu0 %185
  %187 = vset.pattern.permute.xlu0 1
  %188 = vperm.xlu0 %187, %v27
  %v189 = vpop.permute.xlu0 %188
  %vm190 = vcmp.eq.s32.totalorder %v144, %v61
  %vm191 = vcmp.eq.s32.totalorder %v147, %v61
  %vm192 = vcmp.eq.s32.totalorder %v150, %v61
  %vm193 = vcmp.eq.s32.totalorder %v153, %v61
  %vm194 = vcmp.eq.s32.totalorder %v156, %v61
  %vm195 = vcmp.eq.s32.totalorder %v159, %v61
  %vm196 = vcmp.eq.s32.totalorder %v162, %v61
  %vm197 = vcmp.eq.s32.totalorder %v165, %v61
  %vm198 = vcmp.eq.s32.totalorder %v168, %v61
  %vm199 = vcmp.eq.s32.totalorder %v171, %v61
  %vm200 = vcmp.eq.s32.totalorder %v174, %v61
  %vm201 = vcmp.eq.s32.totalorder %v177, %v61
  %vm202 = vcmp.eq.s32.totalorder %v180, %v61
  %vm203 = vcmp.eq.s32.totalorder %v183, %v61
  %vm204 = vcmp.eq.s32.totalorder %v186, %v61
  %vm205 = vcmp.eq.s32.totalorder %v189, %v61
  %v206 = vsel %vm190, 1, 0
  %v207 = vsel %vm191, 1, 0
  %v208 = vsel %vm192, 1, 0
  %v209 = vsel %vm193, 1, 0
  %v210 = vsel %vm194, 1, 0
  %v211 = vsel %vm195, 1, 0
  %v212 = vsel %vm196, 1, 0
  %v213 = vsel %vm197, 1, 0
  %v214 = vsel %vm198, 1, 0
  %v215 = vsel %vm199, 1, 0
  %v216 = vsel %vm200, 1, 0
  %v217 = vsel %vm201, 1, 0
  %v218 = vsel %vm202, 1, 0
  %v219 = vsel %vm203, 1, 0
  %v220 = vsel %vm204, 1, 0
  %v221 = vsel %vm205, 1, 0
  %v222 = vadd.s32 %v126, %v206
  %v223 = vadd.s32 %v127, %v207
  %v224 = vadd.s32 %v128, %v208
  %v225 = vadd.s32 %v129, %v209
  %v226 = vadd.s32 %v130, %v210
  %v227 = vadd.s32 %v131, %v211
  %v228 = vadd.s32 %v132, %v212
  %v229 = vadd.s32 %v133, %v213
  %v230 = vadd.s32 %v134, %v214
  %v231 = vadd.s32 %v135, %v215
  %v232 = vadd.s32 %v136, %v216
  %v233 = vadd.s32 %v137, %v217
  %v234 = vadd.s32 %v138, %v218
  %v235 = vadd.s32 %v139, %v219
  %v236 = vadd.s32 %v140, %v220
  %v237 = vadd.s32 %v141, %v221
  %238 = vset.pattern.permute.xlu0 2
  %239 = vperm.xlu0 %238, %v12
  %v240 = vpop.permute.xlu0 %239
  %241 = vset.pattern.permute.xlu0 2
  %242 = vperm.xlu0 %241, %v13
  %v243 = vpop.permute.xlu0 %242
  %244 = vset.pattern.permute.xlu0 2
  %245 = vperm.xlu0 %244, %v14
  %v246 = vpop.permute.xlu0 %245
  %247 = vset.pattern.permute.xlu0 2
  %248 = vperm.xlu0 %247, %v15
  %v249 = vpop.permute.xlu0 %248
  %250 = vset.pattern.permute.xlu0 2
  %251 = vperm.xlu0 %250, %v16
  %v252 = vpop.permute.xlu0 %251
  %253 = vset.pattern.permute.xlu0 2
  %254 = vperm.xlu0 %253, %v17
  %v255 = vpop.permute.xlu0 %254
  %256 = vset.pattern.permute.xlu0 2
  %257 = vperm.xlu0 %256, %v18
  %v258 = vpop.permute.xlu0 %257
  %259 = vset.pattern.permute.xlu0 2
  %260 = vperm.xlu0 %259, %v19
  %v261 = vpop.permute.xlu0 %260
  %262 = vset.pattern.permute.xlu0 2
  %263 = vperm.xlu0 %262, %v20
  %v264 = vpop.permute.xlu0 %263
  %265 = vset.pattern.permute.xlu0 2
  %266 = vperm.xlu0 %265, %v21
  %v267 = vpop.permute.xlu0 %266
  %268 = vset.pattern.permute.xlu0 2
  %269 = vperm.xlu0 %268, %v22
  %v270 = vpop.permute.xlu0 %269
  %271 = vset.pattern.permute.xlu0 2
  %272 = vperm.xlu0 %271, %v23
  %v273 = vpop.permute.xlu0 %272
  %274 = vset.pattern.permute.xlu0 2
  %275 = vperm.xlu0 %274, %v24
  %v276 = vpop.permute.xlu0 %275
  %277 = vset.pattern.permute.xlu0 2
  %278 = vperm.xlu0 %277, %v25
  %v279 = vpop.permute.xlu0 %278
  %280 = vset.pattern.permute.xlu0 2
  %281 = vperm.xlu0 %280, %v26
  %v282 = vpop.permute.xlu0 %281
  %283 = vset.pattern.permute.xlu0 2
  %284 = vperm.xlu0 %283, %v27
  %v285 = vpop.permute.xlu0 %284
  %vm286 = vcmp.eq.s32.totalorder %v240, %v61
  %vm287 = vcmp.eq.s32.totalorder %v243, %v61
  %vm288 = vcmp.eq.s32.totalorder %v246, %v61
  %vm289 = vcmp.eq.s32.totalorder %v249, %v61
  %vm290 = vcmp.eq.s32.totalorder %v252, %v61
  %vm291 = vcmp.eq.s32.totalorder %v255, %v61
  %vm292 = vcmp.eq.s32.totalorder %v258, %v61
  %vm293 = vcmp.eq.s32.totalorder %v261, %v61
  %vm294 = vcmp.eq.s32.totalorder %v264, %v61
  %vm295 = vcmp.eq.s32.totalorder %v267, %v61
  %vm296 = vcmp.eq.s32.totalorder %v270, %v61
  %vm297 = vcmp.eq.s32.totalorder %v273, %v61
  %vm298 = vcmp.eq.s32.totalorder %v276, %v61
  %vm299 = vcmp.eq.s32.totalorder %v279, %v61
  %vm300 = vcmp.eq.s32.totalorder %v282, %v61
  %vm301 = vcmp.eq.s32.totalorder %v285, %v61
  %v302 = vsel %vm286, 1, 0
  %v303 = vsel %vm287, 1, 0
  %v304 = vsel %vm288, 1, 0
  %v305 = vsel %vm289, 1, 0
  %v306 = vsel %vm290, 1, 0
  %v307 = vsel %vm291, 1, 0
  %v308 = vsel %vm292, 1, 0
  %v309 = vsel %vm293, 1, 0
  %v310 = vsel %vm294, 1, 0
  %v311 = vsel %vm295, 1, 0
  %v312 = vsel %vm296, 1, 0
  %v313 = vsel %vm297, 1, 0
  %v314 = vsel %vm298, 1, 0
  %v315 = vsel %vm299, 1, 0
  %v316 = vsel %vm300, 1, 0
  %v317 = vsel %vm301, 1, 0
  %v318 = vadd.s32 %v222, %v302
  %v319 = vadd.s32 %v223, %v303
  %v320 = vadd.s32 %v224, %v304
  %v321 = vadd.s32 %v225, %v305
  %v322 = vadd.s32 %v226, %v306
  %v323 = vadd.s32 %v227, %v307
  %v324 = vadd.s32 %v228, %v308
  %v325 = vadd.s32 %v229, %v309
  %v326 = vadd.s32 %v230, %v310
  %v327 = vadd.s32 %v231, %v311
  %v328 = vadd.s32 %v232, %v312
  %v329 = vadd.s32 %v233, %v313
  %v330 = vadd.s32 %v234, %v314
  %v331 = vadd.s32 %v235, %v315
  %v332 = vadd.s32 %v236, %v316
  %v333 = vadd.s32 %v237, %v317
  %334 = vset.pattern.permute.xlu0 3
  %335 = vperm.xlu0 %334, %v12
  %v336 = vpop.permute.xlu0 %335
  %337 = vset.pattern.permute.xlu0 3
  %338 = vperm.xlu0 %337, %v13
  %v339 = vpop.permute.xlu0 %338
  %340 = vset.pattern.permute.xlu0 3
  %341 = vperm.xlu0 %340, %v14
  %v342 = vpop.permute.xlu0 %341
  %343 = vset.pattern.permute.xlu0 3
  %344 = vperm.xlu0 %343, %v15
  %v345 = vpop.permute.xlu0 %344
  %346 = vset.pattern.permute.xlu0 3
  %347 = vperm.xlu0 %346, %v16
  %v348 = vpop.permute.xlu0 %347
  %349 = vset.pattern.permute.xlu0 3
  %350 = vperm.xlu0 %349, %v17
  %v351 = vpop.permute.xlu0 %350
  %352 = vset.pattern.permute.xlu0 3
  %353 = vperm.xlu0 %352, %v18
  %v354 = vpop.permute.xlu0 %353
  %355 = vset.pattern.permute.xlu0 3
  %356 = vperm.xlu0 %355, %v19
  %v357 = vpop.permute.xlu0 %356
  %358 = vset.pattern.permute.xlu0 3
  %359 = vperm.xlu0 %358, %v20
  %v360 = vpop.permute.xlu0 %359
  %361 = vset.pattern.permute.xlu0 3
  %362 = vperm.xlu0 %361, %v21
  %v363 = vpop.permute.xlu0 %362
  %364 = vset.pattern.permute.xlu0 3
  %365 = vperm.xlu0 %364, %v22
  %v366 = vpop.permute.xlu0 %365
  %367 = vset.pattern.permute.xlu0 3
  %368 = vperm.xlu0 %367, %v23
  %v369 = vpop.permute.xlu0 %368
  %370 = vset.pattern.permute.xlu0 3
  %371 = vperm.xlu0 %370, %v24
  %v372 = vpop.permute.xlu0 %371
  %373 = vset.pattern.permute.xlu0 3
  %374 = vperm.xlu0 %373, %v25
  %v375 = vpop.permute.xlu0 %374
  %376 = vset.pattern.permute.xlu0 3
  %377 = vperm.xlu0 %376, %v26
  %v378 = vpop.permute.xlu0 %377
  %379 = vset.pattern.permute.xlu0 3
  %380 = vperm.xlu0 %379, %v27
  %v381 = vpop.permute.xlu0 %380
  %vm382 = vcmp.eq.s32.totalorder %v336, %v61
  %vm383 = vcmp.eq.s32.totalorder %v339, %v61
  %vm384 = vcmp.eq.s32.totalorder %v342, %v61
  %vm385 = vcmp.eq.s32.totalorder %v345, %v61
  %vm386 = vcmp.eq.s32.totalorder %v348, %v61
  %vm387 = vcmp.eq.s32.totalorder %v351, %v61
  %vm388 = vcmp.eq.s32.totalorder %v354, %v61
  %vm389 = vcmp.eq.s32.totalorder %v357, %v61
  %vm390 = vcmp.eq.s32.totalorder %v360, %v61
  %vm391 = vcmp.eq.s32.totalorder %v363, %v61
  %vm392 = vcmp.eq.s32.totalorder %v366, %v61
  %vm393 = vcmp.eq.s32.totalorder %v369, %v61
  %vm394 = vcmp.eq.s32.totalorder %v372, %v61
  %vm395 = vcmp.eq.s32.totalorder %v375, %v61
  %vm396 = vcmp.eq.s32.totalorder %v378, %v61
  %vm397 = vcmp.eq.s32.totalorder %v381, %v61
  %v398 = vsel %vm382, 1, 0
  %v399 = vsel %vm383, 1, 0
  %v400 = vsel %vm384, 1, 0
  %v401 = vsel %vm385, 1, 0
  %v402 = vsel %vm386, 1, 0
  %v403 = vsel %vm387, 1, 0
  %v404 = vsel %vm388, 1, 0
  %v405 = vsel %vm389, 1, 0
  %v406 = vsel %vm390, 1, 0
  %v407 = vsel %vm391, 1, 0
  %v408 = vsel %vm392, 1, 0
  %v409 = vsel %vm393, 1, 0
  %v410 = vsel %vm394, 1, 0
  %v411 = vsel %vm395, 1, 0
  %v412 = vsel %vm396, 1, 0
  %v413 = vsel %vm397, 1, 0
  %v414 = vadd.s32 %v318, %v398
  %v415 = vadd.s32 %v319, %v399
  %v416 = vadd.s32 %v320, %v400
  %v417 = vadd.s32 %v321, %v401
  %v418 = vadd.s32 %v322, %v402
  %v419 = vadd.s32 %v323, %v403
  %v420 = vadd.s32 %v324, %v404
  %v421 = vadd.s32 %v325, %v405
  %v422 = vadd.s32 %v326, %v406
  %v423 = vadd.s32 %v327, %v407
  %v424 = vadd.s32 %v328, %v408
  %v425 = vadd.s32 %v329, %v409
  %v426 = vadd.s32 %v330, %v410
  %v427 = vadd.s32 %v331, %v411
  %v428 = vadd.s32 %v332, %v412
  %v429 = vadd.s32 %v333, %v413
  %430 = vset.pattern.permute.xlu0 4
  %431 = vperm.xlu0 %430, %v12
  %v432 = vpop.permute.xlu0 %431
  %433 = vset.pattern.permute.xlu0 4
  %434 = vperm.xlu0 %433, %v13
  %v435 = vpop.permute.xlu0 %434
  %436 = vset.pattern.permute.xlu0 4
  %437 = vperm.xlu0 %436, %v14
  %v438 = vpop.permute.xlu0 %437
  %439 = vset.pattern.permute.xlu0 4
  %440 = vperm.xlu0 %439, %v15
  %v441 = vpop.permute.xlu0 %440
  %442 = vset.pattern.permute.xlu0 4
  %443 = vperm.xlu0 %442, %v16
  %v444 = vpop.permute.xlu0 %443
  %445 = vset.pattern.permute.xlu0 4
  %446 = vperm.xlu0 %445, %v17
  %v447 = vpop.permute.xlu0 %446
  %448 = vset.pattern.permute.xlu0 4
  %449 = vperm.xlu0 %448, %v18
  %v450 = vpop.permute.xlu0 %449
  %451 = vset.pattern.permute.xlu0 4
  %452 = vperm.xlu0 %451, %v19
  %v453 = vpop.permute.xlu0 %452
  %454 = vset.pattern.permute.xlu0 4
  %455 = vperm.xlu0 %454, %v20
  %v456 = vpop.permute.xlu0 %455
  %457 = vset.pattern.permute.xlu0 4
  %458 = vperm.xlu0 %457, %v21
  %v459 = vpop.permute.xlu0 %458
  %460 = vset.pattern.permute.xlu0 4
  %461 = vperm.xlu0 %460, %v22
  %v462 = vpop.permute.xlu0 %461
  %463 = vset.pattern.permute.xlu0 4
  %464 = vperm.xlu0 %463, %v23
  %v465 = vpop.permute.xlu0 %464
  %466 = vset.pattern.permute.xlu0 4
  %467 = vperm.xlu0 %466, %v24
  %v468 = vpop.permute.xlu0 %467
  %469 = vset.pattern.permute.xlu0 4
  %470 = vperm.xlu0 %469, %v25
  %v471 = vpop.permute.xlu0 %470
  %472 = vset.pattern.permute.xlu0 4
  %473 = vperm.xlu0 %472, %v26
  %v474 = vpop.permute.xlu0 %473
  %475 = vset.pattern.permute.xlu0 4
  %476 = vperm.xlu0 %475, %v27
  %v477 = vpop.permute.xlu0 %476
  %vm478 = vcmp.eq.s32.totalorder %v432, %v61
  %vm479 = vcmp.eq.s32.totalorder %v435, %v61
  %vm480 = vcmp.eq.s32.totalorder %v438, %v61
  %vm481 = vcmp.eq.s32.totalorder %v441, %v61
  %vm482 = vcmp.eq.s32.totalorder %v444, %v61
  %vm483 = vcmp.eq.s32.totalorder %v447, %v61
  %vm484 = vcmp.eq.s32.totalorder %v450, %v61
  %vm485 = vcmp.eq.s32.totalorder %v453, %v61
  %vm486 = vcmp.eq.s32.totalorder %v456, %v61
  %vm487 = vcmp.eq.s32.totalorder %v459, %v61
  %vm488 = vcmp.eq.s32.totalorder %v462, %v61
  %vm489 = vcmp.eq.s32.totalorder %v465, %v61
  %vm490 = vcmp.eq.s32.totalorder %v468, %v61
  %vm491 = vcmp.eq.s32.totalorder %v471, %v61
  %vm492 = vcmp.eq.s32.totalorder %v474, %v61
  %vm493 = vcmp.eq.s32.totalorder %v477, %v61
  %v494 = vsel %vm478, 1, 0
  %v495 = vsel %vm479, 1, 0
  %v496 = vsel %vm480, 1, 0
  %v497 = vsel %vm481, 1, 0
  %v498 = vsel %vm482, 1, 0
  %v499 = vsel %vm483, 1, 0
  %v500 = vsel %vm484, 1, 0
  %v501 = vsel %vm485, 1, 0
  %v502 = vsel %vm486, 1, 0
  %v503 = vsel %vm487, 1, 0
  %v504 = vsel %vm488, 1, 0
  %v505 = vsel %vm489, 1, 0
  %v506 = vsel %vm490, 1, 0
  %v507 = vsel %vm491, 1, 0
  %v508 = vsel %vm492, 1, 0
  %v509 = vsel %vm493, 1, 0
  %v510 = vadd.s32 %v414, %v494
  %v511 = vadd.s32 %v415, %v495
  %v512 = vadd.s32 %v416, %v496
  %v513 = vadd.s32 %v417, %v497
  %v514 = vadd.s32 %v418, %v498
  %v515 = vadd.s32 %v419, %v499
  %v516 = vadd.s32 %v420, %v500
  %v517 = vadd.s32 %v421, %v501
  %v518 = vadd.s32 %v422, %v502
  %v519 = vadd.s32 %v423, %v503
  %v520 = vadd.s32 %v424, %v504
  %v521 = vadd.s32 %v425, %v505
  %v522 = vadd.s32 %v426, %v506
  %v523 = vadd.s32 %v427, %v507
  %v524 = vadd.s32 %v428, %v508
  %v525 = vadd.s32 %v429, %v509
  %526 = vset.pattern.permute.xlu0 5
  %527 = vperm.xlu0 %526, %v12
  %v528 = vpop.permute.xlu0 %527
  %529 = vset.pattern.permute.xlu0 5
  %530 = vperm.xlu0 %529, %v13
  %v531 = vpop.permute.xlu0 %530
  %532 = vset.pattern.permute.xlu0 5
  %533 = vperm.xlu0 %532, %v14
  %v534 = vpop.permute.xlu0 %533
  %535 = vset.pattern.permute.xlu0 5
  %536 = vperm.xlu0 %535, %v15
  %v537 = vpop.permute.xlu0 %536
  %538 = vset.pattern.permute.xlu0 5
  %539 = vperm.xlu0 %538, %v16
  %v540 = vpop.permute.xlu0 %539
  %541 = vset.pattern.permute.xlu0 5
  %542 = vperm.xlu0 %541, %v17
  %v543 = vpop.permute.xlu0 %542
  %544 = vset.pattern.permute.xlu0 5
  %545 = vperm.xlu0 %544, %v18
  %v546 = vpop.permute.xlu0 %545
  %547 = vset.pattern.permute.xlu0 5
  %548 = vperm.xlu0 %547, %v19
  %v549 = vpop.permute.xlu0 %548
  %550 = vset.pattern.permute.xlu0 5
  %551 = vperm.xlu0 %550, %v20
  %v552 = vpop.permute.xlu0 %551
  %553 = vset.pattern.permute.xlu0 5
  %554 = vperm.xlu0 %553, %v21
  %v555 = vpop.permute.xlu0 %554
  %556 = vset.pattern.permute.xlu0 5
  %557 = vperm.xlu0 %556, %v22
  %v558 = vpop.permute.xlu0 %557
  %559 = vset.pattern.permute.xlu0 5
  %560 = vperm.xlu0 %559, %v23
  %v561 = vpop.permute.xlu0 %560
  %562 = vset.pattern.permute.xlu0 5
  %563 = vperm.xlu0 %562, %v24
  %v564 = vpop.permute.xlu0 %563
  %565 = vset.pattern.permute.xlu0 5
  %566 = vperm.xlu0 %565, %v25
  %v567 = vpop.permute.xlu0 %566
  %568 = vset.pattern.permute.xlu0 5
  %569 = vperm.xlu0 %568, %v26
  %v570 = vpop.permute.xlu0 %569
  %571 = vset.pattern.permute.xlu0 5
  %572 = vperm.xlu0 %571, %v27
  %v573 = vpop.permute.xlu0 %572
  %vm574 = vcmp.eq.s32.totalorder %v528, %v61
  %vm575 = vcmp.eq.s32.totalorder %v531, %v61
  %vm576 = vcmp.eq.s32.totalorder %v534, %v61
  %vm577 = vcmp.eq.s32.totalorder %v537, %v61
  %vm578 = vcmp.eq.s32.totalorder %v540, %v61
  %vm579 = vcmp.eq.s32.totalorder %v543, %v61
  %vm580 = vcmp.eq.s32.totalorder %v546, %v61
  %vm581 = vcmp.eq.s32.totalorder %v549, %v61
  %vm582 = vcmp.eq.s32.totalorder %v552, %v61
  %vm583 = vcmp.eq.s32.totalorder %v555, %v61
  %vm584 = vcmp.eq.s32.totalorder %v558, %v61
  %vm585 = vcmp.eq.s32.totalorder %v561, %v61
  %vm586 = vcmp.eq.s32.totalorder %v564, %v61
  %vm587 = vcmp.eq.s32.totalorder %v567, %v61
  %vm588 = vcmp.eq.s32.totalorder %v570, %v61
  %vm589 = vcmp.eq.s32.totalorder %v573, %v61
  %v590 = vsel %vm574, 1, 0
  %v591 = vsel %vm575, 1, 0
  %v592 = vsel %vm576, 1, 0
  %v593 = vsel %vm577, 1, 0
  %v594 = vsel %vm578, 1, 0
  %v595 = vsel %vm579, 1, 0
  %v596 = vsel %vm580, 1, 0
  %v597 = vsel %vm581, 1, 0
  %v598 = vsel %vm582, 1, 0
  %v599 = vsel %vm583, 1, 0
  %v600 = vsel %vm584, 1, 0
  %v601 = vsel %vm585, 1, 0
  %v602 = vsel %vm586, 1, 0
  %v603 = vsel %vm587, 1, 0
  %v604 = vsel %vm588, 1, 0
  %v605 = vsel %vm589, 1, 0
  %v606 = vadd.s32 %v510, %v590
  %v607 = vadd.s32 %v511, %v591
  %v608 = vadd.s32 %v512, %v592
  %v609 = vadd.s32 %v513, %v593
  %v610 = vadd.s32 %v514, %v594
  %v611 = vadd.s32 %v515, %v595
  %v612 = vadd.s32 %v516, %v596
  %v613 = vadd.s32 %v517, %v597
  %v614 = vadd.s32 %v518, %v598
  %v615 = vadd.s32 %v519, %v599
  %v616 = vadd.s32 %v520, %v600
  %v617 = vadd.s32 %v521, %v601
  %v618 = vadd.s32 %v522, %v602
  %v619 = vadd.s32 %v523, %v603
  %v620 = vadd.s32 %v524, %v604
  %v621 = vadd.s32 %v525, %v605
  %622 = vset.pattern.permute.xlu0 6
  %623 = vperm.xlu0 %622, %v12
  %v624 = vpop.permute.xlu0 %623
  %625 = vset.pattern.permute.xlu0 6
  %626 = vperm.xlu0 %625, %v13
  %v627 = vpop.permute.xlu0 %626
  %628 = vset.pattern.permute.xlu0 6
  %629 = vperm.xlu0 %628, %v14
  %v630 = vpop.permute.xlu0 %629
  %631 = vset.pattern.permute.xlu0 6
  %632 = vperm.xlu0 %631, %v15
  %v633 = vpop.permute.xlu0 %632
  %634 = vset.pattern.permute.xlu0 6
  %635 = vperm.xlu0 %634, %v16
  %v636 = vpop.permute.xlu0 %635
  %637 = vset.pattern.permute.xlu0 6
  %638 = vperm.xlu0 %637, %v17
  %v639 = vpop.permute.xlu0 %638
  %640 = vset.pattern.permute.xlu0 6
  %641 = vperm.xlu0 %640, %v18
  %v642 = vpop.permute.xlu0 %641
  %643 = vset.pattern.permute.xlu0 6
  %644 = vperm.xlu0 %643, %v19
  %v645 = vpop.permute.xlu0 %644
  %646 = vset.pattern.permute.xlu0 6
  %647 = vperm.xlu0 %646, %v20
  %v648 = vpop.permute.xlu0 %647
  %649 = vset.pattern.permute.xlu0 6
  %650 = vperm.xlu0 %649, %v21
  %v651 = vpop.permute.xlu0 %650
  %652 = vset.pattern.permute.xlu0 6
  %653 = vperm.xlu0 %652, %v22
  %v654 = vpop.permute.xlu0 %653
  %655 = vset.pattern.permute.xlu0 6
  %656 = vperm.xlu0 %655, %v23
  %v657 = vpop.permute.xlu0 %656
  %658 = vset.pattern.permute.xlu0 6
  %659 = vperm.xlu0 %658, %v24
  %v660 = vpop.permute.xlu0 %659
  %661 = vset.pattern.permute.xlu0 6
  %662 = vperm.xlu0 %661, %v25
  %v663 = vpop.permute.xlu0 %662
  %664 = vset.pattern.permute.xlu0 6
  %665 = vperm.xlu0 %664, %v26
  %v666 = vpop.permute.xlu0 %665
  %667 = vset.pattern.permute.xlu0 6
  %668 = vperm.xlu0 %667, %v27
  %v669 = vpop.permute.xlu0 %668
  %vm670 = vcmp.eq.s32.totalorder %v624, %v61
  %vm671 = vcmp.eq.s32.totalorder %v627, %v61
  %vm672 = vcmp.eq.s32.totalorder %v630, %v61
  %vm673 = vcmp.eq.s32.totalorder %v633, %v61
  %vm674 = vcmp.eq.s32.totalorder %v636, %v61
  %vm675 = vcmp.eq.s32.totalorder %v639, %v61
  %vm676 = vcmp.eq.s32.totalorder %v642, %v61
  %vm677 = vcmp.eq.s32.totalorder %v645, %v61
  %vm678 = vcmp.eq.s32.totalorder %v648, %v61
  %vm679 = vcmp.eq.s32.totalorder %v651, %v61
  %vm680 = vcmp.eq.s32.totalorder %v654, %v61
  %vm681 = vcmp.eq.s32.totalorder %v657, %v61
  %vm682 = vcmp.eq.s32.totalorder %v660, %v61
  %vm683 = vcmp.eq.s32.totalorder %v663, %v61
  %vm684 = vcmp.eq.s32.totalorder %v666, %v61
  %vm685 = vcmp.eq.s32.totalorder %v669, %v61
  %v686 = vsel %vm670, 1, 0
  %v687 = vsel %vm671, 1, 0
  %v688 = vsel %vm672, 1, 0
  %v689 = vsel %vm673, 1, 0
  %v690 = vsel %vm674, 1, 0
  %v691 = vsel %vm675, 1, 0
  %v692 = vsel %vm676, 1, 0
  %v693 = vsel %vm677, 1, 0
  %v694 = vsel %vm678, 1, 0
  %v695 = vsel %vm679, 1, 0
  %v696 = vsel %vm680, 1, 0
  %v697 = vsel %vm681, 1, 0
  %v698 = vsel %vm682, 1, 0
  %v699 = vsel %vm683, 1, 0
  %v700 = vsel %vm684, 1, 0
  %v701 = vsel %vm685, 1, 0
  %v702 = vadd.s32 %v606, %v686
  %v703 = vadd.s32 %v607, %v687
  %v704 = vadd.s32 %v608, %v688
  %v705 = vadd.s32 %v609, %v689
  %v706 = vadd.s32 %v610, %v690
  %v707 = vadd.s32 %v611, %v691
  %v708 = vadd.s32 %v612, %v692
  %v709 = vadd.s32 %v613, %v693
  %v710 = vadd.s32 %v614, %v694
  %v711 = vadd.s32 %v615, %v695
  %v712 = vadd.s32 %v616, %v696
  %v713 = vadd.s32 %v617, %v697
  %v714 = vadd.s32 %v618, %v698
  %v715 = vadd.s32 %v619, %v699
  %v716 = vadd.s32 %v620, %v700
  %v717 = vadd.s32 %v621, %v701
  %718 = vset.pattern.permute.xlu0 7
  %719 = vperm.xlu0 %718, %v12
  %v720 = vpop.permute.xlu0 %719
  %721 = vset.pattern.permute.xlu0 7
  %722 = vperm.xlu0 %721, %v13
  %v723 = vpop.permute.xlu0 %722
  %724 = vset.pattern.permute.xlu0 7
  %725 = vperm.xlu0 %724, %v14
  %v726 = vpop.permute.xlu0 %725
  %727 = vset.pattern.permute.xlu0 7
  %728 = vperm.xlu0 %727, %v15
  %v729 = vpop.permute.xlu0 %728
  %730 = vset.pattern.permute.xlu0 7
  %731 = vperm.xlu0 %730, %v16
  %v732 = vpop.permute.xlu0 %731
  %733 = vset.pattern.permute.xlu0 7
  %734 = vperm.xlu0 %733, %v17
  %v735 = vpop.permute.xlu0 %734
  %736 = vset.pattern.permute.xlu0 7
  %737 = vperm.xlu0 %736, %v18
  %v738 = vpop.permute.xlu0 %737
  %739 = vset.pattern.permute.xlu0 7
  %740 = vperm.xlu0 %739, %v19
  %v741 = vpop.permute.xlu0 %740
  %742 = vset.pattern.permute.xlu0 7
  %743 = vperm.xlu0 %742, %v20
  %v744 = vpop.permute.xlu0 %743
  %745 = vset.pattern.permute.xlu0 7
  %746 = vperm.xlu0 %745, %v21
  %v747 = vpop.permute.xlu0 %746
  %748 = vset.pattern.permute.xlu0 7
  %749 = vperm.xlu0 %748, %v22
  %v750 = vpop.permute.xlu0 %749
  %751 = vset.pattern.permute.xlu0 7
  %752 = vperm.xlu0 %751, %v23
  %v753 = vpop.permute.xlu0 %752
  %754 = vset.pattern.permute.xlu0 7
  %755 = vperm.xlu0 %754, %v24
  %v756 = vpop.permute.xlu0 %755
  %757 = vset.pattern.permute.xlu0 7
  %758 = vperm.xlu0 %757, %v25
  %v759 = vpop.permute.xlu0 %758
  %760 = vset.pattern.permute.xlu0 7
  %761 = vperm.xlu0 %760, %v26
  %v762 = vpop.permute.xlu0 %761
  %763 = vset.pattern.permute.xlu0 7
  %764 = vperm.xlu0 %763, %v27
  %v765 = vpop.permute.xlu0 %764
  %vm766 = vcmp.eq.s32.totalorder %v720, %v61
  %vm767 = vcmp.eq.s32.totalorder %v723, %v61
  %vm768 = vcmp.eq.s32.totalorder %v726, %v61
  %vm769 = vcmp.eq.s32.totalorder %v729, %v61
  %vm770 = vcmp.eq.s32.totalorder %v732, %v61
  %vm771 = vcmp.eq.s32.totalorder %v735, %v61
  %vm772 = vcmp.eq.s32.totalorder %v738, %v61
  %vm773 = vcmp.eq.s32.totalorder %v741, %v61
  %vm774 = vcmp.eq.s32.totalorder %v744, %v61
  %vm775 = vcmp.eq.s32.totalorder %v747, %v61
  %vm776 = vcmp.eq.s32.totalorder %v750, %v61
  %vm777 = vcmp.eq.s32.totalorder %v753, %v61
  %vm778 = vcmp.eq.s32.totalorder %v756, %v61
  %vm779 = vcmp.eq.s32.totalorder %v759, %v61
  %vm780 = vcmp.eq.s32.totalorder %v762, %v61
  %vm781 = vcmp.eq.s32.totalorder %v765, %v61
  %v782 = vsel %vm766, 1, 0
  %v783 = vsel %vm767, 1, 0
  %v784 = vsel %vm768, 1, 0
  %v785 = vsel %vm769, 1, 0
  %v786 = vsel %vm770, 1, 0
  %v787 = vsel %vm771, 1, 0
  %v788 = vsel %vm772, 1, 0
  %v789 = vsel %vm773, 1, 0
  %v790 = vsel %vm774, 1, 0
  %v791 = vsel %vm775, 1, 0
  %v792 = vsel %vm776, 1, 0
  %v793 = vsel %vm777, 1, 0
  %v794 = vsel %vm778, 1, 0
  %v795 = vsel %vm779, 1, 0
  %v796 = vsel %vm780, 1, 0
  %v797 = vsel %vm781, 1, 0
  %v798 = vadd.s32 %v702, %v782
  %v799 = vadd.s32 %v703, %v783
  %v800 = vadd.s32 %v704, %v784
  %v801 = vadd.s32 %v705, %v785
  %v802 = vadd.s32 %v706, %v786
  %v803 = vadd.s32 %v707, %v787
  %v804 = vadd.s32 %v708, %v788
  %v805 = vadd.s32 %v709, %v789
  %v806 = vadd.s32 %v710, %v790
  %v807 = vadd.s32 %v711, %v791
  %v808 = vadd.s32 %v712, %v792
  %v809 = vadd.s32 %v713, %v793
  %v810 = vadd.s32 %v714, %v794
  %v811 = vadd.s32 %v715, %v795
  %v812 = vadd.s32 %v716, %v796
  %v813 = vadd.s32 %v717, %v797
  %814 = vset.pattern.permute.xlu0 8
  %815 = vperm.xlu0 %814, %v12
  %v816 = vpop.permute.xlu0 %815
  %817 = vset.pattern.permute.xlu0 8
  %818 = vperm.xlu0 %817, %v13
  %v819 = vpop.permute.xlu0 %818
  %820 = vset.pattern.permute.xlu0 8
  %821 = vperm.xlu0 %820, %v14
  %v822 = vpop.permute.xlu0 %821
  %823 = vset.pattern.permute.xlu0 8
  %824 = vperm.xlu0 %823, %v15
  %v825 = vpop.permute.xlu0 %824
  %826 = vset.pattern.permute.xlu0 8
  %827 = vperm.xlu0 %826, %v16
  %v828 = vpop.permute.xlu0 %827
  %829 = vset.pattern.permute.xlu0 8
  %830 = vperm.xlu0 %829, %v17
  %v831 = vpop.permute.xlu0 %830
  %832 = vset.pattern.permute.xlu0 8
  %833 = vperm.xlu0 %832, %v18
  %v834 = vpop.permute.xlu0 %833
  %835 = vset.pattern.permute.xlu0 8
  %836 = vperm.xlu0 %835, %v19
  %v837 = vpop.permute.xlu0 %836
  %838 = vset.pattern.permute.xlu0 8
  %839 = vperm.xlu0 %838, %v20
  %v840 = vpop.permute.xlu0 %839
  %841 = vset.pattern.permute.xlu0 8
  %842 = vperm.xlu0 %841, %v21
  %v843 = vpop.permute.xlu0 %842
  %844 = vset.pattern.permute.xlu0 8
  %845 = vperm.xlu0 %844, %v22
  %v846 = vpop.permute.xlu0 %845
  %847 = vset.pattern.permute.xlu0 8
  %848 = vperm.xlu0 %847, %v23
  %v849 = vpop.permute.xlu0 %848
  %850 = vset.pattern.permute.xlu0 8
  %851 = vperm.xlu0 %850, %v24
  %v852 = vpop.permute.xlu0 %851
  %853 = vset.pattern.permute.xlu0 8
  %854 = vperm.xlu0 %853, %v25
  %v855 = vpop.permute.xlu0 %854
  %856 = vset.pattern.permute.xlu0 8
  %857 = vperm.xlu0 %856, %v26
  %v858 = vpop.permute.xlu0 %857
  %859 = vset.pattern.permute.xlu0 8
  %860 = vperm.xlu0 %859, %v27
  %v861 = vpop.permute.xlu0 %860
  %vm862 = vcmp.eq.s32.totalorder %v816, %v61
  %vm863 = vcmp.eq.s32.totalorder %v819, %v61
  %vm864 = vcmp.eq.s32.totalorder %v822, %v61
  %vm865 = vcmp.eq.s32.totalorder %v825, %v61
  %vm866 = vcmp.eq.s32.totalorder %v828, %v61
  %vm867 = vcmp.eq.s32.totalorder %v831, %v61
  %vm868 = vcmp.eq.s32.totalorder %v834, %v61
  %vm869 = vcmp.eq.s32.totalorder %v837, %v61
  %vm870 = vcmp.eq.s32.totalorder %v840, %v61
  %vm871 = vcmp.eq.s32.totalorder %v843, %v61
  %vm872 = vcmp.eq.s32.totalorder %v846, %v61
  %vm873 = vcmp.eq.s32.totalorder %v849, %v61
  %vm874 = vcmp.eq.s32.totalorder %v852, %v61
  %vm875 = vcmp.eq.s32.totalorder %v855, %v61
  %vm876 = vcmp.eq.s32.totalorder %v858, %v61
  %vm877 = vcmp.eq.s32.totalorder %v861, %v61
  %v878 = vsel %vm862, 1, 0
  %v879 = vsel %vm863, 1, 0
  %v880 = vsel %vm864, 1, 0
  %v881 = vsel %vm865, 1, 0
  %v882 = vsel %vm866, 1, 0
  %v883 = vsel %vm867, 1, 0
  %v884 = vsel %vm868, 1, 0
  %v885 = vsel %vm869, 1, 0
  %v886 = vsel %vm870, 1, 0
  %v887 = vsel %vm871, 1, 0
  %v888 = vsel %vm872, 1, 0
  %v889 = vsel %vm873, 1, 0
  %v890 = vsel %vm874, 1, 0
  %v891 = vsel %vm875, 1, 0
  %v892 = vsel %vm876, 1, 0
  %v893 = vsel %vm877, 1, 0
  %v894 = vadd.s32 %v798, %v878
  %v895 = vadd.s32 %v799, %v879
  %v896 = vadd.s32 %v800, %v880
  %v897 = vadd.s32 %v801, %v881
  %v898 = vadd.s32 %v802, %v882
  %v899 = vadd.s32 %v803, %v883
  %v900 = vadd.s32 %v804, %v884
  %v901 = vadd.s32 %v805, %v885
  %v902 = vadd.s32 %v806, %v886
  %v903 = vadd.s32 %v807, %v887
  %v904 = vadd.s32 %v808, %v888
  %v905 = vadd.s32 %v809, %v889
  %v906 = vadd.s32 %v810, %v890
  %v907 = vadd.s32 %v811, %v891
  %v908 = vadd.s32 %v812, %v892
  %v909 = vadd.s32 %v813, %v893
  %910 = vset.pattern.permute.xlu0 9
  %911 = vperm.xlu0 %910, %v12
  %v912 = vpop.permute.xlu0 %911
  %913 = vset.pattern.permute.xlu0 9
  %914 = vperm.xlu0 %913, %v13
  %v915 = vpop.permute.xlu0 %914
  %916 = vset.pattern.permute.xlu0 9
  %917 = vperm.xlu0 %916, %v14
  %v918 = vpop.permute.xlu0 %917
  %919 = vset.pattern.permute.xlu0 9
  %920 = vperm.xlu0 %919, %v15
  %v921 = vpop.permute.xlu0 %920
  %922 = vset.pattern.permute.xlu0 9
  %923 = vperm.xlu0 %922, %v16
  %v924 = vpop.permute.xlu0 %923
  %925 = vset.pattern.permute.xlu0 9
  %926 = vperm.xlu0 %925, %v17
  %v927 = vpop.permute.xlu0 %926
  %928 = vset.pattern.permute.xlu0 9
  %929 = vperm.xlu0 %928, %v18
  %v930 = vpop.permute.xlu0 %929
  %931 = vset.pattern.permute.xlu0 9
  %932 = vperm.xlu0 %931, %v19
  %v933 = vpop.permute.xlu0 %932
  %934 = vset.pattern.permute.xlu0 9
  %935 = vperm.xlu0 %934, %v20
  %v936 = vpop.permute.xlu0 %935
  %937 = vset.pattern.permute.xlu0 9
  %938 = vperm.xlu0 %937, %v21
  %v939 = vpop.permute.xlu0 %938
  %940 = vset.pattern.permute.xlu0 9
  %941 = vperm.xlu0 %940, %v22
  %v942 = vpop.permute.xlu0 %941
  %943 = vset.pattern.permute.xlu0 9
  %944 = vperm.xlu0 %943, %v23
  %v945 = vpop.permute.xlu0 %944
  %946 = vset.pattern.permute.xlu0 9
  %947 = vperm.xlu0 %946, %v24
  %v948 = vpop.permute.xlu0 %947
  %949 = vset.pattern.permute.xlu0 9
  %950 = vperm.xlu0 %949, %v25
  %v951 = vpop.permute.xlu0 %950
  %952 = vset.pattern.permute.xlu0 9
  %953 = vperm.xlu0 %952, %v26
  %v954 = vpop.permute.xlu0 %953
  %955 = vset.pattern.permute.xlu0 9
  %956 = vperm.xlu0 %955, %v27
  %v957 = vpop.permute.xlu0 %956
  %vm958 = vcmp.eq.s32.totalorder %v912, %v61
  %vm959 = vcmp.eq.s32.totalorder %v915, %v61
  %vm960 = vcmp.eq.s32.totalorder %v918, %v61
  %vm961 = vcmp.eq.s32.totalorder %v921, %v61
  %vm962 = vcmp.eq.s32.totalorder %v924, %v61
  %vm963 = vcmp.eq.s32.totalorder %v927, %v61
  %vm964 = vcmp.eq.s32.totalorder %v930, %v61
  %vm965 = vcmp.eq.s32.totalorder %v933, %v61
  %vm966 = vcmp.eq.s32.totalorder %v936, %v61
  %vm967 = vcmp.eq.s32.totalorder %v939, %v61
  %vm968 = vcmp.eq.s32.totalorder %v942, %v61
  %vm969 = vcmp.eq.s32.totalorder %v945, %v61
  %vm970 = vcmp.eq.s32.totalorder %v948, %v61
  %vm971 = vcmp.eq.s32.totalorder %v951, %v61
  %vm972 = vcmp.eq.s32.totalorder %v954, %v61
  %vm973 = vcmp.eq.s32.totalorder %v957, %v61
  %v974 = vsel %vm958, 1, 0
  %v975 = vsel %vm959, 1, 0
  %v976 = vsel %vm960, 1, 0
  %v977 = vsel %vm961, 1, 0
  %v978 = vsel %vm962, 1, 0
  %v979 = vsel %vm963, 1, 0
  %v980 = vsel %vm964, 1, 0
  %v981 = vsel %vm965, 1, 0
  %v982 = vsel %vm966, 1, 0
  %v983 = vsel %vm967, 1, 0
  %v984 = vsel %vm968, 1, 0
  %v985 = vsel %vm969, 1, 0
  %v986 = vsel %vm970, 1, 0
  %v987 = vsel %vm971, 1, 0
  %v988 = vsel %vm972, 1, 0
  %v989 = vsel %vm973, 1, 0
  %v990 = vadd.s32 %v894, %v974
  %v991 = vadd.s32 %v895, %v975
  %v992 = vadd.s32 %v896, %v976
  %v993 = vadd.s32 %v897, %v977
  %v994 = vadd.s32 %v898, %v978
  %v995 = vadd.s32 %v899, %v979
  %v996 = vadd.s32 %v900, %v980
  %v997 = vadd.s32 %v901, %v981
  %v998 = vadd.s32 %v902, %v982
  %v999 = vadd.s32 %v903, %v983
  %v1000 = vadd.s32 %v904, %v984
  %v1001 = vadd.s32 %v905, %v985
  %v1002 = vadd.s32 %v906, %v986
  %v1003 = vadd.s32 %v907, %v987
  %v1004 = vadd.s32 %v908, %v988
  %v1005 = vadd.s32 %v909, %v989
  %v1006 = vcvt.s32.f32 %v990
  %v1007 = vcvt.s32.f32 %v991
  %v1008 = vcvt.s32.f32 %v992
  %v1009 = vcvt.s32.f32 %v993
  %v1010 = vcvt.s32.f32 %v994
  %v1011 = vcvt.s32.f32 %v995
  %v1012 = vcvt.s32.f32 %v996
  %v1013 = vcvt.s32.f32 %v997
  %v1014 = vcvt.s32.f32 %v998
  %v1015 = vcvt.s32.f32 %v999
  %v1016 = vcvt.s32.f32 %v1000
  %v1017 = vcvt.s32.f32 %v1001
  %v1018 = vcvt.s32.f32 %v1002
  %v1019 = vcvt.s32.f32 %v1003
  %v1020 = vcvt.s32.f32 %v1004
  %v1021 = vcvt.s32.f32 %v1005
  %v1022 = vpack.c.bf16 %v1007, %v1006
  %v1023 = vpack.c.bf16 %v1009, %v1008
  %v1024 = vpack.c.bf16 %v1011, %v1010
  %v1025 = vpack.c.bf16 %v1013, %v1012
  %v1026 = vpack.c.bf16 %v1015, %v1014
  %v1027 = vpack.c.bf16 %v1017, %v1016
  %v1028 = vpack.c.bf16 %v1019, %v1018
  %v1029 = vpack.c.bf16 %v1021, %v1020
  %v1030 = vld [vmem:[%s1] sm:$0xf]
  %v1031 = vld [vmem:[%s1 + $0x4] sm:$0xf]
  %v1032 = vld [vmem:[%s1 + $0x8] sm:$0xf]
  %v1033 = vld [vmem:[%s1 + $0xc] sm:$0xf]
  %v1038 = vunpack.c.l.b16 %v1030
  %v1039 = vunpack.c.l.b16 %v1031
  %v1040 = vunpack.c.l.b16 %v1032
  %v1041 = vunpack.c.l.b16 %v1033
  %v1042 = vpack.c.b16 %v1039, %v1038
  %v1043 = vpack.c.b16 %v1041, %v1040
  %vm1046 = vcmask 261120
  %v1048 = vsel %vm1046, %v1022, 0
  %v1051 = vsel %vm1046, %v1023, 0
  %v1054 = vsel %vm1046, %v1024, 0
  %v1057 = vsel %vm1046, %v1025, 0
  %v1060 = vsel %vm1046, %v1026, 0
  %v1063 = vsel %vm1046, %v1027, 0
  %v1066 = vsel %vm1046, %v1028, 0
  %v1069 = vsel %vm1046, %v1029, 0
  %1071 = vmatprep.subr.bf16.mxu0 0
  %1072 = vmatpush1.bf16.msra.mxu0 0
  %1073 = vmatprep.subr.bf16.mxu0 0
  %1074 = vmatpush1.bf16.msra.mxu0 0
  %1075 = vmatprep.subr.bf16.mxu0 0
  %1076 = vmatpush1.bf16.msra.mxu0 0
  %1077 = vmatprep.subr.bf16.mxu0 0
  %1078 = vmatpush1.bf16.msra.mxu0 0
  %1079 = vmatprep.subr.bf16.mxu0 0
  %1080 = vmatpush1.bf16.msra.mxu0 0
  %1081 = vmatprep.subr.bf16.mxu0 0
  %1082 = vmatpush1.bf16.msra.mxu0 0
  %1083 = vmatprep.subr.bf16.mxu0 0
  %1084 = vmatpush1.bf16.msra.mxu0 %v1043
  %1085 = vmatprep.subr.bf16.mxu0 0
  %1086 = vmatpush1.bf16.msra.mxu0 %v1042
  %1087 = vmatprep.subr.bf16.mxu0 0
  %1088 = vmatpush2.bf16.msra.mxu0 0
  %1089 = vmatprep.subr.bf16.mxu0 0
  %1090 = vmatpush2.bf16.msra.mxu0 0
  %1091 = vmatprep.subr.bf16.mxu0 0
  %1092 = vmatpush2.bf16.msra.mxu0 0
  %1093 = vmatprep.subr.bf16.mxu0 0
  %1094 = vmatpush2.bf16.msra.mxu0 0
  %1095 = vmatprep.subr.bf16.mxu0 0
  %1096 = vmatpush2.bf16.msra.mxu0 0
  %1097 = vmatprep.subr.bf16.mxu0 0
  %1098 = vmatpush2.bf16.msra.mxu0 0
  %1099 = vmatprep.subr.bf16.mxu0 0
  %1100 = vmatpush2.bf16.msra.mxu0 0
  %1101 = vmatprep.subr.bf16.mxu0 0
  %1102 = vmatpush2.bf16.msra.mxu0 0
  %1103 = vmatprep.mubr.bf16.mxu0 0
  %1104 = vmatmul.mubr.bf16.gmra.mxu0 %v1048
  %v1105 = vpop.f32.mrf.mxu0
  %v1106 = vadd.f32 0.0, %v1105
  %v1107 = vpop.f32.mrf.mxu0
  %v1108 = vpop.f32.mrf.mxu0
  %v1109 = vadd.f32 0.0, %v1108
  %v1110 = vpop.f32.mrf.mxu0
  %1111 = vmatprep.mubr.bf16.mxu0 0
  %1112 = vmatmul.mubr.bf16.gmra.mxu0 %v1051
  %v1113 = vpop.f32.mrf.mxu0
  %v1114 = vadd.f32 0.0, %v1113
  %v1115 = vpop.f32.mrf.mxu0
  %v1116 = vpop.f32.mrf.mxu0
  %v1117 = vadd.f32 0.0, %v1116
  %v1118 = vpop.f32.mrf.mxu0
  %1119 = vmatprep.mubr.bf16.mxu0 0
  %1120 = vmatmul.mubr.bf16.gmra.mxu0 %v1054
  %v1121 = vpop.f32.mrf.mxu0
  %v1122 = vadd.f32 0.0, %v1121
  %v1123 = vpop.f32.mrf.mxu0
  %v1124 = vpop.f32.mrf.mxu0
  %v1125 = vadd.f32 0.0, %v1124
  %v1126 = vpop.f32.mrf.mxu0
  %1127 = vmatprep.mubr.bf16.mxu0 0
  %1128 = vmatmul.mubr.bf16.gmra.mxu0 %v1057
  %v1129 = vpop.f32.mrf.mxu0
  %v1130 = vadd.f32 0.0, %v1129
  %v1131 = vpop.f32.mrf.mxu0
  %v1132 = vpop.f32.mrf.mxu0
  %v1133 = vadd.f32 0.0, %v1132
  %v1134 = vpop.f32.mrf.mxu0
  %1135 = vmatprep.mubr.bf16.mxu0 0
  %1136 = vmatmul.mubr.bf16.gmra.mxu0 %v1060
  %v1137 = vpop.f32.mrf.mxu0
  %v1138 = vadd.f32 0.0, %v1137
  %v1139 = vpop.f32.mrf.mxu0
  %v1140 = vpop.f32.mrf.mxu0
  %v1141 = vadd.f32 0.0, %v1140
  %v1142 = vpop.f32.mrf.mxu0
  %1143 = vmatprep.mubr.bf16.mxu0 0
  %1144 = vmatmul.mubr.bf16.gmra.mxu0 %v1063
  %v1145 = vpop.f32.mrf.mxu0
  %v1146 = vadd.f32 0.0, %v1145
  %v1147 = vpop.f32.mrf.mxu0
  %v1148 = vpop.f32.mrf.mxu0
  %v1149 = vadd.f32 0.0, %v1148
  %v1150 = vpop.f32.mrf.mxu0
  %1151 = vmatprep.mubr.bf16.mxu0 0
  %1152 = vmatmul.mubr.bf16.gmra.mxu0 %v1066
  %v1153 = vpop.f32.mrf.mxu0
  %v1154 = vadd.f32 0.0, %v1153
  %v1155 = vpop.f32.mrf.mxu0
  %v1156 = vpop.f32.mrf.mxu0
  %v1157 = vadd.f32 0.0, %v1156
  %v1158 = vpop.f32.mrf.mxu0
  %1159 = vmatprep.mubr.bf16.mxu0 0
  %1160 = vmatmul.mubr.bf16.gmra.mxu0 %v1069
  %v1161 = vpop.f32.mrf.mxu0
  %v1162 = vadd.f32 0.0, %v1161
  %v1163 = vpop.f32.mrf.mxu0
  %v1164 = vpop.f32.mrf.mxu0
  %v1165 = vadd.f32 0.0, %v1164
  %v1166 = vpop.f32.mrf.mxu0
  %1167 = vdwg.mxu0
  %1168 = vset.pattern.permute.xlu0 0
  %1169 = vperm.xlu0 %1168, %v28
  %v1170 = vpop.permute.xlu0 %1169
  %1171 = vset.pattern.permute.xlu0 0
  %1172 = vperm.xlu0 %1171, %v29
  %v1173 = vpop.permute.xlu0 %1172
  %1174 = vset.pattern.permute.xlu0 0
  %1175 = vperm.xlu0 %1174, %v30
  %v1176 = vpop.permute.xlu0 %1175
  %1177 = vset.pattern.permute.xlu0 0
  %1178 = vperm.xlu0 %1177, %v31
  %v1179 = vpop.permute.xlu0 %1178
  %1180 = vset.pattern.permute.xlu0 0
  %1181 = vperm.xlu0 %1180, %v32
  %v1182 = vpop.permute.xlu0 %1181
  %1183 = vset.pattern.permute.xlu0 0
  %1184 = vperm.xlu0 %1183, %v33
  %v1185 = vpop.permute.xlu0 %1184
  %1186 = vset.pattern.permute.xlu0 0
  %1187 = vperm.xlu0 %1186, %v34
  %v1188 = vpop.permute.xlu0 %1187
  %1189 = vset.pattern.permute.xlu0 0
  %1190 = vperm.xlu0 %1189, %v35
  %v1191 = vpop.permute.xlu0 %1190
  %1192 = vset.pattern.permute.xlu0 0
  %1193 = vperm.xlu0 %1192, %v36
  %v1194 = vpop.permute.xlu0 %1193
  %1195 = vset.pattern.permute.xlu0 0
  %1196 = vperm.xlu0 %1195, %v37
  %v1197 = vpop.permute.xlu0 %1196
  %1198 = vset.pattern.permute.xlu0 0
  %1199 = vperm.xlu0 %1198, %v38
  %v1200 = vpop.permute.xlu0 %1199
  %1201 = vset.pattern.permute.xlu0 0
  %1202 = vperm.xlu0 %1201, %v39
  %v1203 = vpop.permute.xlu0 %1202
  %1204 = vset.pattern.permute.xlu0 0
  %1205 = vperm.xlu0 %1204, %v40
  %v1206 = vpop.permute.xlu0 %1205
  %1207 = vset.pattern.permute.xlu0 0
  %1208 = vperm.xlu0 %1207, %v41
  %v1209 = vpop.permute.xlu0 %1208
  %1210 = vset.pattern.permute.xlu0 0
  %1211 = vperm.xlu0 %1210, %v42
  %v1212 = vpop.permute.xlu0 %1211
  %1213 = vset.pattern.permute.xlu0 0
  %1214 = vperm.xlu0 %1213, %v43
  %v1215 = vpop.permute.xlu0 %1214
  %vm1216 = vcmp.eq.s32.totalorder %v1170, %v61
  %vm1217 = vcmp.eq.s32.totalorder %v1173, %v61
  %vm1218 = vcmp.eq.s32.totalorder %v1176, %v61
  %vm1219 = vcmp.eq.s32.totalorder %v1179, %v61
  %vm1220 = vcmp.eq.s32.totalorder %v1182, %v61
  %vm1221 = vcmp.eq.s32.totalorder %v1185, %v61
  %vm1222 = vcmp.eq.s32.totalorder %v1188, %v61
  %vm1223 = vcmp.eq.s32.totalorder %v1191, %v61
  %vm1224 = vcmp.eq.s32.totalorder %v1194, %v61
  %vm1225 = vcmp.eq.s32.totalorder %v1197, %v61
  %vm1226 = vcmp.eq.s32.totalorder %v1200, %v61
  %vm1227 = vcmp.eq.s32.totalorder %v1203, %v61
  %vm1228 = vcmp.eq.s32.totalorder %v1206, %v61
  %vm1229 = vcmp.eq.s32.totalorder %v1209, %v61
  %vm1230 = vcmp.eq.s32.totalorder %v1212, %v61
  %vm1231 = vcmp.eq.s32.totalorder %v1215, %v61
  %v1232 = vsel %vm1216, 1, 0
  %v1233 = vsel %vm1217, 1, 0
  %v1234 = vsel %vm1218, 1, 0
  %v1235 = vsel %vm1219, 1, 0
  %v1236 = vsel %vm1220, 1, 0
  %v1237 = vsel %vm1221, 1, 0
  %v1238 = vsel %vm1222, 1, 0
  %v1239 = vsel %vm1223, 1, 0
  %v1240 = vsel %vm1224, 1, 0
  %v1241 = vsel %vm1225, 1, 0
  %v1242 = vsel %vm1226, 1, 0
  %v1243 = vsel %vm1227, 1, 0
  %v1244 = vsel %vm1228, 1, 0
  %v1245 = vsel %vm1229, 1, 0
  %v1246 = vsel %vm1230, 1, 0
  %v1247 = vsel %vm1231, 1, 0
  %1248 = vset.pattern.permute.xlu0 1
  %1249 = vperm.xlu0 %1248, %v28
  %v1250 = vpop.permute.xlu0 %1249
  %1251 = vset.pattern.permute.xlu0 1
  %1252 = vperm.xlu0 %1251, %v29
  %v1253 = vpop.permute.xlu0 %1252
  %1254 = vset.pattern.permute.xlu0 1
  %1255 = vperm.xlu0 %1254, %v30
  %v1256 = vpop.permute.xlu0 %1255
  %1257 = vset.pattern.permute.xlu0 1
  %1258 = vperm.xlu0 %1257, %v31
  %v1259 = vpop.permute.xlu0 %1258
  %1260 = vset.pattern.permute.xlu0 1
  %1261 = vperm.xlu0 %1260, %v32
  %v1262 = vpop.permute.xlu0 %1261
  %1263 = vset.pattern.permute.xlu0 1
  %1264 = vperm.xlu0 %1263, %v33
  %v1265 = vpop.permute.xlu0 %1264
  %1266 = vset.pattern.permute.xlu0 1
  %1267 = vperm.xlu0 %1266, %v34
  %v1268 = vpop.permute.xlu0 %1267
  %1269 = vset.pattern.permute.xlu0 1
  %1270 = vperm.xlu0 %1269, %v35
  %v1271 = vpop.permute.xlu0 %1270
  %1272 = vset.pattern.permute.xlu0 1
  %1273 = vperm.xlu0 %1272, %v36
  %v1274 = vpop.permute.xlu0 %1273
  %1275 = vset.pattern.permute.xlu0 1
  %1276 = vperm.xlu0 %1275, %v37
  %v1277 = vpop.permute.xlu0 %1276
  %1278 = vset.pattern.permute.xlu0 1
  %1279 = vperm.xlu0 %1278, %v38
  %v1280 = vpop.permute.xlu0 %1279
  %1281 = vset.pattern.permute.xlu0 1
  %1282 = vperm.xlu0 %1281, %v39
  %v1283 = vpop.permute.xlu0 %1282
  %1284 = vset.pattern.permute.xlu0 1
  %1285 = vperm.xlu0 %1284, %v40
  %v1286 = vpop.permute.xlu0 %1285
  %1287 = vset.pattern.permute.xlu0 1
  %1288 = vperm.xlu0 %1287, %v41
  %v1289 = vpop.permute.xlu0 %1288
  %1290 = vset.pattern.permute.xlu0 1
  %1291 = vperm.xlu0 %1290, %v42
  %v1292 = vpop.permute.xlu0 %1291
  %1293 = vset.pattern.permute.xlu0 1
  %1294 = vperm.xlu0 %1293, %v43
  %v1295 = vpop.permute.xlu0 %1294
  %vm1296 = vcmp.eq.s32.totalorder %v1250, %v61
  %vm1297 = vcmp.eq.s32.totalorder %v1253, %v61
  %vm1298 = vcmp.eq.s32.totalorder %v1256, %v61
  %vm1299 = vcmp.eq.s32.totalorder %v1259, %v61
  %vm1300 = vcmp.eq.s32.totalorder %v1262, %v61
  %vm1301 = vcmp.eq.s32.totalorder %v1265, %v61
  %vm1302 = vcmp.eq.s32.totalorder %v1268, %v61
  %vm1303 = vcmp.eq.s32.totalorder %v1271, %v61
  %vm1304 = vcmp.eq.s32.totalorder %v1274, %v61
  %vm1305 = vcmp.eq.s32.totalorder %v1277, %v61
  %vm1306 = vcmp.eq.s32.totalorder %v1280, %v61
  %vm1307 = vcmp.eq.s32.totalorder %v1283, %v61
  %vm1308 = vcmp.eq.s32.totalorder %v1286, %v61
  %vm1309 = vcmp.eq.s32.totalorder %v1289, %v61
  %vm1310 = vcmp.eq.s32.totalorder %v1292, %v61
  %vm1311 = vcmp.eq.s32.totalorder %v1295, %v61
  %v1312 = vsel %vm1296, 1, 0
  %v1313 = vsel %vm1297, 1, 0
  %v1314 = vsel %vm1298, 1, 0
  %v1315 = vsel %vm1299, 1, 0
  %v1316 = vsel %vm1300, 1, 0
  %v1317 = vsel %vm1301, 1, 0
  %v1318 = vsel %vm1302, 1, 0
  %v1319 = vsel %vm1303, 1, 0
  %v1320 = vsel %vm1304, 1, 0
  %v1321 = vsel %vm1305, 1, 0
  %v1322 = vsel %vm1306, 1, 0
  %v1323 = vsel %vm1307, 1, 0
  %v1324 = vsel %vm1308, 1, 0
  %v1325 = vsel %vm1309, 1, 0
  %v1326 = vsel %vm1310, 1, 0
  %v1327 = vsel %vm1311, 1, 0
  %v1328 = vadd.s32 %v1232, %v1312
  %v1329 = vadd.s32 %v1233, %v1313
  %v1330 = vadd.s32 %v1234, %v1314
  %v1331 = vadd.s32 %v1235, %v1315
  %v1332 = vadd.s32 %v1236, %v1316
  %v1333 = vadd.s32 %v1237, %v1317
  %v1334 = vadd.s32 %v1238, %v1318
  %v1335 = vadd.s32 %v1239, %v1319
  %v1336 = vadd.s32 %v1240, %v1320
  %v1337 = vadd.s32 %v1241, %v1321
  %v1338 = vadd.s32 %v1242, %v1322
  %v1339 = vadd.s32 %v1243, %v1323
  %v1340 = vadd.s32 %v1244, %v1324
  %v1341 = vadd.s32 %v1245, %v1325
  %v1342 = vadd.s32 %v1246, %v1326
  %v1343 = vadd.s32 %v1247, %v1327
  %1344 = vset.pattern.permute.xlu0 2
  %1345 = vperm.xlu0 %1344, %v28
  %v1346 = vpop.permute.xlu0 %1345
  %1347 = vset.pattern.permute.xlu0 2
  %1348 = vperm.xlu0 %1347, %v29
  %v1349 = vpop.permute.xlu0 %1348
  %1350 = vset.pattern.permute.xlu0 2
  %1351 = vperm.xlu0 %1350, %v30
  %v1352 = vpop.permute.xlu0 %1351
  %1353 = vset.pattern.permute.xlu0 2
  %1354 = vperm.xlu0 %1353, %v31
  %v1355 = vpop.permute.xlu0 %1354
  %1356 = vset.pattern.permute.xlu0 2
  %1357 = vperm.xlu0 %1356, %v32
  %v1358 = vpop.permute.xlu0 %1357
  %1359 = vset.pattern.permute.xlu0 2
  %1360 = vperm.xlu0 %1359, %v33
  %v1361 = vpop.permute.xlu0 %1360
  %1362 = vset.pattern.permute.xlu0 2
  %1363 = vperm.xlu0 %1362, %v34
  %v1364 = vpop.permute.xlu0 %1363
  %1365 = vset.pattern.permute.xlu0 2
  %1366 = vperm.xlu0 %1365, %v35
  %v1367 = vpop.permute.xlu0 %1366
  %1368 = vset.pattern.permute.xlu0 2
  %1369 = vperm.xlu0 %1368, %v36
  %v1370 = vpop.permute.xlu0 %1369
  %1371 = vset.pattern.permute.xlu0 2
  %1372 = vperm.xlu0 %1371, %v37
  %v1373 = vpop.permute.xlu0 %1372
  %1374 = vset.pattern.permute.xlu0 2
  %1375 = vperm.xlu0 %1374, %v38
  %v1376 = vpop.permute.xlu0 %1375
  %1377 = vset.pattern.permute.xlu0 2
  %1378 = vperm.xlu0 %1377, %v39
  %v1379 = vpop.permute.xlu0 %1378
  %1380 = vset.pattern.permute.xlu0 2
  %1381 = vperm.xlu0 %1380, %v40
  %v1382 = vpop.permute.xlu0 %1381
  %1383 = vset.pattern.permute.xlu0 2
  %1384 = vperm.xlu0 %1383, %v41
  %v1385 = vpop.permute.xlu0 %1384
  %1386 = vset.pattern.permute.xlu0 2
  %1387 = vperm.xlu0 %1386, %v42
  %v1388 = vpop.permute.xlu0 %1387
  %1389 = vset.pattern.permute.xlu0 2
  %1390 = vperm.xlu0 %1389, %v43
  %v1391 = vpop.permute.xlu0 %1390
  %vm1392 = vcmp.eq.s32.totalorder %v1346, %v61
  %vm1393 = vcmp.eq.s32.totalorder %v1349, %v61
  %vm1394 = vcmp.eq.s32.totalorder %v1352, %v61
  %vm1395 = vcmp.eq.s32.totalorder %v1355, %v61
  %vm1396 = vcmp.eq.s32.totalorder %v1358, %v61
  %vm1397 = vcmp.eq.s32.totalorder %v1361, %v61
  %vm1398 = vcmp.eq.s32.totalorder %v1364, %v61
  %vm1399 = vcmp.eq.s32.totalorder %v1367, %v61
  %vm1400 = vcmp.eq.s32.totalorder %v1370, %v61
  %vm1401 = vcmp.eq.s32.totalorder %v1373, %v61
  %vm1402 = vcmp.eq.s32.totalorder %v1376, %v61
  %vm1403 = vcmp.eq.s32.totalorder %v1379, %v61
  %vm1404 = vcmp.eq.s32.totalorder %v1382, %v61
  %vm1405 = vcmp.eq.s32.totalorder %v1385, %v61
  %vm1406 = vcmp.eq.s32.totalorder %v1388, %v61
  %vm1407 = vcmp.eq.s32.totalorder %v1391, %v61
  %v1408 = vsel %vm1392, 1, 0
  %v1409 = vsel %vm1393, 1, 0
  %v1410 = vsel %vm1394, 1, 0
  %v1411 = vsel %vm1395, 1, 0
  %v1412 = vsel %vm1396, 1, 0
  %v1413 = vsel %vm1397, 1, 0
  %v1414 = vsel %vm1398, 1, 0
  %v1415 = vsel %vm1399, 1, 0
  %v1416 = vsel %vm1400, 1, 0
  %v1417 = vsel %vm1401, 1, 0
  %v1418 = vsel %vm1402, 1, 0
  %v1419 = vsel %vm1403, 1, 0
  %v1420 = vsel %vm1404, 1, 0
  %v1421 = vsel %vm1405, 1, 0
  %v1422 = vsel %vm1406, 1, 0
  %v1423 = vsel %vm1407, 1, 0
  %v1424 = vadd.s32 %v1328, %v1408
  %v1425 = vadd.s32 %v1329, %v1409
  %v1426 = vadd.s32 %v1330, %v1410
  %v1427 = vadd.s32 %v1331, %v1411
  %v1428 = vadd.s32 %v1332, %v1412
  %v1429 = vadd.s32 %v1333, %v1413
  %v1430 = vadd.s32 %v1334, %v1414
  %v1431 = vadd.s32 %v1335, %v1415
  %v1432 = vadd.s32 %v1336, %v1416
  %v1433 = vadd.s32 %v1337, %v1417
  %v1434 = vadd.s32 %v1338, %v1418
  %v1435 = vadd.s32 %v1339, %v1419
  %v1436 = vadd.s32 %v1340, %v1420
  %v1437 = vadd.s32 %v1341, %v1421
  %v1438 = vadd.s32 %v1342, %v1422
  %v1439 = vadd.s32 %v1343, %v1423
  %1440 = vset.pattern.permute.xlu0 3
  %1441 = vperm.xlu0 %1440, %v28
  %v1442 = vpop.permute.xlu0 %1441
  %1443 = vset.pattern.permute.xlu0 3
  %1444 = vperm.xlu0 %1443, %v29
  %v1445 = vpop.permute.xlu0 %1444
  %1446 = vset.pattern.permute.xlu0 3
  %1447 = vperm.xlu0 %1446, %v30
  %v1448 = vpop.permute.xlu0 %1447
  %1449 = vset.pattern.permute.xlu0 3
  %1450 = vperm.xlu0 %1449, %v31
  %v1451 = vpop.permute.xlu0 %1450
  %1452 = vset.pattern.permute.xlu0 3
  %1453 = vperm.xlu0 %1452, %v32
  %v1454 = vpop.permute.xlu0 %1453
  %1455 = vset.pattern.permute.xlu0 3
  %1456 = vperm.xlu0 %1455, %v33
  %v1457 = vpop.permute.xlu0 %1456
  %1458 = vset.pattern.permute.xlu0 3
  %1459 = vperm.xlu0 %1458, %v34
  %v1460 = vpop.permute.xlu0 %1459
  %1461 = vset.pattern.permute.xlu0 3
  %1462 = vperm.xlu0 %1461, %v35
  %v1463 = vpop.permute.xlu0 %1462
  %1464 = vset.pattern.permute.xlu0 3
  %1465 = vperm.xlu0 %1464, %v36
  %v1466 = vpop.permute.xlu0 %1465
  %1467 = vset.pattern.permute.xlu0 3
  %1468 = vperm.xlu0 %1467, %v37
  %v1469 = vpop.permute.xlu0 %1468
  %1470 = vset.pattern.permute.xlu0 3
  %1471 = vperm.xlu0 %1470, %v38
  %v1472 = vpop.permute.xlu0 %1471
  %1473 = vset.pattern.permute.xlu0 3
  %1474 = vperm.xlu0 %1473, %v39
  %v1475 = vpop.permute.xlu0 %1474
  %1476 = vset.pattern.permute.xlu0 3
  %1477 = vperm.xlu0 %1476, %v40
  %v1478 = vpop.permute.xlu0 %1477
  %1479 = vset.pattern.permute.xlu0 3
  %1480 = vperm.xlu0 %1479, %v41
  %v1481 = vpop.permute.xlu0 %1480
  %1482 = vset.pattern.permute.xlu0 3
  %1483 = vperm.xlu0 %1482, %v42
  %v1484 = vpop.permute.xlu0 %1483
  %1485 = vset.pattern.permute.xlu0 3
  %1486 = vperm.xlu0 %1485, %v43
  %v1487 = vpop.permute.xlu0 %1486
  %vm1488 = vcmp.eq.s32.totalorder %v1442, %v61
  %vm1489 = vcmp.eq.s32.totalorder %v1445, %v61
  %vm1490 = vcmp.eq.s32.totalorder %v1448, %v61
  %vm1491 = vcmp.eq.s32.totalorder %v1451, %v61
  %vm1492 = vcmp.eq.s32.totalorder %v1454, %v61
  %vm1493 = vcmp.eq.s32.totalorder %v1457, %v61
  %vm1494 = vcmp.eq.s32.totalorder %v1460, %v61
  %vm1495 = vcmp.eq.s32.totalorder %v1463, %v61
  %vm1496 = vcmp.eq.s32.totalorder %v1466, %v61
  %vm1497 = vcmp.eq.s32.totalorder %v1469, %v61
  %vm1498 = vcmp.eq.s32.totalorder %v1472, %v61
  %vm1499 = vcmp.eq.s32.totalorder %v1475, %v61
  %vm1500 = vcmp.eq.s32.totalorder %v1478, %v61
  %vm1501 = vcmp.eq.s32.totalorder %v1481, %v61
  %vm1502 = vcmp.eq.s32.totalorder %v1484, %v61
  %vm1503 = vcmp.eq.s32.totalorder %v1487, %v61
  %v1504 = vsel %vm1488, 1, 0
  %v1505 = vsel %vm1489, 1, 0
  %v1506 = vsel %vm1490, 1, 0
  %v1507 = vsel %vm1491, 1, 0
  %v1508 = vsel %vm1492, 1, 0
  %v1509 = vsel %vm1493, 1, 0
  %v1510 = vsel %vm1494, 1, 0
  %v1511 = vsel %vm1495, 1, 0
  %v1512 = vsel %vm1496, 1, 0
  %v1513 = vsel %vm1497, 1, 0
  %v1514 = vsel %vm1498, 1, 0
  %v1515 = vsel %vm1499, 1, 0
  %v1516 = vsel %vm1500, 1, 0
  %v1517 = vsel %vm1501, 1, 0
  %v1518 = vsel %vm1502, 1, 0
  %v1519 = vsel %vm1503, 1, 0
  %v1520 = vadd.s32 %v1424, %v1504
  %v1521 = vadd.s32 %v1425, %v1505
  %v1522 = vadd.s32 %v1426, %v1506
  %v1523 = vadd.s32 %v1427, %v1507
  %v1524 = vadd.s32 %v1428, %v1508
  %v1525 = vadd.s32 %v1429, %v1509
  %v1526 = vadd.s32 %v1430, %v1510
  %v1527 = vadd.s32 %v1431, %v1511
  %v1528 = vadd.s32 %v1432, %v1512
  %v1529 = vadd.s32 %v1433, %v1513
  %v1530 = vadd.s32 %v1434, %v1514
  %v1531 = vadd.s32 %v1435, %v1515
  %v1532 = vadd.s32 %v1436, %v1516
  %v1533 = vadd.s32 %v1437, %v1517
  %v1534 = vadd.s32 %v1438, %v1518
  %v1535 = vadd.s32 %v1439, %v1519
  %1536 = vset.pattern.permute.xlu0 4
  %1537 = vperm.xlu0 %1536, %v28
  %v1538 = vpop.permute.xlu0 %1537
  %1539 = vset.pattern.permute.xlu0 4
  %1540 = vperm.xlu0 %1539, %v29
  %v1541 = vpop.permute.xlu0 %1540
  %1542 = vset.pattern.permute.xlu0 4
  %1543 = vperm.xlu0 %1542, %v30
  %v1544 = vpop.permute.xlu0 %1543
  %1545 = vset.pattern.permute.xlu0 4
  %1546 = vperm.xlu0 %1545, %v31
  %v1547 = vpop.permute.xlu0 %1546
  %1548 = vset.pattern.permute.xlu0 4
  %1549 = vperm.xlu0 %1548, %v32
  %v1550 = vpop.permute.xlu0 %1549
  %1551 = vset.pattern.permute.xlu0 4
  %1552 = vperm.xlu0 %1551, %v33
  %v1553 = vpop.permute.xlu0 %1552
  %1554 = vset.pattern.permute.xlu0 4
  %1555 = vperm.xlu0 %1554, %v34
  %v1556 = vpop.permute.xlu0 %1555
  %1557 = vset.pattern.permute.xlu0 4
  %1558 = vperm.xlu0 %1557, %v35
  %v1559 = vpop.permute.xlu0 %1558
  %1560 = vset.pattern.permute.xlu0 4
  %1561 = vperm.xlu0 %1560, %v36
  %v1562 = vpop.permute.xlu0 %1561
  %1563 = vset.pattern.permute.xlu0 4
  %1564 = vperm.xlu0 %1563, %v37
  %v1565 = vpop.permute.xlu0 %1564
  %1566 = vset.pattern.permute.xlu0 4
  %1567 = vperm.xlu0 %1566, %v38
  %v1568 = vpop.permute.xlu0 %1567
  %1569 = vset.pattern.permute.xlu0 4
  %1570 = vperm.xlu0 %1569, %v39
  %v1571 = vpop.permute.xlu0 %1570
  %1572 = vset.pattern.permute.xlu0 4
  %1573 = vperm.xlu0 %1572, %v40
  %v1574 = vpop.permute.xlu0 %1573
  %1575 = vset.pattern.permute.xlu0 4
  %1576 = vperm.xlu0 %1575, %v41
  %v1577 = vpop.permute.xlu0 %1576
  %1578 = vset.pattern.permute.xlu0 4
  %1579 = vperm.xlu0 %1578, %v42
  %v1580 = vpop.permute.xlu0 %1579
  %1581 = vset.pattern.permute.xlu0 4
  %1582 = vperm.xlu0 %1581, %v43
  %v1583 = vpop.permute.xlu0 %1582
  %vm1584 = vcmp.eq.s32.totalorder %v1538, %v61
  %vm1585 = vcmp.eq.s32.totalorder %v1541, %v61
  %vm1586 = vcmp.eq.s32.totalorder %v1544, %v61
  %vm1587 = vcmp.eq.s32.totalorder %v1547, %v61
  %vm1588 = vcmp.eq.s32.totalorder %v1550, %v61
  %vm1589 = vcmp.eq.s32.totalorder %v1553, %v61
  %vm1590 = vcmp.eq.s32.totalorder %v1556, %v61
  %vm1591 = vcmp.eq.s32.totalorder %v1559, %v61
  %vm1592 = vcmp.eq.s32.totalorder %v1562, %v61
  %vm1593 = vcmp.eq.s32.totalorder %v1565, %v61
  %vm1594 = vcmp.eq.s32.totalorder %v1568, %v61
  %vm1595 = vcmp.eq.s32.totalorder %v1571, %v61
  %vm1596 = vcmp.eq.s32.totalorder %v1574, %v61
  %vm1597 = vcmp.eq.s32.totalorder %v1577, %v61
  %vm1598 = vcmp.eq.s32.totalorder %v1580, %v61
  %vm1599 = vcmp.eq.s32.totalorder %v1583, %v61
  %v1600 = vsel %vm1584, 1, 0
  %v1601 = vsel %vm1585, 1, 0
  %v1602 = vsel %vm1586, 1, 0
  %v1603 = vsel %vm1587, 1, 0
  %v1604 = vsel %vm1588, 1, 0
  %v1605 = vsel %vm1589, 1, 0
  %v1606 = vsel %vm1590, 1, 0
  %v1607 = vsel %vm1591, 1, 0
  %v1608 = vsel %vm1592, 1, 0
  %v1609 = vsel %vm1593, 1, 0
  %v1610 = vsel %vm1594, 1, 0
  %v1611 = vsel %vm1595, 1, 0
  %v1612 = vsel %vm1596, 1, 0
  %v1613 = vsel %vm1597, 1, 0
  %v1614 = vsel %vm1598, 1, 0
  %v1615 = vsel %vm1599, 1, 0
  %v1616 = vadd.s32 %v1520, %v1600
  %v1617 = vadd.s32 %v1521, %v1601
  %v1618 = vadd.s32 %v1522, %v1602
  %v1619 = vadd.s32 %v1523, %v1603
  %v1620 = vadd.s32 %v1524, %v1604
  %v1621 = vadd.s32 %v1525, %v1605
  %v1622 = vadd.s32 %v1526, %v1606
  %v1623 = vadd.s32 %v1527, %v1607
  %v1624 = vadd.s32 %v1528, %v1608
  %v1625 = vadd.s32 %v1529, %v1609
  %v1626 = vadd.s32 %v1530, %v1610
  %v1627 = vadd.s32 %v1531, %v1611
  %v1628 = vadd.s32 %v1532, %v1612
  %v1629 = vadd.s32 %v1533, %v1613
  %v1630 = vadd.s32 %v1534, %v1614
  %v1631 = vadd.s32 %v1535, %v1615
  %1632 = vset.pattern.permute.xlu0 5
  %1633 = vperm.xlu0 %1632, %v28
  %v1634 = vpop.permute.xlu0 %1633
  %1635 = vset.pattern.permute.xlu0 5
  %1636 = vperm.xlu0 %1635, %v29
  %v1637 = vpop.permute.xlu0 %1636
  %1638 = vset.pattern.permute.xlu0 5
  %1639 = vperm.xlu0 %1638, %v30
  %v1640 = vpop.permute.xlu0 %1639
  %1641 = vset.pattern.permute.xlu0 5
  %1642 = vperm.xlu0 %1641, %v31
  %v1643 = vpop.permute.xlu0 %1642
  %1644 = vset.pattern.permute.xlu0 5
  %1645 = vperm.xlu0 %1644, %v32
  %v1646 = vpop.permute.xlu0 %1645
  %1647 = vset.pattern.permute.xlu0 5
  %1648 = vperm.xlu0 %1647, %v33
  %v1649 = vpop.permute.xlu0 %1648
  %1650 = vset.pattern.permute.xlu0 5
  %1651 = vperm.xlu0 %1650, %v34
  %v1652 = vpop.permute.xlu0 %1651
  %1653 = vset.pattern.permute.xlu0 5
  %1654 = vperm.xlu0 %1653, %v35
  %v1655 = vpop.permute.xlu0 %1654
  %1656 = vset.pattern.permute.xlu0 5
  %1657 = vperm.xlu0 %1656, %v36
  %v1658 = vpop.permute.xlu0 %1657
  %1659 = vset.pattern.permute.xlu0 5
  %1660 = vperm.xlu0 %1659, %v37
  %v1661 = vpop.permute.xlu0 %1660
  %1662 = vset.pattern.permute.xlu0 5
  %1663 = vperm.xlu0 %1662, %v38
  %v1664 = vpop.permute.xlu0 %1663
  %1665 = vset.pattern.permute.xlu0 5
  %1666 = vperm.xlu0 %1665, %v39
  %v1667 = vpop.permute.xlu0 %1666
  %1668 = vset.pattern.permute.xlu0 5
  %1669 = vperm.xlu0 %1668, %v40
  %v1670 = vpop.permute.xlu0 %1669
  %1671 = vset.pattern.permute.xlu0 5
  %1672 = vperm.xlu0 %1671, %v41
  %v1673 = vpop.permute.xlu0 %1672
  %1674 = vset.pattern.permute.xlu0 5
  %1675 = vperm.xlu0 %1674, %v42
  %v1676 = vpop.permute.xlu0 %1675
  %1677 = vset.pattern.permute.xlu0 5
  %1678 = vperm.xlu0 %1677, %v43
  %v1679 = vpop.permute.xlu0 %1678
  %vm1680 = vcmp.eq.s32.totalorder %v1634, %v61
  %vm1681 = vcmp.eq.s32.totalorder %v1637, %v61
  %vm1682 = vcmp.eq.s32.totalorder %v1640, %v61
  %vm1683 = vcmp.eq.s32.totalorder %v1643, %v61
  %vm1684 = vcmp.eq.s32.totalorder %v1646, %v61
  %vm1685 = vcmp.eq.s32.totalorder %v1649, %v61
  %vm1686 = vcmp.eq.s32.totalorder %v1652, %v61
  %vm1687 = vcmp.eq.s32.totalorder %v1655, %v61
  %vm1688 = vcmp.eq.s32.totalorder %v1658, %v61
  %vm1689 = vcmp.eq.s32.totalorder %v1661, %v61
  %vm1690 = vcmp.eq.s32.totalorder %v1664, %v61
  %vm1691 = vcmp.eq.s32.totalorder %v1667, %v61
  %vm1692 = vcmp.eq.s32.totalorder %v1670, %v61
  %vm1693 = vcmp.eq.s32.totalorder %v1673, %v61
  %vm1694 = vcmp.eq.s32.totalorder %v1676, %v61
  %vm1695 = vcmp.eq.s32.totalorder %v1679, %v61
  %v1696 = vsel %vm1680, 1, 0
  %v1697 = vsel %vm1681, 1, 0
  %v1698 = vsel %vm1682, 1, 0
  %v1699 = vsel %vm1683, 1, 0
  %v1700 = vsel %vm1684, 1, 0
  %v1701 = vsel %vm1685, 1, 0
  %v1702 = vsel %vm1686, 1, 0
  %v1703 = vsel %vm1687, 1, 0
  %v1704 = vsel %vm1688, 1, 0
  %v1705 = vsel %vm1689, 1, 0
  %v1706 = vsel %vm1690, 1, 0
  %v1707 = vsel %vm1691, 1, 0
  %v1708 = vsel %vm1692, 1, 0
  %v1709 = vsel %vm1693, 1, 0
  %v1710 = vsel %vm1694, 1, 0
  %v1711 = vsel %vm1695, 1, 0
  %v1712 = vadd.s32 %v1616, %v1696
  %v1713 = vadd.s32 %v1617, %v1697
  %v1714 = vadd.s32 %v1618, %v1698
  %v1715 = vadd.s32 %v1619, %v1699
  %v1716 = vadd.s32 %v1620, %v1700
  %v1717 = vadd.s32 %v1621, %v1701
  %v1718 = vadd.s32 %v1622, %v1702
  %v1719 = vadd.s32 %v1623, %v1703
  %v1720 = vadd.s32 %v1624, %v1704
  %v1721 = vadd.s32 %v1625, %v1705
  %v1722 = vadd.s32 %v1626, %v1706
  %v1723 = vadd.s32 %v1627, %v1707
  %v1724 = vadd.s32 %v1628, %v1708
  %v1725 = vadd.s32 %v1629, %v1709
  %v1726 = vadd.s32 %v1630, %v1710
  %v1727 = vadd.s32 %v1631, %v1711
  %1728 = vset.pattern.permute.xlu0 6
  %1729 = vperm.xlu0 %1728, %v28
  %v1730 = vpop.permute.xlu0 %1729
  %1731 = vset.pattern.permute.xlu0 6
  %1732 = vperm.xlu0 %1731, %v29
  %v1733 = vpop.permute.xlu0 %1732
  %1734 = vset.pattern.permute.xlu0 6
  %1735 = vperm.xlu0 %1734, %v30
  %v1736 = vpop.permute.xlu0 %1735
  %1737 = vset.pattern.permute.xlu0 6
  %1738 = vperm.xlu0 %1737, %v31
  %v1739 = vpop.permute.xlu0 %1738
  %1740 = vset.pattern.permute.xlu0 6
  %1741 = vperm.xlu0 %1740, %v32
  %v1742 = vpop.permute.xlu0 %1741
  %1743 = vset.pattern.permute.xlu0 6
  %1744 = vperm.xlu0 %1743, %v33
  %v1745 = vpop.permute.xlu0 %1744
  %1746 = vset.pattern.permute.xlu0 6
  %1747 = vperm.xlu0 %1746, %v34
  %v1748 = vpop.permute.xlu0 %1747
  %1749 = vset.pattern.permute.xlu0 6
  %1750 = vperm.xlu0 %1749, %v35
  %v1751 = vpop.permute.xlu0 %1750
  %1752 = vset.pattern.permute.xlu0 6
  %1753 = vperm.xlu0 %1752, %v36
  %v1754 = vpop.permute.xlu0 %1753
  %1755 = vset.pattern.permute.xlu0 6
  %1756 = vperm.xlu0 %1755, %v37
  %v1757 = vpop.permute.xlu0 %1756
  %1758 = vset.pattern.permute.xlu0 6
  %1759 = vperm.xlu0 %1758, %v38
  %v1760 = vpop.permute.xlu0 %1759
  %1761 = vset.pattern.permute.xlu0 6
  %1762 = vperm.xlu0 %1761, %v39
  %v1763 = vpop.permute.xlu0 %1762
  %1764 = vset.pattern.permute.xlu0 6
  %1765 = vperm.xlu0 %1764, %v40
  %v1766 = vpop.permute.xlu0 %1765
  %1767 = vset.pattern.permute.xlu0 6
  %1768 = vperm.xlu0 %1767, %v41
  %v1769 = vpop.permute.xlu0 %1768
  %1770 = vset.pattern.permute.xlu0 6
  %1771 = vperm.xlu0 %1770, %v42
  %v1772 = vpop.permute.xlu0 %1771
  %1773 = vset.pattern.permute.xlu0 6
  %1774 = vperm.xlu0 %1773, %v43
  %v1775 = vpop.permute.xlu0 %1774
  %vm1776 = vcmp.eq.s32.totalorder %v1730, %v61
  %vm1777 = vcmp.eq.s32.totalorder %v1733, %v61
  %vm1778 = vcmp.eq.s32.totalorder %v1736, %v61
  %vm1779 = vcmp.eq.s32.totalorder %v1739, %v61
  %vm1780 = vcmp.eq.s32.totalorder %v1742, %v61
  %vm1781 = vcmp.eq.s32.totalorder %v1745, %v61
  %vm1782 = vcmp.eq.s32.totalorder %v1748, %v61
  %vm1783 = vcmp.eq.s32.totalorder %v1751, %v61
  %vm1784 = vcmp.eq.s32.totalorder %v1754, %v61
  %vm1785 = vcmp.eq.s32.totalorder %v1757, %v61
  %vm1786 = vcmp.eq.s32.totalorder %v1760, %v61
  %vm1787 = vcmp.eq.s32.totalorder %v1763, %v61
  %vm1788 = vcmp.eq.s32.totalorder %v1766, %v61
  %vm1789 = vcmp.eq.s32.totalorder %v1769, %v61
  %vm1790 = vcmp.eq.s32.totalorder %v1772, %v61
  %vm1791 = vcmp.eq.s32.totalorder %v1775, %v61
  %v1792 = vsel %vm1776, 1, 0
  %v1793 = vsel %vm1777, 1, 0
  %v1794 = vsel %vm1778, 1, 0
  %v1795 = vsel %vm1779, 1, 0
  %v1796 = vsel %vm1780, 1, 0
  %v1797 = vsel %vm1781, 1, 0
  %v1798 = vsel %vm1782, 1, 0
  %v1799 = vsel %vm1783, 1, 0
  %v1800 = vsel %vm1784, 1, 0
  %v1801 = vsel %vm1785, 1, 0
  %v1802 = vsel %vm1786, 1, 0
  %v1803 = vsel %vm1787, 1, 0
  %v1804 = vsel %vm1788, 1, 0
  %v1805 = vsel %vm1789, 1, 0
  %v1806 = vsel %vm1790, 1, 0
  %v1807 = vsel %vm1791, 1, 0
  %v1808 = vadd.s32 %v1712, %v1792
  %v1809 = vadd.s32 %v1713, %v1793
  %v1810 = vadd.s32 %v1714, %v1794
  %v1811 = vadd.s32 %v1715, %v1795
  %v1812 = vadd.s32 %v1716, %v1796
  %v1813 = vadd.s32 %v1717, %v1797
  %v1814 = vadd.s32 %v1718, %v1798
  %v1815 = vadd.s32 %v1719, %v1799
  %v1816 = vadd.s32 %v1720, %v1800
  %v1817 = vadd.s32 %v1721, %v1801
  %v1818 = vadd.s32 %v1722, %v1802
  %v1819 = vadd.s32 %v1723, %v1803
  %v1820 = vadd.s32 %v1724, %v1804
  %v1821 = vadd.s32 %v1725, %v1805
  %v1822 = vadd.s32 %v1726, %v1806
  %v1823 = vadd.s32 %v1727, %v1807
  %1824 = vset.pattern.permute.xlu0 7
  %1825 = vperm.xlu0 %1824, %v28
  %v1826 = vpop.permute.xlu0 %1825
  %1827 = vset.pattern.permute.xlu0 7
  %1828 = vperm.xlu0 %1827, %v29
  %v1829 = vpop.permute.xlu0 %1828
  %1830 = vset.pattern.permute.xlu0 7
  %1831 = vperm.xlu0 %1830, %v30
  %v1832 = vpop.permute.xlu0 %1831
  %1833 = vset.pattern.permute.xlu0 7
  %1834 = vperm.xlu0 %1833, %v31
  %v1835 = vpop.permute.xlu0 %1834
  %1836 = vset.pattern.permute.xlu0 7
  %1837 = vperm.xlu0 %1836, %v32
  %v1838 = vpop.permute.xlu0 %1837
  %1839 = vset.pattern.permute.xlu0 7
  %1840 = vperm.xlu0 %1839, %v33
  %v1841 = vpop.permute.xlu0 %1840
  %1842 = vset.pattern.permute.xlu0 7
  %1843 = vperm.xlu0 %1842, %v34
  %v1844 = vpop.permute.xlu0 %1843
  %1845 = vset.pattern.permute.xlu0 7
  %1846 = vperm.xlu0 %1845, %v35
  %v1847 = vpop.permute.xlu0 %1846
  %1848 = vset.pattern.permute.xlu0 7
  %1849 = vperm.xlu0 %1848, %v36
  %v1850 = vpop.permute.xlu0 %1849
  %1851 = vset.pattern.permute.xlu0 7
  %1852 = vperm.xlu0 %1851, %v37
  %v1853 = vpop.permute.xlu0 %1852
  %1854 = vset.pattern.permute.xlu0 7
  %1855 = vperm.xlu0 %1854, %v38
  %v1856 = vpop.permute.xlu0 %1855
  %1857 = vset.pattern.permute.xlu0 7
  %1858 = vperm.xlu0 %1857, %v39
  %v1859 = vpop.permute.xlu0 %1858
  %1860 = vset.pattern.permute.xlu0 7
  %1861 = vperm.xlu0 %1860, %v40
  %v1862 = vpop.permute.xlu0 %1861
  %1863 = vset.pattern.permute.xlu0 7
  %1864 = vperm.xlu0 %1863, %v41
  %v1865 = vpop.permute.xlu0 %1864
  %1866 = vset.pattern.permute.xlu0 7
  %1867 = vperm.xlu0 %1866, %v42
  %v1868 = vpop.permute.xlu0 %1867
  %1869 = vset.pattern.permute.xlu0 7
  %1870 = vperm.xlu0 %1869, %v43
  %v1871 = vpop.permute.xlu0 %1870
  %vm1872 = vcmp.eq.s32.totalorder %v1826, %v61
  %vm1873 = vcmp.eq.s32.totalorder %v1829, %v61
  %vm1874 = vcmp.eq.s32.totalorder %v1832, %v61
  %vm1875 = vcmp.eq.s32.totalorder %v1835, %v61
  %vm1876 = vcmp.eq.s32.totalorder %v1838, %v61
  %vm1877 = vcmp.eq.s32.totalorder %v1841, %v61
  %vm1878 = vcmp.eq.s32.totalorder %v1844, %v61
  %vm1879 = vcmp.eq.s32.totalorder %v1847, %v61
  %vm1880 = vcmp.eq.s32.totalorder %v1850, %v61
  %vm1881 = vcmp.eq.s32.totalorder %v1853, %v61
  %vm1882 = vcmp.eq.s32.totalorder %v1856, %v61
  %vm1883 = vcmp.eq.s32.totalorder %v1859, %v61
  %vm1884 = vcmp.eq.s32.totalorder %v1862, %v61
  %vm1885 = vcmp.eq.s32.totalorder %v1865, %v61
  %vm1886 = vcmp.eq.s32.totalorder %v1868, %v61
  %vm1887 = vcmp.eq.s32.totalorder %v1871, %v61
  %v1888 = vsel %vm1872, 1, 0
  %v1889 = vsel %vm1873, 1, 0
  %v1890 = vsel %vm1874, 1, 0
  %v1891 = vsel %vm1875, 1, 0
  %v1892 = vsel %vm1876, 1, 0
  %v1893 = vsel %vm1877, 1, 0
  %v1894 = vsel %vm1878, 1, 0
  %v1895 = vsel %vm1879, 1, 0
  %v1896 = vsel %vm1880, 1, 0
  %v1897 = vsel %vm1881, 1, 0
  %v1898 = vsel %vm1882, 1, 0
  %v1899 = vsel %vm1883, 1, 0
  %v1900 = vsel %vm1884, 1, 0
  %v1901 = vsel %vm1885, 1, 0
  %v1902 = vsel %vm1886, 1, 0
  %v1903 = vsel %vm1887, 1, 0
  %v1904 = vadd.s32 %v1808, %v1888
  %v1905 = vadd.s32 %v1809, %v1889
  %v1906 = vadd.s32 %v1810, %v1890
  %v1907 = vadd.s32 %v1811, %v1891
  %v1908 = vadd.s32 %v1812, %v1892
  %v1909 = vadd.s32 %v1813, %v1893
  %v1910 = vadd.s32 %v1814, %v1894
  %v1911 = vadd.s32 %v1815, %v1895
  %v1912 = vadd.s32 %v1816, %v1896
  %v1913 = vadd.s32 %v1817, %v1897
  %v1914 = vadd.s32 %v1818, %v1898
  %v1915 = vadd.s32 %v1819, %v1899
  %v1916 = vadd.s32 %v1820, %v1900
  %v1917 = vadd.s32 %v1821, %v1901
  %v1918 = vadd.s32 %v1822, %v1902
  %v1919 = vadd.s32 %v1823, %v1903
  %1920 = vset.pattern.permute.xlu0 8
  %1921 = vperm.xlu0 %1920, %v28
  %v1922 = vpop.permute.xlu0 %1921
  %1923 = vset.pattern.permute.xlu0 8
  %1924 = vperm.xlu0 %1923, %v29
  %v1925 = vpop.permute.xlu0 %1924
  %1926 = vset.pattern.permute.xlu0 8
  %1927 = vperm.xlu0 %1926, %v30
  %v1928 = vpop.permute.xlu0 %1927
  %1929 = vset.pattern.permute.xlu0 8
  %1930 = vperm.xlu0 %1929, %v31
  %v1931 = vpop.permute.xlu0 %1930
  %1932 = vset.pattern.permute.xlu0 8
  %1933 = vperm.xlu0 %1932, %v32
  %v1934 = vpop.permute.xlu0 %1933
  %1935 = vset.pattern.permute.xlu0 8
  %1936 = vperm.xlu0 %1935, %v33
  %v1937 = vpop.permute.xlu0 %1936
  %1938 = vset.pattern.permute.xlu0 8
  %1939 = vperm.xlu0 %1938, %v34
  %v1940 = vpop.permute.xlu0 %1939
  %1941 = vset.pattern.permute.xlu0 8
  %1942 = vperm.xlu0 %1941, %v35
  %v1943 = vpop.permute.xlu0 %1942
  %1944 = vset.pattern.permute.xlu0 8
  %1945 = vperm.xlu0 %1944, %v36
  %v1946 = vpop.permute.xlu0 %1945
  %1947 = vset.pattern.permute.xlu0 8
  %1948 = vperm.xlu0 %1947, %v37
  %v1949 = vpop.permute.xlu0 %1948
  %1950 = vset.pattern.permute.xlu0 8
  %1951 = vperm.xlu0 %1950, %v38
  %v1952 = vpop.permute.xlu0 %1951
  %1953 = vset.pattern.permute.xlu0 8
  %1954 = vperm.xlu0 %1953, %v39
  %v1955 = vpop.permute.xlu0 %1954
  %1956 = vset.pattern.permute.xlu0 8
  %1957 = vperm.xlu0 %1956, %v40
  %v1958 = vpop.permute.xlu0 %1957
  %1959 = vset.pattern.permute.xlu0 8
  %1960 = vperm.xlu0 %1959, %v41
  %v1961 = vpop.permute.xlu0 %1960
  %1962 = vset.pattern.permute.xlu0 8
  %1963 = vperm.xlu0 %1962, %v42
  %v1964 = vpop.permute.xlu0 %1963
  %1965 = vset.pattern.permute.xlu0 8
  %1966 = vperm.xlu0 %1965, %v43
  %v1967 = vpop.permute.xlu0 %1966
  %vm1968 = vcmp.eq.s32.totalorder %v1922, %v61
  %vm1969 = vcmp.eq.s32.totalorder %v1925, %v61
  %vm1970 = vcmp.eq.s32.totalorder %v1928, %v61
  %vm1971 = vcmp.eq.s32.totalorder %v1931, %v61
  %vm1972 = vcmp.eq.s32.totalorder %v1934, %v61
  %vm1973 = vcmp.eq.s32.totalorder %v1937, %v61
  %vm1974 = vcmp.eq.s32.totalorder %v1940, %v61
  %vm1975 = vcmp.eq.s32.totalorder %v1943, %v61
  %vm1976 = vcmp.eq.s32.totalorder %v1946, %v61
  %vm1977 = vcmp.eq.s32.totalorder %v1949, %v61
  %vm1978 = vcmp.eq.s32.totalorder %v1952, %v61
  %vm1979 = vcmp.eq.s32.totalorder %v1955, %v61
  %vm1980 = vcmp.eq.s32.totalorder %v1958, %v61
  %vm1981 = vcmp.eq.s32.totalorder %v1961, %v61
  %vm1982 = vcmp.eq.s32.totalorder %v1964, %v61
  %vm1983 = vcmp.eq.s32.totalorder %v1967, %v61
  %v1984 = vsel %vm1968, 1, 0
  %v1985 = vsel %vm1969, 1, 0
  %v1986 = vsel %vm1970, 1, 0
  %v1987 = vsel %vm1971, 1, 0
  %v1988 = vsel %vm1972, 1, 0
  %v1989 = vsel %vm1973, 1, 0
  %v1990 = vsel %vm1974, 1, 0
  %v1991 = vsel %vm1975, 1, 0
  %v1992 = vsel %vm1976, 1, 0
  %v1993 = vsel %vm1977, 1, 0
  %v1994 = vsel %vm1978, 1, 0
  %v1995 = vsel %vm1979, 1, 0
  %v1996 = vsel %vm1980, 1, 0
  %v1997 = vsel %vm1981, 1, 0
  %v1998 = vsel %vm1982, 1, 0
  %v1999 = vsel %vm1983, 1, 0
  %v2000 = vadd.s32 %v1904, %v1984
  %v2001 = vadd.s32 %v1905, %v1985
  %v2002 = vadd.s32 %v1906, %v1986
  %v2003 = vadd.s32 %v1907, %v1987
  %v2004 = vadd.s32 %v1908, %v1988
  %v2005 = vadd.s32 %v1909, %v1989
  %v2006 = vadd.s32 %v1910, %v1990
  %v2007 = vadd.s32 %v1911, %v1991
  %v2008 = vadd.s32 %v1912, %v1992
  %v2009 = vadd.s32 %v1913, %v1993
  %v2010 = vadd.s32 %v1914, %v1994
  %v2011 = vadd.s32 %v1915, %v1995
  %v2012 = vadd.s32 %v1916, %v1996
  %v2013 = vadd.s32 %v1917, %v1997
  %v2014 = vadd.s32 %v1918, %v1998
  %v2015 = vadd.s32 %v1919, %v1999
  %2016 = vset.pattern.permute.xlu0 9
  %2017 = vperm.xlu0 %2016, %v28
  %v2018 = vpop.permute.xlu0 %2017
  %2019 = vset.pattern.permute.xlu0 9
  %2020 = vperm.xlu0 %2019, %v29
  %v2021 = vpop.permute.xlu0 %2020
  %2022 = vset.pattern.permute.xlu0 9
  %2023 = vperm.xlu0 %2022, %v30
  %v2024 = vpop.permute.xlu0 %2023
  %2025 = vset.pattern.permute.xlu0 9
  %2026 = vperm.xlu0 %2025, %v31
  %v2027 = vpop.permute.xlu0 %2026
  %2028 = vset.pattern.permute.xlu0 9
  %2029 = vperm.xlu0 %2028, %v32
  %v2030 = vpop.permute.xlu0 %2029
  %2031 = vset.pattern.permute.xlu0 9
  %2032 = vperm.xlu0 %2031, %v33
  %v2033 = vpop.permute.xlu0 %2032
  %2034 = vset.pattern.permute.xlu0 9
  %2035 = vperm.xlu0 %2034, %v34
  %v2036 = vpop.permute.xlu0 %2035
  %2037 = vset.pattern.permute.xlu0 9
  %2038 = vperm.xlu0 %2037, %v35
  %v2039 = vpop.permute.xlu0 %2038
  %2040 = vset.pattern.permute.xlu0 9
  %2041 = vperm.xlu0 %2040, %v36
  %v2042 = vpop.permute.xlu0 %2041
  %2043 = vset.pattern.permute.xlu0 9
  %2044 = vperm.xlu0 %2043, %v37
  %v2045 = vpop.permute.xlu0 %2044
  %2046 = vset.pattern.permute.xlu0 9
  %2047 = vperm.xlu0 %2046, %v38
  %v2048 = vpop.permute.xlu0 %2047
  %2049 = vset.pattern.permute.xlu0 9
  %2050 = vperm.xlu0 %2049, %v39
  %v2051 = vpop.permute.xlu0 %2050
  %2052 = vset.pattern.permute.xlu0 9
  %2053 = vperm.xlu0 %2052, %v40
  %v2054 = vpop.permute.xlu0 %2053
  %2055 = vset.pattern.permute.xlu0 9
  %2056 = vperm.xlu0 %2055, %v41
  %v2057 = vpop.permute.xlu0 %2056
  %2058 = vset.pattern.permute.xlu0 9
  %2059 = vperm.xlu0 %2058, %v42
  %v2060 = vpop.permute.xlu0 %2059
  %2061 = vset.pattern.permute.xlu0 9
  %2062 = vperm.xlu0 %2061, %v43
  %v2063 = vpop.permute.xlu0 %2062
  %vm2064 = vcmp.eq.s32.totalorder %v2018, %v61
  %vm2065 = vcmp.eq.s32.totalorder %v2021, %v61
  %vm2066 = vcmp.eq.s32.totalorder %v2024, %v61
  %vm2067 = vcmp.eq.s32.totalorder %v2027, %v61
  %vm2068 = vcmp.eq.s32.totalorder %v2030, %v61
  %vm2069 = vcmp.eq.s32.totalorder %v2033, %v61
  %vm2070 = vcmp.eq.s32.totalorder %v2036, %v61
  %vm2071 = vcmp.eq.s32.totalorder %v2039, %v61
  %vm2072 = vcmp.eq.s32.totalorder %v2042, %v61
  %vm2073 = vcmp.eq.s32.totalorder %v2045, %v61
  %vm2074 = vcmp.eq.s32.totalorder %v2048, %v61
  %vm2075 = vcmp.eq.s32.totalorder %v2051, %v61
  %vm2076 = vcmp.eq.s32.totalorder %v2054, %v61
  %vm2077 = vcmp.eq.s32.totalorder %v2057, %v61
  %vm2078 = vcmp.eq.s32.totalorder %v2060, %v61
  %vm2079 = vcmp.eq.s32.totalorder %v2063, %v61
  %v2080 = vsel %vm2064, 1, 0
  %v2081 = vsel %vm2065, 1, 0
  %v2082 = vsel %vm2066, 1, 0
  %v2083 = vsel %vm2067, 1, 0
  %v2084 = vsel %vm2068, 1, 0
  %v2085 = vsel %vm2069, 1, 0
  %v2086 = vsel %vm2070, 1, 0
  %v2087 = vsel %vm2071, 1, 0
  %v2088 = vsel %vm2072, 1, 0
  %v2089 = vsel %vm2073, 1, 0
  %v2090 = vsel %vm2074, 1, 0
  %v2091 = vsel %vm2075, 1, 0
  %v2092 = vsel %vm2076, 1, 0
  %v2093 = vsel %vm2077, 1, 0
  %v2094 = vsel %vm2078, 1, 0
  %v2095 = vsel %vm2079, 1, 0
  %v2096 = vadd.s32 %v2000, %v2080
  %v2097 = vadd.s32 %v2001, %v2081
  %v2098 = vadd.s32 %v2002, %v2082
  %v2099 = vadd.s32 %v2003, %v2083
  %v2100 = vadd.s32 %v2004, %v2084
  %v2101 = vadd.s32 %v2005, %v2085
  %v2102 = vadd.s32 %v2006, %v2086
  %v2103 = vadd.s32 %v2007, %v2087
  %v2104 = vadd.s32 %v2008, %v2088
  %v2105 = vadd.s32 %v2009, %v2089
  %v2106 = vadd.s32 %v2010, %v2090
  %v2107 = vadd.s32 %v2011, %v2091
  %v2108 = vadd.s32 %v2012, %v2092
  %v2109 = vadd.s32 %v2013, %v2093
  %v2110 = vadd.s32 %v2014, %v2094
  %v2111 = vadd.s32 %v2015, %v2095
  %v2112 = vcvt.s32.f32 %v2096
  %v2113 = vcvt.s32.f32 %v2097
  %v2114 = vcvt.s32.f32 %v2098
  %v2115 = vcvt.s32.f32 %v2099
  %v2116 = vcvt.s32.f32 %v2100
  %v2117 = vcvt.s32.f32 %v2101
  %v2118 = vcvt.s32.f32 %v2102
  %v2119 = vcvt.s32.f32 %v2103
  %v2120 = vcvt.s32.f32 %v2104
  %v2121 = vcvt.s32.f32 %v2105
  %v2122 = vcvt.s32.f32 %v2106
  %v2123 = vcvt.s32.f32 %v2107
  %v2124 = vcvt.s32.f32 %v2108
  %v2125 = vcvt.s32.f32 %v2109
  %v2126 = vcvt.s32.f32 %v2110
  %v2127 = vcvt.s32.f32 %v2111
  %v2128 = vpack.c.bf16 %v2113, %v2112
  %v2129 = vpack.c.bf16 %v2115, %v2114
  %v2130 = vpack.c.bf16 %v2117, %v2116
  %v2131 = vpack.c.bf16 %v2119, %v2118
  %v2132 = vpack.c.bf16 %v2121, %v2120
  %v2133 = vpack.c.bf16 %v2123, %v2122
  %v2134 = vpack.c.bf16 %v2125, %v2124
  %v2135 = vpack.c.bf16 %v2127, %v2126
  %s2136 = scalar_lea.vmem %s1, 16
  %v2137 = vld [vmem:[%s2136] sm:$0xf]
  %v2138 = vld [vmem:[%s2136 + $0x4] sm:$0xf]
  %v2139 = vld [vmem:[%s2136 + $0x8] sm:$0xf]
  %v2140 = vld [vmem:[%s2136 + $0xc] sm:$0xf]
  %v2145 = vunpack.c.l.b16 %v2137
  %v2146 = vunpack.c.l.b16 %v2138
  %v2147 = vunpack.c.l.b16 %v2139
  %v2148 = vunpack.c.l.b16 %v2140
  %v2149 = vpack.c.b16 %v2146, %v2145
  %v2150 = vpack.c.b16 %v2148, %v2147
  %v2154 = vsel %vm1046, %v2128, 0
  %v2157 = vsel %vm1046, %v2129, 0
  %v2160 = vsel %vm1046, %v2130, 0
  %v2163 = vsel %vm1046, %v2131, 0
  %v2166 = vsel %vm1046, %v2132, 0
  %v2169 = vsel %vm1046, %v2133, 0
  %v2172 = vsel %vm1046, %v2134, 0
  %v2175 = vsel %vm1046, %v2135, 0
  %2177 = vmatprep.subr.bf16.mxu0 0
  %2178 = vmatpush1.bf16.msra.mxu0 0
  %2179 = vmatprep.subr.bf16.mxu0 0
  %2180 = vmatpush1.bf16.msra.mxu0 0
  %2181 = vmatprep.subr.bf16.mxu0 0
  %2182 = vmatpush1.bf16.msra.mxu0 0
  %2183 = vmatprep.subr.bf16.mxu0 0
  %2184 = vmatpush1.bf16.msra.mxu0 0
  %2185 = vmatprep.subr.bf16.mxu0 0
  %2186 = vmatpush1.bf16.msra.mxu0 0
  %2187 = vmatprep.subr.bf16.mxu0 0
  %2188 = vmatpush1.bf16.msra.mxu0 0
  %2189 = vmatprep.subr.bf16.mxu0 0
  %2190 = vmatpush1.bf16.msra.mxu0 %v2150
  %2191 = vmatprep.subr.bf16.mxu0 0
  %2192 = vmatpush1.bf16.msra.mxu0 %v2149
  %2193 = vmatprep.subr.bf16.mxu0 0
  %2194 = vmatpush2.bf16.msra.mxu0 0
  %2195 = vmatprep.subr.bf16.mxu0 0
  %2196 = vmatpush2.bf16.msra.mxu0 0
  %2197 = vmatprep.subr.bf16.mxu0 0
  %2198 = vmatpush2.bf16.msra.mxu0 0
  %2199 = vmatprep.subr.bf16.mxu0 0
  %2200 = vmatpush2.bf16.msra.mxu0 0
  %2201 = vmatprep.subr.bf16.mxu0 0
  %2202 = vmatpush2.bf16.msra.mxu0 0
  %2203 = vmatprep.subr.bf16.mxu0 0
  %2204 = vmatpush2.bf16.msra.mxu0 0
  %2205 = vmatprep.subr.bf16.mxu0 0
  %2206 = vmatpush2.bf16.msra.mxu0 0
  %2207 = vmatprep.subr.bf16.mxu0 0
  %2208 = vmatpush2.bf16.msra.mxu0 0
  %2209 = vmatprep.mubr.bf16.mxu0 0
  %2210 = vmatmul.mubr.bf16.gmra.mxu0 %v2154
  %v2211 = vpop.f32.mrf.mxu0
  %v2212 = vadd.f32 0.0, %v2211
  %v2213 = vpop.f32.mrf.mxu0
  %v2214 = vpop.f32.mrf.mxu0
  %v2215 = vadd.f32 0.0, %v2214
  %v2216 = vpop.f32.mrf.mxu0
  %2217 = vmatprep.mubr.bf16.mxu0 0
  %2218 = vmatmul.mubr.bf16.gmra.mxu0 %v2157
  %v2219 = vpop.f32.mrf.mxu0
  %v2220 = vadd.f32 0.0, %v2219
  %v2221 = vpop.f32.mrf.mxu0
  %v2222 = vpop.f32.mrf.mxu0
  %v2223 = vadd.f32 0.0, %v2222
  %v2224 = vpop.f32.mrf.mxu0
  %2225 = vmatprep.mubr.bf16.mxu0 0
  %2226 = vmatmul.mubr.bf16.gmra.mxu0 %v2160
  %v2227 = vpop.f32.mrf.mxu0
  %v2228 = vadd.f32 0.0, %v2227
  %v2229 = vpop.f32.mrf.mxu0
  %v2230 = vpop.f32.mrf.mxu0
  %v2231 = vadd.f32 0.0, %v2230
  %v2232 = vpop.f32.mrf.mxu0
  %2233 = vmatprep.mubr.bf16.mxu0 0
  %2234 = vmatmul.mubr.bf16.gmra.mxu0 %v2163
  %v2235 = vpop.f32.mrf.mxu0
  %v2236 = vadd.f32 0.0, %v2235
  %v2237 = vpop.f32.mrf.mxu0
  %v2238 = vpop.f32.mrf.mxu0
  %v2239 = vadd.f32 0.0, %v2238
  %v2240 = vpop.f32.mrf.mxu0
  %2241 = vmatprep.mubr.bf16.mxu0 0
  %2242 = vmatmul.mubr.bf16.gmra.mxu0 %v2166
  %v2243 = vpop.f32.mrf.mxu0
  %v2244 = vadd.f32 0.0, %v2243
  %v2245 = vpop.f32.mrf.mxu0
  %v2246 = vpop.f32.mrf.mxu0
  %v2247 = vadd.f32 0.0, %v2246
  %v2248 = vpop.f32.mrf.mxu0
  %2249 = vmatprep.mubr.bf16.mxu0 0
  %2250 = vmatmul.mubr.bf16.gmra.mxu0 %v2169
  %v2251 = vpop.f32.mrf.mxu0
  %v2252 = vadd.f32 0.0, %v2251
  %v2253 = vpop.f32.mrf.mxu0
  %v2254 = vpop.f32.mrf.mxu0
  %v2255 = vadd.f32 0.0, %v2254
  %v2256 = vpop.f32.mrf.mxu0
  %2257 = vmatprep.mubr.bf16.mxu0 0
  %2258 = vmatmul.mubr.bf16.gmra.mxu0 %v2172
  %v2259 = vpop.f32.mrf.mxu0
  %v2260 = vadd.f32 0.0, %v2259
  %v2261 = vpop.f32.mrf.mxu0
  %v2262 = vpop.f32.mrf.mxu0
  %v2263 = vadd.f32 0.0, %v2262
  %v2264 = vpop.f32.mrf.mxu0
  %2265 = vmatprep.mubr.bf16.mxu0 0
  %2266 = vmatmul.mubr.bf16.gmra.mxu0 %v2175
  %v2267 = vpop.f32.mrf.mxu0
  %v2268 = vadd.f32 0.0, %v2267
  %v2269 = vpop.f32.mrf.mxu0
  %v2270 = vpop.f32.mrf.mxu0
  %v2271 = vadd.f32 0.0, %v2270
  %v2272 = vpop.f32.mrf.mxu0
  %2273 = vdwg.mxu0
  %2274 = vset.pattern.permute.xlu0 0
  %2275 = vperm.xlu0 %2274, %v44
  %v2276 = vpop.permute.xlu0 %2275
  %2277 = vset.pattern.permute.xlu0 0
  %2278 = vperm.xlu0 %2277, %v45
  %v2279 = vpop.permute.xlu0 %2278
  %2280 = vset.pattern.permute.xlu0 0
  %2281 = vperm.xlu0 %2280, %v46
  %v2282 = vpop.permute.xlu0 %2281
  %2283 = vset.pattern.permute.xlu0 0
  %2284 = vperm.xlu0 %2283, %v47
  %v2285 = vpop.permute.xlu0 %2284
  %2286 = vset.pattern.permute.xlu0 0
  %2287 = vperm.xlu0 %2286, %v48
  %v2288 = vpop.permute.xlu0 %2287
  %2289 = vset.pattern.permute.xlu0 0
  %2290 = vperm.xlu0 %2289, %v49
  %v2291 = vpop.permute.xlu0 %2290
  %2292 = vset.pattern.permute.xlu0 0
  %2293 = vperm.xlu0 %2292, %v50
  %v2294 = vpop.permute.xlu0 %2293
  %2295 = vset.pattern.permute.xlu0 0
  %2296 = vperm.xlu0 %2295, %v51
  %v2297 = vpop.permute.xlu0 %2296
  %2298 = vset.pattern.permute.xlu0 0
  %2299 = vperm.xlu0 %2298, %v52
  %v2300 = vpop.permute.xlu0 %2299
  %2301 = vset.pattern.permute.xlu0 0
  %2302 = vperm.xlu0 %2301, %v53
  %v2303 = vpop.permute.xlu0 %2302
  %2304 = vset.pattern.permute.xlu0 0
  %2305 = vperm.xlu0 %2304, %v54
  %v2306 = vpop.permute.xlu0 %2305
  %2307 = vset.pattern.permute.xlu0 0
  %2308 = vperm.xlu0 %2307, %v55
  %v2309 = vpop.permute.xlu0 %2308
  %2310 = vset.pattern.permute.xlu0 0
  %2311 = vperm.xlu0 %2310, %v56
  %v2312 = vpop.permute.xlu0 %2311
  %2313 = vset.pattern.permute.xlu0 0
  %2314 = vperm.xlu0 %2313, %v57
  %v2315 = vpop.permute.xlu0 %2314
  %2316 = vset.pattern.permute.xlu0 0
  %2317 = vperm.xlu0 %2316, %v58
  %v2318 = vpop.permute.xlu0 %2317
  %2319 = vset.pattern.permute.xlu0 0
  %2320 = vperm.xlu0 %2319, %v59
  %v2321 = vpop.permute.xlu0 %2320
  %vm2322 = vcmp.eq.s32.totalorder %v2276, %v61
  %vm2323 = vcmp.eq.s32.totalorder %v2279, %v61
  %vm2324 = vcmp.eq.s32.totalorder %v2282, %v61
  %vm2325 = vcmp.eq.s32.totalorder %v2285, %v61
  %vm2326 = vcmp.eq.s32.totalorder %v2288, %v61
  %vm2327 = vcmp.eq.s32.totalorder %v2291, %v61
  %vm2328 = vcmp.eq.s32.totalorder %v2294, %v61
  %vm2329 = vcmp.eq.s32.totalorder %v2297, %v61
  %vm2330 = vcmp.eq.s32.totalorder %v2300, %v61
  %vm2331 = vcmp.eq.s32.totalorder %v2303, %v61
  %vm2332 = vcmp.eq.s32.totalorder %v2306, %v61
  %vm2333 = vcmp.eq.s32.totalorder %v2309, %v61
  %vm2334 = vcmp.eq.s32.totalorder %v2312, %v61
  %vm2335 = vcmp.eq.s32.totalorder %v2315, %v61
  %vm2336 = vcmp.eq.s32.totalorder %v2318, %v61
  %vm2337 = vcmp.eq.s32.totalorder %v2321, %v61
  %v2338 = vsel %vm2322, 1, 0
  %v2339 = vsel %vm2323, 1, 0
  %v2340 = vsel %vm2324, 1, 0
  %v2341 = vsel %vm2325, 1, 0
  %v2342 = vsel %vm2326, 1, 0
  %v2343 = vsel %vm2327, 1, 0
  %v2344 = vsel %vm2328, 1, 0
  %v2345 = vsel %vm2329, 1, 0
  %v2346 = vsel %vm2330, 1, 0
  %v2347 = vsel %vm2331, 1, 0
  %v2348 = vsel %vm2332, 1, 0
  %v2349 = vsel %vm2333, 1, 0
  %v2350 = vsel %vm2334, 1, 0
  %v2351 = vsel %vm2335, 1, 0
  %v2352 = vsel %vm2336, 1, 0
  %v2353 = vsel %vm2337, 1, 0
  %2354 = vset.pattern.permute.xlu0 1
  %2355 = vperm.xlu0 %2354, %v44
  %v2356 = vpop.permute.xlu0 %2355
  %2357 = vset.pattern.permute.xlu0 1
  %2358 = vperm.xlu0 %2357, %v45
  %v2359 = vpop.permute.xlu0 %2358
  %2360 = vset.pattern.permute.xlu0 1
  %2361 = vperm.xlu0 %2360, %v46
  %v2362 = vpop.permute.xlu0 %2361
  %2363 = vset.pattern.permute.xlu0 1
  %2364 = vperm.xlu0 %2363, %v47
  %v2365 = vpop.permute.xlu0 %2364
  %2366 = vset.pattern.permute.xlu0 1
  %2367 = vperm.xlu0 %2366, %v48
  %v2368 = vpop.permute.xlu0 %2367
  %2369 = vset.pattern.permute.xlu0 1
  %2370 = vperm.xlu0 %2369, %v49
  %v2371 = vpop.permute.xlu0 %2370
  %2372 = vset.pattern.permute.xlu0 1
  %2373 = vperm.xlu0 %2372, %v50
  %v2374 = vpop.permute.xlu0 %2373
  %2375 = vset.pattern.permute.xlu0 1
  %2376 = vperm.xlu0 %2375, %v51
  %v2377 = vpop.permute.xlu0 %2376
  %2378 = vset.pattern.permute.xlu0 1
  %2379 = vperm.xlu0 %2378, %v52
  %v2380 = vpop.permute.xlu0 %2379
  %2381 = vset.pattern.permute.xlu0 1
  %2382 = vperm.xlu0 %2381, %v53
  %v2383 = vpop.permute.xlu0 %2382
  %2384 = vset.pattern.permute.xlu0 1
  %2385 = vperm.xlu0 %2384, %v54
  %v2386 = vpop.permute.xlu0 %2385
  %2387 = vset.pattern.permute.xlu0 1
  %2388 = vperm.xlu0 %2387, %v55
  %v2389 = vpop.permute.xlu0 %2388
  %2390 = vset.pattern.permute.xlu0 1
  %2391 = vperm.xlu0 %2390, %v56
  %v2392 = vpop.permute.xlu0 %2391
  %2393 = vset.pattern.permute.xlu0 1
  %2394 = vperm.xlu0 %2393, %v57
  %v2395 = vpop.permute.xlu0 %2394
  %2396 = vset.pattern.permute.xlu0 1
  %2397 = vperm.xlu0 %2396, %v58
  %v2398 = vpop.permute.xlu0 %2397
  %2399 = vset.pattern.permute.xlu0 1
  %2400 = vperm.xlu0 %2399, %v59
  %v2401 = vpop.permute.xlu0 %2400
  %vm2402 = vcmp.eq.s32.totalorder %v2356, %v61
  %vm2403 = vcmp.eq.s32.totalorder %v2359, %v61
  %vm2404 = vcmp.eq.s32.totalorder %v2362, %v61
  %vm2405 = vcmp.eq.s32.totalorder %v2365, %v61
  %vm2406 = vcmp.eq.s32.totalorder %v2368, %v61
  %vm2407 = vcmp.eq.s32.totalorder %v2371, %v61
  %vm2408 = vcmp.eq.s32.totalorder %v2374, %v61
  %vm2409 = vcmp.eq.s32.totalorder %v2377, %v61
  %vm2410 = vcmp.eq.s32.totalorder %v2380, %v61
  %vm2411 = vcmp.eq.s32.totalorder %v2383, %v61
  %vm2412 = vcmp.eq.s32.totalorder %v2386, %v61
  %vm2413 = vcmp.eq.s32.totalorder %v2389, %v61
  %vm2414 = vcmp.eq.s32.totalorder %v2392, %v61
  %vm2415 = vcmp.eq.s32.totalorder %v2395, %v61
  %vm2416 = vcmp.eq.s32.totalorder %v2398, %v61
  %vm2417 = vcmp.eq.s32.totalorder %v2401, %v61
  %v2418 = vsel %vm2402, 1, 0
  %v2419 = vsel %vm2403, 1, 0
  %v2420 = vsel %vm2404, 1, 0
  %v2421 = vsel %vm2405, 1, 0
  %v2422 = vsel %vm2406, 1, 0
  %v2423 = vsel %vm2407, 1, 0
  %v2424 = vsel %vm2408, 1, 0
  %v2425 = vsel %vm2409, 1, 0
  %v2426 = vsel %vm2410, 1, 0
  %v2427 = vsel %vm2411, 1, 0
  %v2428 = vsel %vm2412, 1, 0
  %v2429 = vsel %vm2413, 1, 0
  %v2430 = vsel %vm2414, 1, 0
  %v2431 = vsel %vm2415, 1, 0
  %v2432 = vsel %vm2416, 1, 0
  %v2433 = vsel %vm2417, 1, 0
  %v2434 = vadd.s32 %v2338, %v2418
  %v2435 = vadd.s32 %v2339, %v2419
  %v2436 = vadd.s32 %v2340, %v2420
  %v2437 = vadd.s32 %v2341, %v2421
  %v2438 = vadd.s32 %v2342, %v2422
  %v2439 = vadd.s32 %v2343, %v2423
  %v2440 = vadd.s32 %v2344, %v2424
  %v2441 = vadd.s32 %v2345, %v2425
  %v2442 = vadd.s32 %v2346, %v2426
  %v2443 = vadd.s32 %v2347, %v2427
  %v2444 = vadd.s32 %v2348, %v2428
  %v2445 = vadd.s32 %v2349, %v2429
  %v2446 = vadd.s32 %v2350, %v2430
  %v2447 = vadd.s32 %v2351, %v2431
  %v2448 = vadd.s32 %v2352, %v2432
  %v2449 = vadd.s32 %v2353, %v2433
  %2450 = vset.pattern.permute.xlu0 2
  %2451 = vperm.xlu0 %2450, %v44
  %v2452 = vpop.permute.xlu0 %2451
  %2453 = vset.pattern.permute.xlu0 2
  %2454 = vperm.xlu0 %2453, %v45
  %v2455 = vpop.permute.xlu0 %2454
  %2456 = vset.pattern.permute.xlu0 2
  %2457 = vperm.xlu0 %2456, %v46
  %v2458 = vpop.permute.xlu0 %2457
  %2459 = vset.pattern.permute.xlu0 2
  %2460 = vperm.xlu0 %2459, %v47
  %v2461 = vpop.permute.xlu0 %2460
  %2462 = vset.pattern.permute.xlu0 2
  %2463 = vperm.xlu0 %2462, %v48
  %v2464 = vpop.permute.xlu0 %2463
  %2465 = vset.pattern.permute.xlu0 2
  %2466 = vperm.xlu0 %2465, %v49
  %v2467 = vpop.permute.xlu0 %2466
  %2468 = vset.pattern.permute.xlu0 2
  %2469 = vperm.xlu0 %2468, %v50
  %v2470 = vpop.permute.xlu0 %2469
  %2471 = vset.pattern.permute.xlu0 2
  %2472 = vperm.xlu0 %2471, %v51
  %v2473 = vpop.permute.xlu0 %2472
  %2474 = vset.pattern.permute.xlu0 2
  %2475 = vperm.xlu0 %2474, %v52
  %v2476 = vpop.permute.xlu0 %2475
  %2477 = vset.pattern.permute.xlu0 2
  %2478 = vperm.xlu0 %2477, %v53
  %v2479 = vpop.permute.xlu0 %2478
  %2480 = vset.pattern.permute.xlu0 2
  %2481 = vperm.xlu0 %2480, %v54
  %v2482 = vpop.permute.xlu0 %2481
  %2483 = vset.pattern.permute.xlu0 2
  %2484 = vperm.xlu0 %2483, %v55
  %v2485 = vpop.permute.xlu0 %2484
  %2486 = vset.pattern.permute.xlu0 2
  %2487 = vperm.xlu0 %2486, %v56
  %v2488 = vpop.permute.xlu0 %2487
  %2489 = vset.pattern.permute.xlu0 2
  %2490 = vperm.xlu0 %2489, %v57
  %v2491 = vpop.permute.xlu0 %2490
  %2492 = vset.pattern.permute.xlu0 2
  %2493 = vperm.xlu0 %2492, %v58
  %v2494 = vpop.permute.xlu0 %2493
  %2495 = vset.pattern.permute.xlu0 2
  %2496 = vperm.xlu0 %2495, %v59
  %v2497 = vpop.permute.xlu0 %2496
  %vm2498 = vcmp.eq.s32.totalorder %v2452, %v61
  %vm2499 = vcmp.eq.s32.totalorder %v2455, %v61
  %vm2500 = vcmp.eq.s32.totalorder %v2458, %v61
  %vm2501 = vcmp.eq.s32.totalorder %v2461, %v61
  %vm2502 = vcmp.eq.s32.totalorder %v2464, %v61
  %vm2503 = vcmp.eq.s32.totalorder %v2467, %v61
  %vm2504 = vcmp.eq.s32.totalorder %v2470, %v61
  %vm2505 = vcmp.eq.s32.totalorder %v2473, %v61
  %vm2506 = vcmp.eq.s32.totalorder %v2476, %v61
  %vm2507 = vcmp.eq.s32.totalorder %v2479, %v61
  %vm2508 = vcmp.eq.s32.totalorder %v2482, %v61
  %vm2509 = vcmp.eq.s32.totalorder %v2485, %v61
  %vm2510 = vcmp.eq.s32.totalorder %v2488, %v61
  %vm2511 = vcmp.eq.s32.totalorder %v2491, %v61
  %vm2512 = vcmp.eq.s32.totalorder %v2494, %v61
  %vm2513 = vcmp.eq.s32.totalorder %v2497, %v61
  %v2514 = vsel %vm2498, 1, 0
  %v2515 = vsel %vm2499, 1, 0
  %v2516 = vsel %vm2500, 1, 0
  %v2517 = vsel %vm2501, 1, 0
  %v2518 = vsel %vm2502, 1, 0
  %v2519 = vsel %vm2503, 1, 0
  %v2520 = vsel %vm2504, 1, 0
  %v2521 = vsel %vm2505, 1, 0
  %v2522 = vsel %vm2506, 1, 0
  %v2523 = vsel %vm2507, 1, 0
  %v2524 = vsel %vm2508, 1, 0
  %v2525 = vsel %vm2509, 1, 0
  %v2526 = vsel %vm2510, 1, 0
  %v2527 = vsel %vm2511, 1, 0
  %v2528 = vsel %vm2512, 1, 0
  %v2529 = vsel %vm2513, 1, 0
  %v2530 = vadd.s32 %v2434, %v2514
  %v2531 = vadd.s32 %v2435, %v2515
  %v2532 = vadd.s32 %v2436, %v2516
  %v2533 = vadd.s32 %v2437, %v2517
  %v2534 = vadd.s32 %v2438, %v2518
  %v2535 = vadd.s32 %v2439, %v2519
  %v2536 = vadd.s32 %v2440, %v2520
  %v2537 = vadd.s32 %v2441, %v2521
  %v2538 = vadd.s32 %v2442, %v2522
  %v2539 = vadd.s32 %v2443, %v2523
  %v2540 = vadd.s32 %v2444, %v2524
  %v2541 = vadd.s32 %v2445, %v2525
  %v2542 = vadd.s32 %v2446, %v2526
  %v2543 = vadd.s32 %v2447, %v2527
  %v2544 = vadd.s32 %v2448, %v2528
  %v2545 = vadd.s32 %v2449, %v2529
  %2546 = vset.pattern.permute.xlu0 3
  %2547 = vperm.xlu0 %2546, %v44
  %v2548 = vpop.permute.xlu0 %2547
  %2549 = vset.pattern.permute.xlu0 3
  %2550 = vperm.xlu0 %2549, %v45
  %v2551 = vpop.permute.xlu0 %2550
  %2552 = vset.pattern.permute.xlu0 3
  %2553 = vperm.xlu0 %2552, %v46
  %v2554 = vpop.permute.xlu0 %2553
  %2555 = vset.pattern.permute.xlu0 3
  %2556 = vperm.xlu0 %2555, %v47
  %v2557 = vpop.permute.xlu0 %2556
  %2558 = vset.pattern.permute.xlu0 3
  %2559 = vperm.xlu0 %2558, %v48
  %v2560 = vpop.permute.xlu0 %2559
  %2561 = vset.pattern.permute.xlu0 3
  %2562 = vperm.xlu0 %2561, %v49
  %v2563 = vpop.permute.xlu0 %2562
  %2564 = vset.pattern.permute.xlu0 3
  %2565 = vperm.xlu0 %2564, %v50
  %v2566 = vpop.permute.xlu0 %2565
  %2567 = vset.pattern.permute.xlu0 3
  %2568 = vperm.xlu0 %2567, %v51
  %v2569 = vpop.permute.xlu0 %2568
  %2570 = vset.pattern.permute.xlu0 3
  %2571 = vperm.xlu0 %2570, %v52
  %v2572 = vpop.permute.xlu0 %2571
  %2573 = vset.pattern.permute.xlu0 3
  %2574 = vperm.xlu0 %2573, %v53
  %v2575 = vpop.permute.xlu0 %2574
  %2576 = vset.pattern.permute.xlu0 3
  %2577 = vperm.xlu0 %2576, %v54
  %v2578 = vpop.permute.xlu0 %2577
  %2579 = vset.pattern.permute.xlu0 3
  %2580 = vperm.xlu0 %2579, %v55
  %v2581 = vpop.permute.xlu0 %2580
  %2582 = vset.pattern.permute.xlu0 3
  %2583 = vperm.xlu0 %2582, %v56
  %v2584 = vpop.permute.xlu0 %2583
  %2585 = vset.pattern.permute.xlu0 3
  %2586 = vperm.xlu0 %2585, %v57
  %v2587 = vpop.permute.xlu0 %2586
  %2588 = vset.pattern.permute.xlu0 3
  %2589 = vperm.xlu0 %2588, %v58
  %v2590 = vpop.permute.xlu0 %2589
  %2591 = vset.pattern.permute.xlu0 3
  %2592 = vperm.xlu0 %2591, %v59
  %v2593 = vpop.permute.xlu0 %2592
  %vm2594 = vcmp.eq.s32.totalorder %v2548, %v61
  %vm2595 = vcmp.eq.s32.totalorder %v2551, %v61
  %vm2596 = vcmp.eq.s32.totalorder %v2554, %v61
  %vm2597 = vcmp.eq.s32.totalorder %v2557, %v61
  %vm2598 = vcmp.eq.s32.totalorder %v2560, %v61
  %vm2599 = vcmp.eq.s32.totalorder %v2563, %v61
  %vm2600 = vcmp.eq.s32.totalorder %v2566, %v61
  %vm2601 = vcmp.eq.s32.totalorder %v2569, %v61
  %vm2602 = vcmp.eq.s32.totalorder %v2572, %v61
  %vm2603 = vcmp.eq.s32.totalorder %v2575, %v61
  %vm2604 = vcmp.eq.s32.totalorder %v2578, %v61
  %vm2605 = vcmp.eq.s32.totalorder %v2581, %v61
  %vm2606 = vcmp.eq.s32.totalorder %v2584, %v61
  %vm2607 = vcmp.eq.s32.totalorder %v2587, %v61
  %vm2608 = vcmp.eq.s32.totalorder %v2590, %v61
  %vm2609 = vcmp.eq.s32.totalorder %v2593, %v61
  %v2610 = vsel %vm2594, 1, 0
  %v2611 = vsel %vm2595, 1, 0
  %v2612 = vsel %vm2596, 1, 0
  %v2613 = vsel %vm2597, 1, 0
  %v2614 = vsel %vm2598, 1, 0
  %v2615 = vsel %vm2599, 1, 0
  %v2616 = vsel %vm2600, 1, 0
  %v2617 = vsel %vm2601, 1, 0
  %v2618 = vsel %vm2602, 1, 0
  %v2619 = vsel %vm2603, 1, 0
  %v2620 = vsel %vm2604, 1, 0
  %v2621 = vsel %vm2605, 1, 0
  %v2622 = vsel %vm2606, 1, 0
  %v2623 = vsel %vm2607, 1, 0
  %v2624 = vsel %vm2608, 1, 0
  %v2625 = vsel %vm2609, 1, 0
  %v2626 = vadd.s32 %v2530, %v2610
  %v2627 = vadd.s32 %v2531, %v2611
  %v2628 = vadd.s32 %v2532, %v2612
  %v2629 = vadd.s32 %v2533, %v2613
  %v2630 = vadd.s32 %v2534, %v2614
  %v2631 = vadd.s32 %v2535, %v2615
  %v2632 = vadd.s32 %v2536, %v2616
  %v2633 = vadd.s32 %v2537, %v2617
  %v2634 = vadd.s32 %v2538, %v2618
  %v2635 = vadd.s32 %v2539, %v2619
  %v2636 = vadd.s32 %v2540, %v2620
  %v2637 = vadd.s32 %v2541, %v2621
  %v2638 = vadd.s32 %v2542, %v2622
  %v2639 = vadd.s32 %v2543, %v2623
  %v2640 = vadd.s32 %v2544, %v2624
  %v2641 = vadd.s32 %v2545, %v2625
  %2642 = vset.pattern.permute.xlu0 4
  %2643 = vperm.xlu0 %2642, %v44
  %v2644 = vpop.permute.xlu0 %2643
  %2645 = vset.pattern.permute.xlu0 4
  %2646 = vperm.xlu0 %2645, %v45
  %v2647 = vpop.permute.xlu0 %2646
  %2648 = vset.pattern.permute.xlu0 4
  %2649 = vperm.xlu0 %2648, %v46
  %v2650 = vpop.permute.xlu0 %2649
  %2651 = vset.pattern.permute.xlu0 4
  %2652 = vperm.xlu0 %2651, %v47
  %v2653 = vpop.permute.xlu0 %2652
  %2654 = vset.pattern.permute.xlu0 4
  %2655 = vperm.xlu0 %2654, %v48
  %v2656 = vpop.permute.xlu0 %2655
  %2657 = vset.pattern.permute.xlu0 4
  %2658 = vperm.xlu0 %2657, %v49
  %v2659 = vpop.permute.xlu0 %2658
  %2660 = vset.pattern.permute.xlu0 4
  %2661 = vperm.xlu0 %2660, %v50
  %v2662 = vpop.permute.xlu0 %2661
  %2663 = vset.pattern.permute.xlu0 4
  %2664 = vperm.xlu0 %2663, %v51
  %v2665 = vpop.permute.xlu0 %2664
  %2666 = vset.pattern.permute.xlu0 4
  %2667 = vperm.xlu0 %2666, %v52
  %v2668 = vpop.permute.xlu0 %2667
  %2669 = vset.pattern.permute.xlu0 4
  %2670 = vperm.xlu0 %2669, %v53
  %v2671 = vpop.permute.xlu0 %2670
  %2672 = vset.pattern.permute.xlu0 4
  %2673 = vperm.xlu0 %2672, %v54
  %v2674 = vpop.permute.xlu0 %2673
  %2675 = vset.pattern.permute.xlu0 4
  %2676 = vperm.xlu0 %2675, %v55
  %v2677 = vpop.permute.xlu0 %2676
  %2678 = vset.pattern.permute.xlu0 4
  %2679 = vperm.xlu0 %2678, %v56
  %v2680 = vpop.permute.xlu0 %2679
  %2681 = vset.pattern.permute.xlu0 4
  %2682 = vperm.xlu0 %2681, %v57
  %v2683 = vpop.permute.xlu0 %2682
  %2684 = vset.pattern.permute.xlu0 4
  %2685 = vperm.xlu0 %2684, %v58
  %v2686 = vpop.permute.xlu0 %2685
  %2687 = vset.pattern.permute.xlu0 4
  %2688 = vperm.xlu0 %2687, %v59
  %v2689 = vpop.permute.xlu0 %2688
  %vm2690 = vcmp.eq.s32.totalorder %v2644, %v61
  %vm2691 = vcmp.eq.s32.totalorder %v2647, %v61
  %vm2692 = vcmp.eq.s32.totalorder %v2650, %v61
  %vm2693 = vcmp.eq.s32.totalorder %v2653, %v61
  %vm2694 = vcmp.eq.s32.totalorder %v2656, %v61
  %vm2695 = vcmp.eq.s32.totalorder %v2659, %v61
  %vm2696 = vcmp.eq.s32.totalorder %v2662, %v61
  %vm2697 = vcmp.eq.s32.totalorder %v2665, %v61
  %vm2698 = vcmp.eq.s32.totalorder %v2668, %v61
  %vm2699 = vcmp.eq.s32.totalorder %v2671, %v61
  %vm2700 = vcmp.eq.s32.totalorder %v2674, %v61
  %vm2701 = vcmp.eq.s32.totalorder %v2677, %v61
  %vm2702 = vcmp.eq.s32.totalorder %v2680, %v61
  %vm2703 = vcmp.eq.s32.totalorder %v2683, %v61
  %vm2704 = vcmp.eq.s32.totalorder %v2686, %v61
  %vm2705 = vcmp.eq.s32.totalorder %v2689, %v61
  %v2706 = vsel %vm2690, 1, 0
  %v2707 = vsel %vm2691, 1, 0
  %v2708 = vsel %vm2692, 1, 0
  %v2709 = vsel %vm2693, 1, 0
  %v2710 = vsel %vm2694, 1, 0
  %v2711 = vsel %vm2695, 1, 0
  %v2712 = vsel %vm2696, 1, 0
  %v2713 = vsel %vm2697, 1, 0
  %v2714 = vsel %vm2698, 1, 0
  %v2715 = vsel %vm2699, 1, 0
  %v2716 = vsel %vm2700, 1, 0
  %v2717 = vsel %vm2701, 1, 0
  %v2718 = vsel %vm2702, 1, 0
  %v2719 = vsel %vm2703, 1, 0
  %v2720 = vsel %vm2704, 1, 0
  %v2721 = vsel %vm2705, 1, 0
  %v2722 = vadd.s32 %v2626, %v2706
  %v2723 = vadd.s32 %v2627, %v2707
  %v2724 = vadd.s32 %v2628, %v2708
  %v2725 = vadd.s32 %v2629, %v2709
  %v2726 = vadd.s32 %v2630, %v2710
  %v2727 = vadd.s32 %v2631, %v2711
  %v2728 = vadd.s32 %v2632, %v2712
  %v2729 = vadd.s32 %v2633, %v2713
  %v2730 = vadd.s32 %v2634, %v2714
  %v2731 = vadd.s32 %v2635, %v2715
  %v2732 = vadd.s32 %v2636, %v2716
  %v2733 = vadd.s32 %v2637, %v2717
  %v2734 = vadd.s32 %v2638, %v2718
  %v2735 = vadd.s32 %v2639, %v2719
  %v2736 = vadd.s32 %v2640, %v2720
  %v2737 = vadd.s32 %v2641, %v2721
  %2738 = vset.pattern.permute.xlu0 5
  %2739 = vperm.xlu0 %2738, %v44
  %v2740 = vpop.permute.xlu0 %2739
  %2741 = vset.pattern.permute.xlu0 5
  %2742 = vperm.xlu0 %2741, %v45
  %v2743 = vpop.permute.xlu0 %2742
  %2744 = vset.pattern.permute.xlu0 5
  %2745 = vperm.xlu0 %2744, %v46
  %v2746 = vpop.permute.xlu0 %2745
  %2747 = vset.pattern.permute.xlu0 5
  %2748 = vperm.xlu0 %2747, %v47
  %v2749 = vpop.permute.xlu0 %2748
  %2750 = vset.pattern.permute.xlu0 5
  %2751 = vperm.xlu0 %2750, %v48
  %v2752 = vpop.permute.xlu0 %2751
  %2753 = vset.pattern.permute.xlu0 5
  %2754 = vperm.xlu0 %2753, %v49
  %v2755 = vpop.permute.xlu0 %2754
  %2756 = vset.pattern.permute.xlu0 5
  %2757 = vperm.xlu0 %2756, %v50
  %v2758 = vpop.permute.xlu0 %2757
  %2759 = vset.pattern.permute.xlu0 5
  %2760 = vperm.xlu0 %2759, %v51
  %v2761 = vpop.permute.xlu0 %2760
  %2762 = vset.pattern.permute.xlu0 5
  %2763 = vperm.xlu0 %2762, %v52
  %v2764 = vpop.permute.xlu0 %2763
  %2765 = vset.pattern.permute.xlu0 5
  %2766 = vperm.xlu0 %2765, %v53
  %v2767 = vpop.permute.xlu0 %2766
  %2768 = vset.pattern.permute.xlu0 5
  %2769 = vperm.xlu0 %2768, %v54
  %v2770 = vpop.permute.xlu0 %2769
  %2771 = vset.pattern.permute.xlu0 5
  %2772 = vperm.xlu0 %2771, %v55
  %v2773 = vpop.permute.xlu0 %2772
  %2774 = vset.pattern.permute.xlu0 5
  %2775 = vperm.xlu0 %2774, %v56
  %v2776 = vpop.permute.xlu0 %2775
  %2777 = vset.pattern.permute.xlu0 5
  %2778 = vperm.xlu0 %2777, %v57
  %v2779 = vpop.permute.xlu0 %2778
  %2780 = vset.pattern.permute.xlu0 5
  %2781 = vperm.xlu0 %2780, %v58
  %v2782 = vpop.permute.xlu0 %2781
  %2783 = vset.pattern.permute.xlu0 5
  %2784 = vperm.xlu0 %2783, %v59
  %v2785 = vpop.permute.xlu0 %2784
  %vm2786 = vcmp.eq.s32.totalorder %v2740, %v61
  %vm2787 = vcmp.eq.s32.totalorder %v2743, %v61
  %vm2788 = vcmp.eq.s32.totalorder %v2746, %v61
  %vm2789 = vcmp.eq.s32.totalorder %v2749, %v61
  %vm2790 = vcmp.eq.s32.totalorder %v2752, %v61
  %vm2791 = vcmp.eq.s32.totalorder %v2755, %v61
  %vm2792 = vcmp.eq.s32.totalorder %v2758, %v61
  %vm2793 = vcmp.eq.s32.totalorder %v2761, %v61
  %vm2794 = vcmp.eq.s32.totalorder %v2764, %v61
  %vm2795 = vcmp.eq.s32.totalorder %v2767, %v61
  %vm2796 = vcmp.eq.s32.totalorder %v2770, %v61
  %vm2797 = vcmp.eq.s32.totalorder %v2773, %v61
  %vm2798 = vcmp.eq.s32.totalorder %v2776, %v61
  %vm2799 = vcmp.eq.s32.totalorder %v2779, %v61
  %vm2800 = vcmp.eq.s32.totalorder %v2782, %v61
  %vm2801 = vcmp.eq.s32.totalorder %v2785, %v61
  %v2802 = vsel %vm2786, 1, 0
  %v2803 = vsel %vm2787, 1, 0
  %v2804 = vsel %vm2788, 1, 0
  %v2805 = vsel %vm2789, 1, 0
  %v2806 = vsel %vm2790, 1, 0
  %v2807 = vsel %vm2791, 1, 0
  %v2808 = vsel %vm2792, 1, 0
  %v2809 = vsel %vm2793, 1, 0
  %v2810 = vsel %vm2794, 1, 0
  %v2811 = vsel %vm2795, 1, 0
  %v2812 = vsel %vm2796, 1, 0
  %v2813 = vsel %vm2797, 1, 0
  %v2814 = vsel %vm2798, 1, 0
  %v2815 = vsel %vm2799, 1, 0
  %v2816 = vsel %vm2800, 1, 0
  %v2817 = vsel %vm2801, 1, 0
  %v2818 = vadd.s32 %v2722, %v2802
  %v2819 = vadd.s32 %v2723, %v2803
  %v2820 = vadd.s32 %v2724, %v2804
  %v2821 = vadd.s32 %v2725, %v2805
  %v2822 = vadd.s32 %v2726, %v2806
  %v2823 = vadd.s32 %v2727, %v2807
  %v2824 = vadd.s32 %v2728, %v2808
  %v2825 = vadd.s32 %v2729, %v2809
  %v2826 = vadd.s32 %v2730, %v2810
  %v2827 = vadd.s32 %v2731, %v2811
  %v2828 = vadd.s32 %v2732, %v2812
  %v2829 = vadd.s32 %v2733, %v2813
  %v2830 = vadd.s32 %v2734, %v2814
  %v2831 = vadd.s32 %v2735, %v2815
  %v2832 = vadd.s32 %v2736, %v2816
  %v2833 = vadd.s32 %v2737, %v2817
  %2834 = vset.pattern.permute.xlu0 6
  %2835 = vperm.xlu0 %2834, %v44
  %v2836 = vpop.permute.xlu0 %2835
  %2837 = vset.pattern.permute.xlu0 6
  %2838 = vperm.xlu0 %2837, %v45
  %v2839 = vpop.permute.xlu0 %2838
  %2840 = vset.pattern.permute.xlu0 6
  %2841 = vperm.xlu0 %2840, %v46
  %v2842 = vpop.permute.xlu0 %2841
  %2843 = vset.pattern.permute.xlu0 6
  %2844 = vperm.xlu0 %2843, %v47
  %v2845 = vpop.permute.xlu0 %2844
  %2846 = vset.pattern.permute.xlu0 6
  %2847 = vperm.xlu0 %2846, %v48
  %v2848 = vpop.permute.xlu0 %2847
  %2849 = vset.pattern.permute.xlu0 6
  %2850 = vperm.xlu0 %2849, %v49
  %v2851 = vpop.permute.xlu0 %2850
  %2852 = vset.pattern.permute.xlu0 6
  %2853 = vperm.xlu0 %2852, %v50
  %v2854 = vpop.permute.xlu0 %2853
  %2855 = vset.pattern.permute.xlu0 6
  %2856 = vperm.xlu0 %2855, %v51
  %v2857 = vpop.permute.xlu0 %2856
  %2858 = vset.pattern.permute.xlu0 6
  %2859 = vperm.xlu0 %2858, %v52
  %v2860 = vpop.permute.xlu0 %2859
  %2861 = vset.pattern.permute.xlu0 6
  %2862 = vperm.xlu0 %2861, %v53
  %v2863 = vpop.permute.xlu0 %2862
  %2864 = vset.pattern.permute.xlu0 6
  %2865 = vperm.xlu0 %2864, %v54
  %v2866 = vpop.permute.xlu0 %2865
  %2867 = vset.pattern.permute.xlu0 6
  %2868 = vperm.xlu0 %2867, %v55
  %v2869 = vpop.permute.xlu0 %2868
  %2870 = vset.pattern.permute.xlu0 6
  %2871 = vperm.xlu0 %2870, %v56
  %v2872 = vpop.permute.xlu0 %2871
  %2873 = vset.pattern.permute.xlu0 6
  %2874 = vperm.xlu0 %2873, %v57
  %v2875 = vpop.permute.xlu0 %2874
  %2876 = vset.pattern.permute.xlu0 6
  %2877 = vperm.xlu0 %2876, %v58
  %v2878 = vpop.permute.xlu0 %2877
  %2879 = vset.pattern.permute.xlu0 6
  %2880 = vperm.xlu0 %2879, %v59
  %v2881 = vpop.permute.xlu0 %2880
  %vm2882 = vcmp.eq.s32.totalorder %v2836, %v61
  %vm2883 = vcmp.eq.s32.totalorder %v2839, %v61
  %vm2884 = vcmp.eq.s32.totalorder %v2842, %v61
  %vm2885 = vcmp.eq.s32.totalorder %v2845, %v61
  %vm2886 = vcmp.eq.s32.totalorder %v2848, %v61
  %vm2887 = vcmp.eq.s32.totalorder %v2851, %v61
  %vm2888 = vcmp.eq.s32.totalorder %v2854, %v61
  %vm2889 = vcmp.eq.s32.totalorder %v2857, %v61
  %vm2890 = vcmp.eq.s32.totalorder %v2860, %v61
  %vm2891 = vcmp.eq.s32.totalorder %v2863, %v61
  %vm2892 = vcmp.eq.s32.totalorder %v2866, %v61
  %vm2893 = vcmp.eq.s32.totalorder %v2869, %v61
  %vm2894 = vcmp.eq.s32.totalorder %v2872, %v61
  %vm2895 = vcmp.eq.s32.totalorder %v2875, %v61
  %vm2896 = vcmp.eq.s32.totalorder %v2878, %v61
  %vm2897 = vcmp.eq.s32.totalorder %v2881, %v61
  %v2898 = vsel %vm2882, 1, 0
  %v2899 = vsel %vm2883, 1, 0
  %v2900 = vsel %vm2884, 1, 0
  %v2901 = vsel %vm2885, 1, 0
  %v2902 = vsel %vm2886, 1, 0
  %v2903 = vsel %vm2887, 1, 0
  %v2904 = vsel %vm2888, 1, 0
  %v2905 = vsel %vm2889, 1, 0
  %v2906 = vsel %vm2890, 1, 0
  %v2907 = vsel %vm2891, 1, 0
  %v2908 = vsel %vm2892, 1, 0
  %v2909 = vsel %vm2893, 1, 0
  %v2910 = vsel %vm2894, 1, 0
  %v2911 = vsel %vm2895, 1, 0
  %v2912 = vsel %vm2896, 1, 0
  %v2913 = vsel %vm2897, 1, 0
  %v2914 = vadd.s32 %v2818, %v2898
  %v2915 = vadd.s32 %v2819, %v2899
  %v2916 = vadd.s32 %v2820, %v2900
  %v2917 = vadd.s32 %v2821, %v2901
  %v2918 = vadd.s32 %v2822, %v2902
  %v2919 = vadd.s32 %v2823, %v2903
  %v2920 = vadd.s32 %v2824, %v2904
  %v2921 = vadd.s32 %v2825, %v2905
  %v2922 = vadd.s32 %v2826, %v2906
  %v2923 = vadd.s32 %v2827, %v2907
  %v2924 = vadd.s32 %v2828, %v2908
  %v2925 = vadd.s32 %v2829, %v2909
  %v2926 = vadd.s32 %v2830, %v2910
  %v2927 = vadd.s32 %v2831, %v2911
  %v2928 = vadd.s32 %v2832, %v2912
  %v2929 = vadd.s32 %v2833, %v2913
  %2930 = vset.pattern.permute.xlu0 7
  %2931 = vperm.xlu0 %2930, %v44
  %v2932 = vpop.permute.xlu0 %2931
  %2933 = vset.pattern.permute.xlu0 7
  %2934 = vperm.xlu0 %2933, %v45
  %v2935 = vpop.permute.xlu0 %2934
  %2936 = vset.pattern.permute.xlu0 7
  %2937 = vperm.xlu0 %2936, %v46
  %v2938 = vpop.permute.xlu0 %2937
  %2939 = vset.pattern.permute.xlu0 7
  %2940 = vperm.xlu0 %2939, %v47
  %v2941 = vpop.permute.xlu0 %2940
  %2942 = vset.pattern.permute.xlu0 7
  %2943 = vperm.xlu0 %2942, %v48
  %v2944 = vpop.permute.xlu0 %2943
  %2945 = vset.pattern.permute.xlu0 7
  %2946 = vperm.xlu0 %2945, %v49
  %v2947 = vpop.permute.xlu0 %2946
  %2948 = vset.pattern.permute.xlu0 7
  %2949 = vperm.xlu0 %2948, %v50
  %v2950 = vpop.permute.xlu0 %2949
  %2951 = vset.pattern.permute.xlu0 7
  %2952 = vperm.xlu0 %2951, %v51
  %v2953 = vpop.permute.xlu0 %2952
  %2954 = vset.pattern.permute.xlu0 7
  %2955 = vperm.xlu0 %2954, %v52
  %v2956 = vpop.permute.xlu0 %2955
  %2957 = vset.pattern.permute.xlu0 7
  %2958 = vperm.xlu0 %2957, %v53
  %v2959 = vpop.permute.xlu0 %2958
  %2960 = vset.pattern.permute.xlu0 7
  %2961 = vperm.xlu0 %2960, %v54
  %v2962 = vpop.permute.xlu0 %2961
  %2963 = vset.pattern.permute.xlu0 7
  %2964 = vperm.xlu0 %2963, %v55
  %v2965 = vpop.permute.xlu0 %2964
  %2966 = vset.pattern.permute.xlu0 7
  %2967 = vperm.xlu0 %2966, %v56
  %v2968 = vpop.permute.xlu0 %2967
  %2969 = vset.pattern.permute.xlu0 7
  %2970 = vperm.xlu0 %2969, %v57
  %v2971 = vpop.permute.xlu0 %2970
  %2972 = vset.pattern.permute.xlu0 7
  %2973 = vperm.xlu0 %2972, %v58
  %v2974 = vpop.permute.xlu0 %2973
  %2975 = vset.pattern.permute.xlu0 7
  %2976 = vperm.xlu0 %2975, %v59
  %v2977 = vpop.permute.xlu0 %2976
  %vm2978 = vcmp.eq.s32.totalorder %v2932, %v61
  %vm2979 = vcmp.eq.s32.totalorder %v2935, %v61
  %vm2980 = vcmp.eq.s32.totalorder %v2938, %v61
  %vm2981 = vcmp.eq.s32.totalorder %v2941, %v61
  %vm2982 = vcmp.eq.s32.totalorder %v2944, %v61
  %vm2983 = vcmp.eq.s32.totalorder %v2947, %v61
  %vm2984 = vcmp.eq.s32.totalorder %v2950, %v61
  %vm2985 = vcmp.eq.s32.totalorder %v2953, %v61
  %vm2986 = vcmp.eq.s32.totalorder %v2956, %v61
  %vm2987 = vcmp.eq.s32.totalorder %v2959, %v61
  %vm2988 = vcmp.eq.s32.totalorder %v2962, %v61
  %vm2989 = vcmp.eq.s32.totalorder %v2965, %v61
  %vm2990 = vcmp.eq.s32.totalorder %v2968, %v61
  %vm2991 = vcmp.eq.s32.totalorder %v2971, %v61
  %vm2992 = vcmp.eq.s32.totalorder %v2974, %v61
  %vm2993 = vcmp.eq.s32.totalorder %v2977, %v61
  %v2994 = vsel %vm2978, 1, 0
  %v2995 = vsel %vm2979, 1, 0
  %v2996 = vsel %vm2980, 1, 0
  %v2997 = vsel %vm2981, 1, 0
  %v2998 = vsel %vm2982, 1, 0
  %v2999 = vsel %vm2983, 1, 0
  %v3000 = vsel %vm2984, 1, 0
  %v3001 = vsel %vm2985, 1, 0
  %v3002 = vsel %vm2986, 1, 0
  %v3003 = vsel %vm2987, 1, 0
  %v3004 = vsel %vm2988, 1, 0
  %v3005 = vsel %vm2989, 1, 0
  %v3006 = vsel %vm2990, 1, 0
  %v3007 = vsel %vm2991, 1, 0
  %v3008 = vsel %vm2992, 1, 0
  %v3009 = vsel %vm2993, 1, 0
  %v3010 = vadd.s32 %v2914, %v2994
  %v3011 = vadd.s32 %v2915, %v2995
  %v3012 = vadd.s32 %v2916, %v2996
  %v3013 = vadd.s32 %v2917, %v2997
  %v3014 = vadd.s32 %v2918, %v2998
  %v3015 = vadd.s32 %v2919, %v2999
  %v3016 = vadd.s32 %v2920, %v3000
  %v3017 = vadd.s32 %v2921, %v3001
  %v3018 = vadd.s32 %v2922, %v3002
  %v3019 = vadd.s32 %v2923, %v3003
  %v3020 = vadd.s32 %v2924, %v3004
  %v3021 = vadd.s32 %v2925, %v3005
  %v3022 = vadd.s32 %v2926, %v3006
  %v3023 = vadd.s32 %v2927, %v3007
  %v3024 = vadd.s32 %v2928, %v3008
  %v3025 = vadd.s32 %v2929, %v3009
  %3026 = vset.pattern.permute.xlu0 8
  %3027 = vperm.xlu0 %3026, %v44
  %v3028 = vpop.permute.xlu0 %3027
  %3029 = vset.pattern.permute.xlu0 8
  %3030 = vperm.xlu0 %3029, %v45
  %v3031 = vpop.permute.xlu0 %3030
  %3032 = vset.pattern.permute.xlu0 8
  %3033 = vperm.xlu0 %3032, %v46
  %v3034 = vpop.permute.xlu0 %3033
  %3035 = vset.pattern.permute.xlu0 8
  %3036 = vperm.xlu0 %3035, %v47
  %v3037 = vpop.permute.xlu0 %3036
  %3038 = vset.pattern.permute.xlu0 8
  %3039 = vperm.xlu0 %3038, %v48
  %v3040 = vpop.permute.xlu0 %3039
  %3041 = vset.pattern.permute.xlu0 8
  %3042 = vperm.xlu0 %3041, %v49
  %v3043 = vpop.permute.xlu0 %3042
  %3044 = vset.pattern.permute.xlu0 8
  %3045 = vperm.xlu0 %3044, %v50
  %v3046 = vpop.permute.xlu0 %3045
  %3047 = vset.pattern.permute.xlu0 8
  %3048 = vperm.xlu0 %3047, %v51
  %v3049 = vpop.permute.xlu0 %3048
  %3050 = vset.pattern.permute.xlu0 8
  %3051 = vperm.xlu0 %3050, %v52
  %v3052 = vpop.permute.xlu0 %3051
  %3053 = vset.pattern.permute.xlu0 8
  %3054 = vperm.xlu0 %3053, %v53
  %v3055 = vpop.permute.xlu0 %3054
  %3056 = vset.pattern.permute.xlu0 8
  %3057 = vperm.xlu0 %3056, %v54
  %v3058 = vpop.permute.xlu0 %3057
  %3059 = vset.pattern.permute.xlu0 8
  %3060 = vperm.xlu0 %3059, %v55
  %v3061 = vpop.permute.xlu0 %3060
  %3062 = vset.pattern.permute.xlu0 8
  %3063 = vperm.xlu0 %3062, %v56
  %v3064 = vpop.permute.xlu0 %3063
  %3065 = vset.pattern.permute.xlu0 8
  %3066 = vperm.xlu0 %3065, %v57
  %v3067 = vpop.permute.xlu0 %3066
  %3068 = vset.pattern.permute.xlu0 8
  %3069 = vperm.xlu0 %3068, %v58
  %v3070 = vpop.permute.xlu0 %3069
  %3071 = vset.pattern.permute.xlu0 8
  %3072 = vperm.xlu0 %3071, %v59
  %v3073 = vpop.permute.xlu0 %3072
  %vm3074 = vcmp.eq.s32.totalorder %v3028, %v61
  %vm3075 = vcmp.eq.s32.totalorder %v3031, %v61
  %vm3076 = vcmp.eq.s32.totalorder %v3034, %v61
  %vm3077 = vcmp.eq.s32.totalorder %v3037, %v61
  %vm3078 = vcmp.eq.s32.totalorder %v3040, %v61
  %vm3079 = vcmp.eq.s32.totalorder %v3043, %v61
  %vm3080 = vcmp.eq.s32.totalorder %v3046, %v61
  %vm3081 = vcmp.eq.s32.totalorder %v3049, %v61
  %vm3082 = vcmp.eq.s32.totalorder %v3052, %v61
  %vm3083 = vcmp.eq.s32.totalorder %v3055, %v61
  %vm3084 = vcmp.eq.s32.totalorder %v3058, %v61
  %vm3085 = vcmp.eq.s32.totalorder %v3061, %v61
  %vm3086 = vcmp.eq.s32.totalorder %v3064, %v61
  %vm3087 = vcmp.eq.s32.totalorder %v3067, %v61
  %vm3088 = vcmp.eq.s32.totalorder %v3070, %v61
  %vm3089 = vcmp.eq.s32.totalorder %v3073, %v61
  %v3090 = vsel %vm3074, 1, 0
  %v3091 = vsel %vm3075, 1, 0
  %v3092 = vsel %vm3076, 1, 0
  %v3093 = vsel %vm3077, 1, 0
  %v3094 = vsel %vm3078, 1, 0
  %v3095 = vsel %vm3079, 1, 0
  %v3096 = vsel %vm3080, 1, 0
  %v3097 = vsel %vm3081, 1, 0
  %v3098 = vsel %vm3082, 1, 0
  %v3099 = vsel %vm3083, 1, 0
  %v3100 = vsel %vm3084, 1, 0
  %v3101 = vsel %vm3085, 1, 0
  %v3102 = vsel %vm3086, 1, 0
  %v3103 = vsel %vm3087, 1, 0
  %v3104 = vsel %vm3088, 1, 0
  %v3105 = vsel %vm3089, 1, 0
  %v3106 = vadd.s32 %v3010, %v3090
  %v3107 = vadd.s32 %v3011, %v3091
  %v3108 = vadd.s32 %v3012, %v3092
  %v3109 = vadd.s32 %v3013, %v3093
  %v3110 = vadd.s32 %v3014, %v3094
  %v3111 = vadd.s32 %v3015, %v3095
  %v3112 = vadd.s32 %v3016, %v3096
  %v3113 = vadd.s32 %v3017, %v3097
  %v3114 = vadd.s32 %v3018, %v3098
  %v3115 = vadd.s32 %v3019, %v3099
  %v3116 = vadd.s32 %v3020, %v3100
  %v3117 = vadd.s32 %v3021, %v3101
  %v3118 = vadd.s32 %v3022, %v3102
  %v3119 = vadd.s32 %v3023, %v3103
  %v3120 = vadd.s32 %v3024, %v3104
  %v3121 = vadd.s32 %v3025, %v3105
  %3122 = vset.pattern.permute.xlu0 9
  %3123 = vperm.xlu0 %3122, %v44
  %v3124 = vpop.permute.xlu0 %3123
  %3125 = vset.pattern.permute.xlu0 9
  %3126 = vperm.xlu0 %3125, %v45
  %v3127 = vpop.permute.xlu0 %3126
  %3128 = vset.pattern.permute.xlu0 9
  %3129 = vperm.xlu0 %3128, %v46
  %v3130 = vpop.permute.xlu0 %3129
  %3131 = vset.pattern.permute.xlu0 9
  %3132 = vperm.xlu0 %3131, %v47
  %v3133 = vpop.permute.xlu0 %3132
  %3134 = vset.pattern.permute.xlu0 9
  %3135 = vperm.xlu0 %3134, %v48
  %v3136 = vpop.permute.xlu0 %3135
  %3137 = vset.pattern.permute.xlu0 9
  %3138 = vperm.xlu0 %3137, %v49
  %v3139 = vpop.permute.xlu0 %3138
  %3140 = vset.pattern.permute.xlu0 9
  %3141 = vperm.xlu0 %3140, %v50
  %v3142 = vpop.permute.xlu0 %3141
  %3143 = vset.pattern.permute.xlu0 9
  %3144 = vperm.xlu0 %3143, %v51
  %v3145 = vpop.permute.xlu0 %3144
  %3146 = vset.pattern.permute.xlu0 9
  %3147 = vperm.xlu0 %3146, %v52
  %v3148 = vpop.permute.xlu0 %3147
  %3149 = vset.pattern.permute.xlu0 9
  %3150 = vperm.xlu0 %3149, %v53
  %v3151 = vpop.permute.xlu0 %3150
  %3152 = vset.pattern.permute.xlu0 9
  %3153 = vperm.xlu0 %3152, %v54
  %v3154 = vpop.permute.xlu0 %3153
  %3155 = vset.pattern.permute.xlu0 9
  %3156 = vperm.xlu0 %3155, %v55
  %v3157 = vpop.permute.xlu0 %3156
  %3158 = vset.pattern.permute.xlu0 9
  %3159 = vperm.xlu0 %3158, %v56
  %v3160 = vpop.permute.xlu0 %3159
  %3161 = vset.pattern.permute.xlu0 9
  %3162 = vperm.xlu0 %3161, %v57
  %v3163 = vpop.permute.xlu0 %3162
  %3164 = vset.pattern.permute.xlu0 9
  %3165 = vperm.xlu0 %3164, %v58
  %v3166 = vpop.permute.xlu0 %3165
  %3167 = vset.pattern.permute.xlu0 9
  %3168 = vperm.xlu0 %3167, %v59
  %v3169 = vpop.permute.xlu0 %3168
  %vm3170 = vcmp.eq.s32.totalorder %v3124, %v61
  %vm3171 = vcmp.eq.s32.totalorder %v3127, %v61
  %vm3172 = vcmp.eq.s32.totalorder %v3130, %v61
  %vm3173 = vcmp.eq.s32.totalorder %v3133, %v61
  %vm3174 = vcmp.eq.s32.totalorder %v3136, %v61
  %vm3175 = vcmp.eq.s32.totalorder %v3139, %v61
  %vm3176 = vcmp.eq.s32.totalorder %v3142, %v61
  %vm3177 = vcmp.eq.s32.totalorder %v3145, %v61
  %vm3178 = vcmp.eq.s32.totalorder %v3148, %v61
  %vm3179 = vcmp.eq.s32.totalorder %v3151, %v61
  %vm3180 = vcmp.eq.s32.totalorder %v3154, %v61
  %vm3181 = vcmp.eq.s32.totalorder %v3157, %v61
  %vm3182 = vcmp.eq.s32.totalorder %v3160, %v61
  %vm3183 = vcmp.eq.s32.totalorder %v3163, %v61
  %vm3184 = vcmp.eq.s32.totalorder %v3166, %v61
  %vm3185 = vcmp.eq.s32.totalorder %v3169, %v61
  %v3186 = vsel %vm3170, 1, 0
  %v3187 = vsel %vm3171, 1, 0
  %v3188 = vsel %vm3172, 1, 0
  %v3189 = vsel %vm3173, 1, 0
  %v3190 = vsel %vm3174, 1, 0
  %v3191 = vsel %vm3175, 1, 0
  %v3192 = vsel %vm3176, 1, 0
  %v3193 = vsel %vm3177, 1, 0
  %v3194 = vsel %vm3178, 1, 0
  %v3195 = vsel %vm3179, 1, 0
  %v3196 = vsel %vm3180, 1, 0
  %v3197 = vsel %vm3181, 1, 0
  %v3198 = vsel %vm3182, 1, 0
  %v3199 = vsel %vm3183, 1, 0
  %v3200 = vsel %vm3184, 1, 0
  %v3201 = vsel %vm3185, 1, 0
  %v3202 = vadd.s32 %v3106, %v3186
  %v3203 = vadd.s32 %v3107, %v3187
  %v3204 = vadd.s32 %v3108, %v3188
  %v3205 = vadd.s32 %v3109, %v3189
  %v3206 = vadd.s32 %v3110, %v3190
  %v3207 = vadd.s32 %v3111, %v3191
  %v3208 = vadd.s32 %v3112, %v3192
  %v3209 = vadd.s32 %v3113, %v3193
  %v3210 = vadd.s32 %v3114, %v3194
  %v3211 = vadd.s32 %v3115, %v3195
  %v3212 = vadd.s32 %v3116, %v3196
  %v3213 = vadd.s32 %v3117, %v3197
  %v3214 = vadd.s32 %v3118, %v3198
  %v3215 = vadd.s32 %v3119, %v3199
  %v3216 = vadd.s32 %v3120, %v3200
  %v3217 = vadd.s32 %v3121, %v3201
  %v3218 = vcvt.s32.f32 %v3202
  %v3219 = vcvt.s32.f32 %v3203
  %v3220 = vcvt.s32.f32 %v3204
  %v3221 = vcvt.s32.f32 %v3205
  %v3222 = vcvt.s32.f32 %v3206
  %v3223 = vcvt.s32.f32 %v3207
  %v3224 = vcvt.s32.f32 %v3208
  %v3225 = vcvt.s32.f32 %v3209
  %v3226 = vcvt.s32.f32 %v3210
  %v3227 = vcvt.s32.f32 %v3211
  %v3228 = vcvt.s32.f32 %v3212
  %v3229 = vcvt.s32.f32 %v3213
  %v3230 = vcvt.s32.f32 %v3214
  %v3231 = vcvt.s32.f32 %v3215
  %v3232 = vcvt.s32.f32 %v3216
  %v3233 = vcvt.s32.f32 %v3217
  %v3234 = vpack.c.bf16 %v3219, %v3218
  %v3235 = vpack.c.bf16 %v3221, %v3220
  %v3236 = vpack.c.bf16 %v3223, %v3222
  %v3237 = vpack.c.bf16 %v3225, %v3224
  %v3238 = vpack.c.bf16 %v3227, %v3226
  %v3239 = vpack.c.bf16 %v3229, %v3228
  %v3240 = vpack.c.bf16 %v3231, %v3230
  %v3241 = vpack.c.bf16 %v3233, %v3232
  %s3242 = scalar_lea.vmem %s1, 32
  %v3243 = vld [vmem:[%s3242] sm:$0xf]
  %v3244 = vld [vmem:[%s3242 + $0x4] sm:$0xf]
  %v3245 = vld [vmem:[%s3242 + $0x8] sm:$0xf]
  %v3246 = vld [vmem:[%s3242 + $0xc] sm:$0xf]
  %v3251 = vunpack.c.l.b16 %v3243
  %v3252 = vunpack.c.l.b16 %v3244
  %v3253 = vunpack.c.l.b16 %v3245
  %v3254 = vunpack.c.l.b16 %v3246
  %v3255 = vpack.c.b16 %v3252, %v3251
  %v3256 = vpack.c.b16 %v3254, %v3253
  %v3260 = vsel %vm1046, %v3234, 0
  %v3263 = vsel %vm1046, %v3235, 0
  %v3266 = vsel %vm1046, %v3236, 0
  %v3269 = vsel %vm1046, %v3237, 0
  %v3272 = vsel %vm1046, %v3238, 0
  %v3275 = vsel %vm1046, %v3239, 0
  %v3278 = vsel %vm1046, %v3240, 0
  %v3281 = vsel %vm1046, %v3241, 0
  %3283 = vmatprep.subr.bf16.mxu0 0
  %3284 = vmatpush1.bf16.msra.mxu0 0
  %3285 = vmatprep.subr.bf16.mxu0 0
  %3286 = vmatpush1.bf16.msra.mxu0 0
  %3287 = vmatprep.subr.bf16.mxu0 0
  %3288 = vmatpush1.bf16.msra.mxu0 0
  %3289 = vmatprep.subr.bf16.mxu0 0
  %3290 = vmatpush1.bf16.msra.mxu0 0
  %3291 = vmatprep.subr.bf16.mxu0 0
  %3292 = vmatpush1.bf16.msra.mxu0 0
  %3293 = vmatprep.subr.bf16.mxu0 0
  %3294 = vmatpush1.bf16.msra.mxu0 0
  %3295 = vmatprep.subr.bf16.mxu0 0
  %3296 = vmatpush1.bf16.msra.mxu0 %v3256
  %3297 = vmatprep.subr.bf16.mxu0 0
  %3298 = vmatpush1.bf16.msra.mxu0 %v3255
  %3299 = vmatprep.subr.bf16.mxu0 0
  %3300 = vmatpush2.bf16.msra.mxu0 0
  %3301 = vmatprep.subr.bf16.mxu0 0
  %3302 = vmatpush2.bf16.msra.mxu0 0
  %3303 = vmatprep.subr.bf16.mxu0 0
  %3304 = vmatpush2.bf16.msra.mxu0 0
  %3305 = vmatprep.subr.bf16.mxu0 0
  %3306 = vmatpush2.bf16.msra.mxu0 0
  %3307 = vmatprep.subr.bf16.mxu0 0
  %3308 = vmatpush2.bf16.msra.mxu0 0
  %3309 = vmatprep.subr.bf16.mxu0 0
  %3310 = vmatpush2.bf16.msra.mxu0 0
  %3311 = vmatprep.subr.bf16.mxu0 0
  %3312 = vmatpush2.bf16.msra.mxu0 0
  %3313 = vmatprep.subr.bf16.mxu0 0
  %3314 = vmatpush2.bf16.msra.mxu0 0
  %3315 = vmatprep.mubr.bf16.mxu0 0
  %3316 = vmatmul.mubr.bf16.gmra.mxu0 %v3260
  %v3317 = vpop.f32.mrf.mxu0
  %v3318 = vadd.f32 0.0, %v3317
  %v3319 = vpop.f32.mrf.mxu0
  %v3320 = vpop.f32.mrf.mxu0
  %v3321 = vadd.f32 0.0, %v3320
  %v3322 = vpop.f32.mrf.mxu0
  %3323 = vmatprep.mubr.bf16.mxu0 0
  %3324 = vmatmul.mubr.bf16.gmra.mxu0 %v3263
  %v3325 = vpop.f32.mrf.mxu0
  %v3326 = vadd.f32 0.0, %v3325
  %v3327 = vpop.f32.mrf.mxu0
  %v3328 = vpop.f32.mrf.mxu0
  %v3329 = vadd.f32 0.0, %v3328
  %v3330 = vpop.f32.mrf.mxu0
  %3331 = vmatprep.mubr.bf16.mxu0 0
  %3332 = vmatmul.mubr.bf16.gmra.mxu0 %v3266
  %v3333 = vpop.f32.mrf.mxu0
  %v3334 = vadd.f32 0.0, %v3333
  %v3335 = vpop.f32.mrf.mxu0
  %v3336 = vpop.f32.mrf.mxu0
  %v3337 = vadd.f32 0.0, %v3336
  %v3338 = vpop.f32.mrf.mxu0
  %3339 = vmatprep.mubr.bf16.mxu0 0
  %3340 = vmatmul.mubr.bf16.gmra.mxu0 %v3269
  %v3341 = vpop.f32.mrf.mxu0
  %v3342 = vadd.f32 0.0, %v3341
  %v3343 = vpop.f32.mrf.mxu0
  %v3344 = vpop.f32.mrf.mxu0
  %v3345 = vadd.f32 0.0, %v3344
  %v3346 = vpop.f32.mrf.mxu0
  %3347 = vmatprep.mubr.bf16.mxu0 0
  %3348 = vmatmul.mubr.bf16.gmra.mxu0 %v3272
  %v3349 = vpop.f32.mrf.mxu0
  %v3350 = vadd.f32 0.0, %v3349
  %v3351 = vpop.f32.mrf.mxu0
  %v3352 = vpop.f32.mrf.mxu0
  %v3353 = vadd.f32 0.0, %v3352
  %v3354 = vpop.f32.mrf.mxu0
  %3355 = vmatprep.mubr.bf16.mxu0 0
  %3356 = vmatmul.mubr.bf16.gmra.mxu0 %v3275
  %v3357 = vpop.f32.mrf.mxu0
  %v3358 = vadd.f32 0.0, %v3357
  %v3359 = vpop.f32.mrf.mxu0
  %v3360 = vpop.f32.mrf.mxu0
  %v3361 = vadd.f32 0.0, %v3360
  %v3362 = vpop.f32.mrf.mxu0
  %3363 = vmatprep.mubr.bf16.mxu0 0
  %3364 = vmatmul.mubr.bf16.gmra.mxu0 %v3278
  %v3365 = vpop.f32.mrf.mxu0
  %v3366 = vadd.f32 0.0, %v3365
  %v3367 = vpop.f32.mrf.mxu0
  %v3368 = vpop.f32.mrf.mxu0
  %v3369 = vadd.f32 0.0, %v3368
  %v3370 = vpop.f32.mrf.mxu0
  %3371 = vmatprep.mubr.bf16.mxu0 0
  %3372 = vmatmul.mubr.bf16.gmra.mxu0 %v3281
  %v3373 = vpop.f32.mrf.mxu0
  %v3374 = vadd.f32 0.0, %v3373
  %v3375 = vpop.f32.mrf.mxu0
  %v3376 = vpop.f32.mrf.mxu0
  %v3377 = vadd.f32 0.0, %v3376
  %v3378 = vpop.f32.mrf.mxu0
  %3379 = vdwg.mxu0
  %v3380 = vmul.f32 %v1106, 0.1
  %v3381 = vmul.f32 %v1109, 0.1
  %v3382 = vmul.f32 %v1114, 0.1
  %v3383 = vmul.f32 %v1117, 0.1
  %v3384 = vmul.f32 %v1122, 0.1
  %v3385 = vmul.f32 %v1125, 0.1
  %v3386 = vmul.f32 %v1130, 0.1
  %v3387 = vmul.f32 %v1133, 0.1
  %v3388 = vmul.f32 %v1138, 0.1
  %v3389 = vmul.f32 %v1141, 0.1
  %v3390 = vmul.f32 %v1146, 0.1
  %v3391 = vmul.f32 %v1149, 0.1
  %v3392 = vmul.f32 %v1154, 0.1
  %v3393 = vmul.f32 %v1157, 0.1
  %v3394 = vmul.f32 %v1162, 0.1
  %v3395 = vmul.f32 %v1165, 0.1
  %v3396 = vmax.f32 %v3380, 0.0
  %v3397 = vmax.f32 %v3381, 0.0
  %v3398 = vmax.f32 %v3382, 0.0
  %v3399 = vmax.f32 %v3383, 0.0
  %v3400 = vmax.f32 %v3384, 0.0
  %v3401 = vmax.f32 %v3385, 0.0
  %v3402 = vmax.f32 %v3386, 0.0
  %v3403 = vmax.f32 %v3387, 0.0
  %v3404 = vmax.f32 %v3388, 0.0
  %v3405 = vmax.f32 %v3389, 0.0
  %v3406 = vmax.f32 %v3390, 0.0
  %v3407 = vmax.f32 %v3391, 0.0
  %v3408 = vmax.f32 %v3392, 0.0
  %v3409 = vmax.f32 %v3393, 0.0
  %v3410 = vmax.f32 %v3394, 0.0
  %v3411 = vmax.f32 %v3395, 0.0
  %vm3412 = vcmask 130048
  %3413 = vst.msk [vmem:[%s2] sm:$0xff] %vm3412, %v3396
  %3414 = vst.msk [vmem:[%s2 + $0x8] sm:$0xff] %vm3412, %v3397
  %3415 = vst.msk [vmem:[%s2 + $0x10] sm:$0xff] %vm3412, %v3398
  %3416 = vst.msk [vmem:[%s2 + $0x18] sm:$0xff] %vm3412, %v3399
  %3417 = vst.msk [vmem:[%s2 + $0x20] sm:$0xff] %vm3412, %v3400
  %3418 = vst.msk [vmem:[%s2 + $0x28] sm:$0xff] %vm3412, %v3401
  %3419 = vst.msk [vmem:[%s2 + $0x30] sm:$0xff] %vm3412, %v3402
  %3420 = vst.msk [vmem:[%s2 + $0x38] sm:$0xff] %vm3412, %v3403
  %3421 = vst.msk [vmem:[%s2 + $0x40] sm:$0xff] %vm3412, %v3404
  %3422 = vst.msk [vmem:[%s2 + $0x48] sm:$0xff] %vm3412, %v3405
  %3423 = vst.msk [vmem:[%s2 + $0x50] sm:$0xff] %vm3412, %v3406
  %3424 = vst.msk [vmem:[%s2 + $0x58] sm:$0xff] %vm3412, %v3407
  %3425 = vst.msk [vmem:[%s2 + $0x60] sm:$0xff] %vm3412, %v3408
  %3426 = vst.msk [vmem:[%s2 + $0x68] sm:$0xff] %vm3412, %v3409
  %3427 = vst.msk [vmem:[%s2 + $0x70] sm:$0xff] %vm3412, %v3410
  %3428 = vst.msk [vmem:[%s2 + $0x78] sm:$0xff] %vm3412, %v3411
  %v3429 = vmul.f32 %v2212, 0.1
  %v3430 = vmul.f32 %v2215, 0.1
  %v3431 = vmul.f32 %v2220, 0.1
  %v3432 = vmul.f32 %v2223, 0.1
  %v3433 = vmul.f32 %v2228, 0.1
  %v3434 = vmul.f32 %v2231, 0.1
  %v3435 = vmul.f32 %v2236, 0.1
  %v3436 = vmul.f32 %v2239, 0.1
  %v3437 = vmul.f32 %v2244, 0.1
  %v3438 = vmul.f32 %v2247, 0.1
  %v3439 = vmul.f32 %v2252, 0.1
  %v3440 = vmul.f32 %v2255, 0.1
  %v3441 = vmul.f32 %v2260, 0.1
  %v3442 = vmul.f32 %v2263, 0.1
  %v3443 = vmul.f32 %v2268, 0.1
  %v3444 = vmul.f32 %v2271, 0.1
  %v3445 = vmax.f32 %v3429, 0.0
  %v3446 = vmax.f32 %v3430, 0.0
  %v3447 = vmax.f32 %v3431, 0.0
  %v3448 = vmax.f32 %v3432, 0.0
  %v3449 = vmax.f32 %v3433, 0.0
  %v3450 = vmax.f32 %v3434, 0.0
  %v3451 = vmax.f32 %v3435, 0.0
  %v3452 = vmax.f32 %v3436, 0.0
  %v3453 = vmax.f32 %v3437, 0.0
  %v3454 = vmax.f32 %v3438, 0.0
  %v3455 = vmax.f32 %v3439, 0.0
  %v3456 = vmax.f32 %v3440, 0.0
  %v3457 = vmax.f32 %v3441, 0.0
  %v3458 = vmax.f32 %v3442, 0.0
  %v3459 = vmax.f32 %v3443, 0.0
  %v3460 = vmax.f32 %v3444, 0.0
  %3477 = vrot.lane.b32.xlu0 %v3445, 16
  %v3478 = vpop.permute.xlu0 %3477
  %3479 = vrot.lane.b32.xlu0 %v3446, 16
  %v3480 = vpop.permute.xlu0 %3479
  %3481 = vrot.lane.b32.xlu0 %v3447, 16
  %v3482 = vpop.permute.xlu0 %3481
  %3483 = vrot.lane.b32.xlu0 %v3448, 16
  %v3484 = vpop.permute.xlu0 %3483
  %3485 = vrot.lane.b32.xlu0 %v3449, 16
  %v3486 = vpop.permute.xlu0 %3485
  %3487 = vrot.lane.b32.xlu0 %v3450, 16
  %v3488 = vpop.permute.xlu0 %3487
  %3489 = vrot.lane.b32.xlu0 %v3451, 16
  %v3490 = vpop.permute.xlu0 %3489
  %3491 = vrot.lane.b32.xlu0 %v3452, 16
  %v3492 = vpop.permute.xlu0 %3491
  %3493 = vrot.lane.b32.xlu0 %v3453, 16
  %v3494 = vpop.permute.xlu0 %3493
  %3495 = vrot.lane.b32.xlu0 %v3454, 16
  %v3496 = vpop.permute.xlu0 %3495
  %3497 = vrot.lane.b32.xlu0 %v3455, 16
  %v3498 = vpop.permute.xlu0 %3497
  %3499 = vrot.lane.b32.xlu0 %v3456, 16
  %v3500 = vpop.permute.xlu0 %3499
  %3501 = vrot.lane.b32.xlu0 %v3457, 16
  %v3502 = vpop.permute.xlu0 %3501
  %3503 = vrot.lane.b32.xlu0 %v3458, 16
  %v3504 = vpop.permute.xlu0 %3503
  %3505 = vrot.lane.b32.xlu0 %v3459, 16
  %v3506 = vpop.permute.xlu0 %3505
  %3507 = vrot.lane.b32.xlu0 %v3460, 16
  %v3508 = vpop.permute.xlu0 %3507
  %vm3525 = vcmask 261248
  %3526 = vst.msk [vmem:[%s2] sm:$0xff] %vm3525, %v3478
  %3527 = vst.msk [vmem:[%s2 + $0x8] sm:$0xff] %vm3525, %v3480
  %3528 = vst.msk [vmem:[%s2 + $0x10] sm:$0xff] %vm3525, %v3482
  %3529 = vst.msk [vmem:[%s2 + $0x18] sm:$0xff] %vm3525, %v3484
  %3530 = vst.msk [vmem:[%s2 + $0x20] sm:$0xff] %vm3525, %v3486
  %3531 = vst.msk [vmem:[%s2 + $0x28] sm:$0xff] %vm3525, %v3488
  %3532 = vst.msk [vmem:[%s2 + $0x30] sm:$0xff] %vm3525, %v3490
  %3533 = vst.msk [vmem:[%s2 + $0x38] sm:$0xff] %vm3525, %v3492
  %3534 = vst.msk [vmem:[%s2 + $0x40] sm:$0xff] %vm3525, %v3494
  %3535 = vst.msk [vmem:[%s2 + $0x48] sm:$0xff] %vm3525, %v3496
  %3536 = vst.msk [vmem:[%s2 + $0x50] sm:$0xff] %vm3525, %v3498
  %3537 = vst.msk [vmem:[%s2 + $0x58] sm:$0xff] %vm3525, %v3500
  %3538 = vst.msk [vmem:[%s2 + $0x60] sm:$0xff] %vm3525, %v3502
  %3539 = vst.msk [vmem:[%s2 + $0x68] sm:$0xff] %vm3525, %v3504
  %3540 = vst.msk [vmem:[%s2 + $0x70] sm:$0xff] %vm3525, %v3506
  %3541 = vst.msk [vmem:[%s2 + $0x78] sm:$0xff] %vm3525, %v3508
  %v3542 = vmul.f32 %v3318, 0.1
  %v3543 = vmul.f32 %v3321, 0.1
  %v3544 = vmul.f32 %v3326, 0.1
  %v3545 = vmul.f32 %v3329, 0.1
  %v3546 = vmul.f32 %v3334, 0.1
  %v3547 = vmul.f32 %v3337, 0.1
  %v3548 = vmul.f32 %v3342, 0.1
  %v3549 = vmul.f32 %v3345, 0.1
  %v3550 = vmul.f32 %v3350, 0.1
  %v3551 = vmul.f32 %v3353, 0.1
  %v3552 = vmul.f32 %v3358, 0.1
  %v3553 = vmul.f32 %v3361, 0.1
  %v3554 = vmul.f32 %v3366, 0.1
  %v3555 = vmul.f32 %v3369, 0.1
  %v3556 = vmul.f32 %v3374, 0.1
  %v3557 = vmul.f32 %v3377, 0.1
  %v3558 = vmax.f32 %v3542, 0.0
  %v3559 = vmax.f32 %v3543, 0.0
  %v3560 = vmax.f32 %v3544, 0.0
  %v3561 = vmax.f32 %v3545, 0.0
  %v3562 = vmax.f32 %v3546, 0.0
  %v3563 = vmax.f32 %v3547, 0.0
  %v3564 = vmax.f32 %v3548, 0.0
  %v3565 = vmax.f32 %v3549, 0.0
  %v3566 = vmax.f32 %v3550, 0.0
  %v3567 = vmax.f32 %v3551, 0.0
  %v3568 = vmax.f32 %v3552, 0.0
  %v3569 = vmax.f32 %v3553, 0.0
  %v3570 = vmax.f32 %v3554, 0.0
  %v3571 = vmax.f32 %v3555, 0.0
  %v3572 = vmax.f32 %v3556, 0.0
  %v3573 = vmax.f32 %v3557, 0.0
  %3590 = vrot.lane.b32.xlu0 %v3558, 32
  %v3591 = vpop.permute.xlu0 %3590
  %3592 = vrot.lane.b32.xlu0 %v3559, 32
  %v3593 = vpop.permute.xlu0 %3592
  %3594 = vrot.lane.b32.xlu0 %v3560, 32
  %v3595 = vpop.permute.xlu0 %3594
  %3596 = vrot.lane.b32.xlu0 %v3561, 32
  %v3597 = vpop.permute.xlu0 %3596
  %3598 = vrot.lane.b32.xlu0 %v3562, 32
  %v3599 = vpop.permute.xlu0 %3598
  %3600 = vrot.lane.b32.xlu0 %v3563, 32
  %v3601 = vpop.permute.xlu0 %3600
  %3602 = vrot.lane.b32.xlu0 %v3564, 32
  %v3603 = vpop.permute.xlu0 %3602
  %3604 = vrot.lane.b32.xlu0 %v3565, 32
  %v3605 = vpop.permute.xlu0 %3604
  %3606 = vrot.lane.b32.xlu0 %v3566, 32
  %v3607 = vpop.permute.xlu0 %3606
  %3608 = vrot.lane.b32.xlu0 %v3567, 32
  %v3609 = vpop.permute.xlu0 %3608
  %3610 = vrot.lane.b32.xlu0 %v3568, 32
  %v3611 = vpop.permute.xlu0 %3610
  %3612 = vrot.lane.b32.xlu0 %v3569, 32
  %v3613 = vpop.permute.xlu0 %3612
  %3614 = vrot.lane.b32.xlu0 %v3570, 32
  %v3615 = vpop.permute.xlu0 %3614
  %3616 = vrot.lane.b32.xlu0 %v3571, 32
  %v3617 = vpop.permute.xlu0 %3616
  %3618 = vrot.lane.b32.xlu0 %v3572, 32
  %v3619 = vpop.permute.xlu0 %3618
  %3620 = vrot.lane.b32.xlu0 %v3573, 32
  %v3621 = vpop.permute.xlu0 %3620
  %vm3638 = vcmask 392448
  %3639 = vst.msk [vmem:[%s2] sm:$0xff] %vm3638, %v3591
  %3640 = vst.msk [vmem:[%s2 + $0x8] sm:$0xff] %vm3638, %v3593
  %3641 = vst.msk [vmem:[%s2 + $0x10] sm:$0xff] %vm3638, %v3595
  %3642 = vst.msk [vmem:[%s2 + $0x18] sm:$0xff] %vm3638, %v3597
  %3643 = vst.msk [vmem:[%s2 + $0x20] sm:$0xff] %vm3638, %v3599
  %3644 = vst.msk [vmem:[%s2 + $0x28] sm:$0xff] %vm3638, %v3601
  %3645 = vst.msk [vmem:[%s2 + $0x30] sm:$0xff] %vm3638, %v3603
  %3646 = vst.msk [vmem:[%s2 + $0x38] sm:$0xff] %vm3638, %v3605
  %3647 = vst.msk [vmem:[%s2 + $0x40] sm:$0xff] %vm3638, %v3607
  %3648 = vst.msk [vmem:[%s2 + $0x48] sm:$0xff] %vm3638, %v3609
  %3649 = vst.msk [vmem:[%s2 + $0x50] sm:$0xff] %vm3638, %v3611
  %3650 = vst.msk [vmem:[%s2 + $0x58] sm:$0xff] %vm3638, %v3613
  %3651 = vst.msk [vmem:[%s2 + $0x60] sm:$0xff] %vm3638, %v3615
  %3652 = vst.msk [vmem:[%s2 + $0x68] sm:$0xff] %vm3638, %v3617
  %3653 = vst.msk [vmem:[%s2 + $0x70] sm:$0xff] %vm3638, %v3619
  %3654 = vst.msk [vmem:[%s2 + $0x78] sm:$0xff] %vm3638, %v3621
  // Predicated region
  $region10: #{dmgcn_forward.1} parent=0 // pred_check
    _
  $region11: #{dmgcn_forward.1} parent=0 // pred_check_branch
    %3656 = sbr.rel (0) target = $region13
  $region12: #{dmgcn_forward.1} parent=0 // pred_region
    _
  $region13: #{dmgcn_forward.1} parent=0 // pred_fallthru
    _
  // Predicated region
  $region14: #{dmgcn_forward.1} parent=0 // pred_check
    _
  $region15: #{dmgcn_forward.1} parent=0 // pred_check_branch
    %3658 = sbr.rel (0) target = $region17
  $region16: #{dmgcn_forward.1} parent=0 // pred_region
    _
  $region17: #{dmgcn_forward.1} parent=0 // pred_fallthru
    _

</llo_original>
